<compile_context>
chip_gen: v5e
topology: v5e:2x2
jax: 0.10.0
libtpu: 0.0.40
codegen_flags: <defaults>
</compile_context>

<pallas_src>
import functools

import numpy as np
import jax
import jax.numpy as jnp
from jax.experimental import pallas as pl
from jax.experimental.pallas import tpu as pltpu

# ----------------------------- config ("CfgNode") -----------------------------
N_CLASS = 2                    # foreground classes (background is class 0)
POOL_K = 3                     # position-sensitive pooling grid k x k
FEAT_CH = 16                   # backbone feature channels
STRIDE = 4                     # feature stride (image / feature)
ANCHOR_RATIOS = (0.5, 1.0, 2.0)
ANCHOR_SCALE = 4.0
N_ANCHOR = len(ANCHOR_RATIOS)
N_PROPOSAL = 16                # proposals kept per image
SCORE_THRESHOLD = 0.05
NMS_THRESHOLD = 0.3
OFFSET_NORM_MEAN = (0.0, 0.0, 0.0, 0.0)
OFFSET_NORM_STD = (0.1, 0.1, 0.2, 0.2)

_VMEM_LIMIT = 32 * 1024 * 1024   # explicit scoped VMEM limit, safe on v5e/v6e/v7x


def _round_up(x, m):
    return ((x + m - 1) // m) * m


def _choose_tile_m(m, target=512):
    """M tile: multiple of 8, <= target, >= 2 grid steps when possible (v7x has 2 TCs)."""
    tm = min(_round_up(m, 8), target)
    if tm >= m and m > 8:
        tm = _round_up(pl.cdiv(m, 2), 8)
    return max(tm, 8)


# ------------------------------ Pallas kernels --------------------------------
def _backbone_fused_kernel(col_ref, w_ref, b_ref, hw_ref, hb_ref, feat_ref, ps_ref):
    """conv-as-matmul (im2col rows) + bias + ReLU, then the fused 1x1 ps heads as a
    second chained dot on the tile that is still in VMEM (no HBM round trip)."""
    acc = jnp.dot(col_ref[...], w_ref[...], preferred_element_type=jnp.float32)
    acc = jnp.maximum(acc + b_ref[...], 0.0)                    # [TM, Cout] f32
    feat_ref[...] = acc.astype(feat_ref.dtype)                  # bf16 writeback
    heads = jnp.dot(acc.astype(jnp.bfloat16), hw_ref[...],
                    preferred_element_type=jnp.float32) + hb_ref[...]
    ps_ref[...] = heads.astype(ps_ref.dtype)                    # bf16 writeback


def backbone_with_ps_heads(col, w_conv, b_conv, w_head, b_head):
    """col:[M,Kc] bf16 -> (feat:[M,Cout] bf16, ps:[M,Nh] bf16)."""
    M, Kc = col.shape
    Cout = w_conv.shape[1]
    Nh = w_head.shape[1]
    TM = _choose_tile_m(M)
    grid = (pl.cdiv(M, TM),)
    feat, ps = pl.pallas_call(
        _backbone_fused_kernel,
        out_shape=(jax.ShapeDtypeStruct((M, Cout), jnp.bfloat16),
                   jax.ShapeDtypeStruct((M, Nh), jnp.bfloat16)),
        grid=grid,
        in_specs=[
            pl.BlockSpec((TM, Kc), lambda i: (i, 0)),
            pl.BlockSpec((Kc, Cout), lambda i: (0, 0)),
            pl.BlockSpec((1, Cout), lambda i: (0, 0)),
            pl.BlockSpec((Cout, Nh), lambda i: (0, 0)),
            pl.BlockSpec((1, Nh), lambda i: (0, 0)),
        ],
        out_specs=(pl.BlockSpec((TM, Cout), lambda i: (i, 0)),
                   pl.BlockSpec((TM, Nh), lambda i: (i, 0))),
        compiler_params=pltpu.CompilerParams(
            dimension_semantics=("parallel",),
            vmem_limit_bytes=_VMEM_LIMIT,
        ),
    )(col, w_conv, b_conv, w_head, b_head)
    return feat, ps


def _rpn_fused_kernel(x_ref, w_ref, b_ref, hw_ref, hb_ref, o_ref, *, kh, kw, hf, wf, cin):
    """In-kernel 3x3 conv (9 shifted VMEM windows, no im2col in HBM) + bias + ReLU,
    then the fused rpn_score|rpn_offset 1x1 heads; rpn_h never hits HBM."""
    cout = w_ref.shape[-1]
    acc = jnp.zeros((hf * wf, cout), jnp.float32)
    for i in range(kh):
        for j in range(kw):
            patch = x_ref[i:i + hf, j:j + wf, :]                 # [hf, wf, cin] bf16
            acc = acc + jnp.dot(patch.reshape(hf * wf, cin), w_ref[i * kw + j],
                                preferred_element_type=jnp.float32)
    acc = jnp.maximum(acc + b_ref[...], 0.0)                     # [hf*wf, cout] f32
    heads = jnp.dot(acc.astype(jnp.bfloat16), hw_ref[...],
                    preferred_element_type=jnp.float32) + hb_ref[...]
    o_ref[...] = heads.astype(o_ref.dtype)


def rpn_conv_with_heads(feat_pad, w_conv, b_conv, w_head, b_head, hf, wf):
    """feat_pad:[B,hf+2,wf+2,C] bf16 -> rpn head maps [B, hf*wf, Nh] f32."""
    # TODO(synk): for large feature maps, tile rows with a halo instead of one
    # whole-image block per grid step.
    B = feat_pad.shape[0]
    kh, kw = 3, 3
    cin = feat_pad.shape[-1]
    cout = w_conv.shape[-1]
    Nh = w_head.shape[1]
    kernel = functools.partial(_rpn_fused_kernel, kh=kh, kw=kw, hf=hf, wf=wf, cin=cin)
    return pl.pallas_call(
        kernel,
        out_shape=jax.ShapeDtypeStruct((B, hf * wf, Nh), jnp.float32),
        grid=(B,),
        in_specs=[
            pl.BlockSpec((None, hf + 2, wf + 2, cin), lambda b: (b, 0, 0, 0)),
            pl.BlockSpec((kh * kw, cin, cout), lambda b: (0, 0, 0)),
            pl.BlockSpec((1, cout), lambda b: (0, 0)),
            pl.BlockSpec((cout, Nh), lambda b: (0, 0)),
            pl.BlockSpec((1, Nh), lambda b: (0, 0)),
        ],
        out_specs=pl.BlockSpec((None, hf * wf, Nh), lambda b: (b, 0, 0)),
        compiler_params=pltpu.CompilerParams(
            dimension_semantics=("parallel",),
            vmem_limit_bytes=_VMEM_LIMIT,
        ),
    )(feat_pad, w_conv, b_conv, w_head, b_head)


def _psroi_kernel(w_ref, so_ref, scale_ref, shift_ref, o_ref, acc_ref, *, n_score):
    """K-tiled PS-ROI pool + average vote; on the final K step: offset de-norm
    (scale/shift) and class softmax over the first n_score columns."""
    @pl.when(pl.program_id(1) == 0)
    def _():
        acc_ref[...] = jnp.zeros_like(acc_ref)

    acc_ref[...] += jnp.dot(w_ref[...], so_ref[...], preferred_element_type=jnp.float32)

    @pl.when(pl.program_id(1) == pl.num_programs(1) - 1)
    def _():
        acc = acc_ref[...] * scale_ref[...] + shift_ref[...]
        col = jax.lax.broadcasted_iota(jnp.int32, acc.shape, 1)
        is_score = col < n_score
        s = jnp.where(is_score, acc, -1e30)
        m = jnp.max(s, axis=-1, keepdims=True)
        e = jnp.exp(s - m)                       # ~0 outside the score columns
        prob = e / jnp.sum(e, axis=-1, keepdims=True)
        o_ref[...] = jnp.where(is_score, prob, acc).astype(o_ref.dtype)


def psroi_predict_pallas(wmat, so, scale, shift, n_score, tk_target=4096):
    """wmat:[B,P,Kps] bf16, so:[B,Kps,n_tot] bf16, scale/shift:[1,n_tot] f32
       -> pooled:[B,P,n_tot] f32 (softmaxed class probs | de-normalized offsets)."""
    B, P, Kps = wmat.shape
    n_tot = so.shape[-1]
    if Kps <= tk_target:
        TK, Kp = Kps, Kps                        # single K step; TK == full dim
    else:
        TK = tk_target                           # multiple of 128 -> aligned K blocks
        Kp = _round_up(Kps, TK)
    if Kp != Kps:
        wmat = jnp.pad(wmat, ((0, 0), (0, 0), (0, Kp - Kps)))
        so = jnp.pad(so, ((0, 0), (0, Kp - Kps), (0, 0)))
    nk = Kp // TK
    kernel = functools.partial(_psroi_kernel, n_score=n_score)
    return pl.pallas_call(
        kernel,
        out_shape=jax.ShapeDtypeStruct((B, P, n_tot), jnp.float32),
        grid=(B, nk),
        in_specs=[
            pl.BlockSpec((None, P, TK), lambda b, k: (b, 0, k)),
            pl.BlockSpec((None, TK, n_tot), lambda b, k: (b, k, 0)),
            pl.BlockSpec((1, n_tot), lambda b, k: (0, 0)),
            pl.BlockSpec((1, n_tot), lambda b, k: (0, 0)),
        ],
        out_specs=pl.BlockSpec((None, P, n_tot), lambda b, k: (b, 0, 0)),
        scratch_shapes=[pltpu.VMEM((P, n_tot), jnp.float32)],
        compiler_params=pltpu.CompilerParams(
            dimension_semantics=("parallel", "arbitrary"),
            vmem_limit_bytes=_VMEM_LIMIT,
        ),
    )(wmat, so, scale, shift)


# ------------------------------- glue (JAX) ------------------------------------
def im2col_nhwc(x, kh, kw, stride, pad):
    """x:[B,H,W,C] -> col:[B*Ho*Wo, kh*kw*C] (kernel-position-major, C fastest)."""
    B, H, W, C = x.shape
    xp = jnp.pad(x, ((0, 0), (pad, pad), (pad, pad), (0, 0)))
    Ho = (H + 2 * pad - kh) // stride + 1
    Wo = (W + 2 * pad - kw) // stride + 1
    cols = []
    for i in range(kh):
        for j in range(kw):
            cols.append(xp[:, i:i + stride * Ho:stride, j:j + stride * Wo:stride, :])
    col = jnp.concatenate(cols, axis=-1)            # [B, Ho, Wo, kh*kw*C]
    return col.reshape(B * Ho * Wo, kh * kw * C), Ho, Wo


def create_anchors(feat_h, feat_w):
    """Anchors in image coords, (y1,x1,y2,x2); cell-major, anchor fastest."""
    ys = (jnp.arange(feat_h, dtype=jnp.float32) + 0.5) * STRIDE
    xs = (jnp.arange(feat_w, dtype=jnp.float32) + 0.5) * STRIDE
    cy, cx = jnp.meshgrid(ys, xs, indexing="ij")
    base = ANCHOR_SCALE * STRIDE
    hs = jnp.array([base * np.sqrt(r) for r in ANCHOR_RATIOS], jnp.float32)
    ws = jnp.array([base / np.sqrt(r) for r in ANCHOR_RATIOS], jnp.float32)
    cy = cy[..., None]
    cx = cx[..., None]
    anchors = jnp.stack([cy - hs / 2, cx - ws / 2, cy + hs / 2, cx + ws / 2], axis=-1)
    return anchors.reshape(-1, 4)                   # [Hf*Wf*A, 4]


def offset2bbox(src_bbox, offsets):
    """src_bbox:[...,4] (y1,x1,y2,x2); offsets:[...,4*G] -> bboxes:[...,4*G]."""
    src_h = src_bbox[..., 2] - src_bbox[..., 0]
    src_w = src_bbox[..., 3] - src_bbox[..., 1]
    src_cy = src_bbox[..., 0] + 0.5 * src_h
    src_cx = src_bbox[..., 1] + 0.5 * src_w
    dy, dx = offsets[..., 0::4], offsets[..., 1::4]
    dh, dw = offsets[..., 2::4], offsets[..., 3::4]
    cy = dy * src_h[..., None] + src_cy[..., None]
    cx = dx * src_w[..., None] + src_cx[..., None]
    h = jnp.exp(dh) * src_h[..., None]
    w = jnp.exp(dw) * src_w[..., None]
    out = jnp.stack([cy - 0.5 * h, cx - 0.5 * w, cy + 0.5 * h, cx + 0.5 * w], axis=-1)
    return out.reshape(offsets.shape)


def clip_boxes(boxes, img_h, img_w):
    y = jnp.clip(boxes[..., 0::2], 0.0, img_h)
    x = jnp.clip(boxes[..., 1::2], 0.0, img_w)
    return jnp.stack([y, x], axis=-1).reshape(boxes.shape)


def ps_roi_pool_matrix(rois, feat_h, feat_w):
    """Pooling matrix W: pooled[r,c] = sum_m W[r,m]*SO[m,c], m=(h, w, bin)."""
    # TODO(synk): dense Wmat is O(n_roi * k2 * H * W); replace with a scalar-prefetch
    # gather kernel (per-ROI bin bounds in SMEM, DMA only the bin's rows of SO) at
    # realistic feature-map sizes.
    k = POOL_K
    n = rois.shape[0]
    y1 = rois[:, 0] / STRIDE
    x1 = rois[:, 1] / STRIDE
    y2 = rois[:, 2] / STRIDE
    x2 = rois[:, 3] / STRIDE
    bin_h = jnp.maximum(y2 - y1, 1e-3) / k
    bin_w = jnp.maximum(x2 - x1, 1e-3) / k
    ib = jnp.arange(k, dtype=jnp.float32)
    ys = y1[:, None] + ib[None, :] * bin_h[:, None]
    ye = y1[:, None] + (ib[None, :] + 1.0) * bin_h[:, None]
    xs = x1[:, None] + ib[None, :] * bin_w[:, None]
    xe = x1[:, None] + (ib[None, :] + 1.0) * bin_w[:, None]
    hh = jnp.arange(feat_h, dtype=jnp.float32)
    ww = jnp.arange(feat_w, dtype=jnp.float32)
    ymask = (hh[None, None, :] >= jnp.floor(ys)[..., None]) & \
            (hh[None, None, :] < jnp.ceil(ye)[..., None])          # [n,k,H]
    xmask = (ww[None, None, :] >= jnp.floor(xs)[..., None]) & \
            (ww[None, None, :] < jnp.ceil(xe)[..., None])          # [n,k,W]
    mask = (ymask[:, :, None, :, None] & xmask[:, None, :, None, :]).astype(jnp.float32)
    counts = jnp.maximum(mask.sum(axis=(3, 4), keepdims=True), 1.0)
    wmat = mask / counts / float(k * k)             # [n, kby, kbx, H, W]
    wmat = wmat.transpose(0, 3, 4, 1, 2)            # -> [n, H, W, kby, kbx] (h,w,bin)
    return wmat.reshape(n, feat_h * feat_w * k * k)


def rfcn_forward(params, image_batch):
    """image_batch: NCHW float32. Returns (bboxes:[B,P,4*(C+1)], prob:[B,P,C+1])."""
    B, _, H, W = image_batch.shape
    img_h, img_w = float(H), float(W)
    C1 = N_CLASS + 1
    k2 = POOL_K * POOL_K
    A = N_ANCHOR
    n_tot = C1 + 4 * C1                              # 15 pooled columns per bin

    x = image_batch.transpose(0, 2, 3, 1).astype(jnp.bfloat16)   # NCHW -> NHWC once

    # ---- backbone conv (stride 4) + fused ps_score|ps_offset heads ---------------
    # stride(4) > kernel(3): receptive fields are disjoint, so this im2col is <1x the
    # image bytes; the expensive stride-1 conv below avoids im2col entirely.
    col, Hf, Wf = im2col_nhwc(x, 3, 3, STRIDE, 1)                # [B*Hf*Wf, 27] bf16
    HW = Hf * Wf

    w_bb = params["backbone_w"].transpose(2, 3, 1, 0).reshape(9 * 3, FEAT_CH)
    b_bb = params["backbone_b"].reshape(1, FEAT_CH)
    # ps head columns permuted to per-pixel (bin-major) x [C1 scores | 4*C1 offsets]
    # so that the kernel output reshapes for free into the PS-ROI "SO" matrix.
    ws = params["ps_score_w"].reshape(k2, C1, FEAT_CH)
    wo = params["ps_offset_w"].reshape(k2, 4 * C1, FEAT_CH)
    w_ps = jnp.concatenate([ws, wo], axis=1).reshape(k2 * n_tot, FEAT_CH).T
    bs = params["ps_score_b"].reshape(k2, C1)
    bo = params["ps_offset_b"].reshape(k2, 4 * C1)
    b_ps = jnp.concatenate([bs, bo], axis=1).reshape(1, k2 * n_tot)

    feat_flat, ps_flat = backbone_with_ps_heads(
        col, w_bb.astype(jnp.bfloat16), b_bb.astype(jnp.float32),
        w_ps.astype(jnp.bfloat16), b_ps.astype(jnp.float32))
    SO = ps_flat.reshape(B, HW * k2, n_tot)          # rows (h,w,bin); free reshape

    # ---- rpn 3x3 conv + fused rpn heads (rpn_h never materialized in HBM) --------
    feat = feat_flat.reshape(B, Hf, Wf, FEAT_CH)
    feat_pad = jnp.pad(feat, ((0, 0), (1, 1), (1, 1), (0, 0)))
    w_rpn = params["rpn_conv_w"].transpose(2, 3, 1, 0).reshape(9, FEAT_CH, FEAT_CH)
    b_rpn = params["rpn_conv_b"].reshape(1, FEAT_CH)
    w_rh = jnp.concatenate([params["rpn_score_w"].reshape(2 * A, FEAT_CH),
                            params["rpn_offset_w"].reshape(4 * A, FEAT_CH)], axis=0).T
    b_rh = jnp.concatenate([params["rpn_score_b"],
                            params["rpn_offset_b"]]).reshape(1, 6 * A)
    rpn_out = rpn_conv_with_heads(
        feat_pad, w_rpn.astype(jnp.bfloat16), b_rpn.astype(jnp.float32),
        w_rh.astype(jnp.bfloat16), b_rh.astype(jnp.float32), Hf, Wf)   # [B, HW, 18]

    rpn_score = rpn_out[..., :2 * A].reshape(B, HW, A, 2)
    rpn_offset = rpn_out[..., 2 * A:].reshape(B, HW, A, 4)

    # ---- proposals (batched; no per-image device loop) ---------------------------
    anchors = create_anchors(Hf, Wf)                                   # [HW*A, 4]
    # fg prob of 2-way softmax == sigmoid(s_fg - s_bg); pure VPU, no kernel launch
    fg = jax.nn.sigmoid(rpn_score[..., 1] - rpn_score[..., 0]).reshape(B, HW * A)
    offs = rpn_offset.reshape(B, HW * A, 4)
    _, idx = jax.lax.top_k(fg, N_PROPOSAL)                             # [B, P]
    sel_anchors = anchors[idx]                                         # [B, P, 4]
    sel_offs = jnp.take_along_axis(offs, idx[..., None], axis=1)       # [B, P, 4]
    rois = clip_boxes(offset2bbox(sel_anchors, sel_offs), img_h, img_w)
    # TODO(synk): proposal-stage NMS omitted (dynamic shapes); keep top-N by fg score.

    # ---- PS-ROI pool + vote + offset de-norm + class softmax: one kernel ---------
    wmat = ps_roi_pool_matrix(rois.reshape(B * N_PROPOSAL, 4), Hf, Wf)
    wmat = wmat.reshape(B, N_PROPOSAL, HW * k2).astype(jnp.bfloat16)
    std = jnp.tile(jnp.array(OFFSET_NORM_STD, jnp.float32), C1)
    mean = jnp.tile(jnp.array(OFFSET_NORM_MEAN, jnp.float32), C1)
    scale = jnp.concatenate([jnp.ones((C1,), jnp.float32), std]).reshape(1, n_tot)
    shift = jnp.concatenate([jnp.zeros((C1,), jnp.float32), mean]).reshape(1, n_tot)

    pooled = psroi_predict_pallas(wmat, SO, scale, shift, n_score=C1)  # [B, P, 15]
    prob = pooled[..., :C1]                                            # softmaxed probs
    roi_offsets = pooled[..., C1:]                                     # de-normalized

    bboxes = clip_boxes(offset2bbox(rois, roi_offsets), img_h, img_w)  # [B, P, 4*C1]
    return bboxes, prob


# ----------------------- host-side suppression (dynamic shapes) ----------------
def nms_np(boxes_xyxy, scores, iou_thr):
    if boxes_xyxy.shape[0] == 0:
        return np.zeros((0,), np.int64)
    x1, y1, x2, y2 = boxes_xyxy[:, 0], boxes_xyxy[:, 1], boxes_xyxy[:, 2], boxes_xyxy[:, 3]
    areas = np.maximum(x2 - x1, 0.0) * np.maximum(y2 - y1, 0.0)
    order = np.argsort(-scores)
    keep = []
    while order.size > 0:
        i = order[0]
        keep.append(i)
        if order.size == 1:
            break
        rest = order[1:]
        xx1 = np.maximum(x1[i], x1[rest]); yy1 = np.maximum(y1[i], y1[rest])
        xx2 = np.minimum(x2[i], x2[rest]); yy2 = np.minimum(y2[i], y2[rest])
        inter = np.maximum(xx2 - xx1, 0.0) * np.maximum(yy2 - yy1, 0.0)
        iou = inter / np.maximum(areas[i] + areas[rest] - inter, 1e-9)
        order = rest[iou <= iou_thr]
    return np.asarray(keep, np.int64)


def suppress_np(bboxes, prob, score_thr, nms_thr):
    # TODO(synk): dynamic-shape per-class NMS has no clean Pallas equivalent; host-side.
    out_b, out_l, out_s = [], [], []
    for cls in range(1, N_CLASS + 1):
        cls_bbox = bboxes.reshape(-1, N_CLASS + 1, 4)[:, cls, :]
        cls_prob = prob[:, cls]
        mask = cls_prob > score_thr
        cb, cp = cls_bbox[mask], cls_prob[mask]
        keep = nms_np(cb[:, [1, 0, 3, 2]], cp, nms_thr)
        if keep.shape[0] > 0:
            out_b.append(cb[keep])
            out_l.append(np.full((len(keep),), cls, np.int32))
            out_s.append(cp[keep])
    if out_b:
        return np.concatenate(out_b), np.concatenate(out_l), np.concatenate(out_s)
    return np.zeros((0, 4), np.float32), np.zeros((0,), np.int32), np.zeros((0,), np.float32)


# ------------------------------- parameters ------------------------------------
def init_params(key):
    ks = jax.random.split(key, 6)

    def w(k, shape, scale=0.05):
        return scale * jax.random.normal(k, shape, jnp.float32)

    C1 = N_CLASS + 1
    k2 = POOL_K * POOL_K
    return {
        "backbone_w": w(ks[0], (FEAT_CH, 3, 3, 3)),
        "backbone_b": jnp.zeros((FEAT_CH,), jnp.float32),
        "rpn_conv_w": w(ks[1], (FEAT_CH, FEAT_CH, 3, 3)),
        "rpn_conv_b": jnp.zeros((FEAT_CH,), jnp.float32),
        "rpn_score_w": w(ks[2], (2 * N_ANCHOR, FEAT_CH, 1, 1)),
        "rpn_score_b": jnp.zeros((2 * N_ANCHOR,), jnp.float32),
        "rpn_offset_w": w(ks[3], (4 * N_ANCHOR, FEAT_CH, 1, 1)),
        "rpn_offset_b": jnp.zeros((4 * N_ANCHOR,), jnp.float32),
        "ps_score_w": w(ks[4], (k2 * C1, FEAT_CH, 1, 1)),
        "ps_score_b": jnp.zeros((k2 * C1,), jnp.float32),
        "ps_offset_w": w(ks[5], (k2 * 4 * C1, FEAT_CH, 1, 1)),
        "ps_offset_b": jnp.zeros((k2 * 4 * C1,), jnp.float32),
    }


if __name__ == "__main__":
    key = jax.random.PRNGKey(0)
    pkey, ikey = jax.random.split(key)
    params = init_params(pkey)
    image_batch = jax.random.uniform(ikey, (2, 3, 32, 32), jnp.float32)

    fwd = jax.jit(rfcn_forward)
    bboxes, prob = fwd(params, image_batch)
    bboxes = jax.block_until_ready(bboxes)
    prob = jax.block_until_ready(prob)

    bboxes_np = np.asarray(bboxes)
    prob_np = np.asarray(prob)
    for b in range(bboxes_np.shape[0]):
        suppress_np(bboxes_np[b], prob_np[b], SCORE_THRESHOLD, NMS_THRESHOLD)

    print("KERNEL_OK")
</pallas_src>

<mosaic_0001>
module attributes {stable_mosaic.version = 11 : i64} {
  func.func @_backbone_fused_kernel(%arg0: i32, %arg1: memref<64x27xbf16, #tpu.memory_space<vmem>>, %arg2: memref<27x16xbf16, #tpu.memory_space<vmem>>, %arg3: memref<1x16xf32, #tpu.memory_space<vmem>>, %arg4: memref<16x135xbf16, #tpu.memory_space<vmem>>, %arg5: memref<1x135xf32, #tpu.memory_space<vmem>>, %arg6: memref<64x16xbf16, #tpu.memory_space<vmem>>, %arg7: memref<64x135xbf16, #tpu.memory_space<vmem>>) attributes {dimension_semantics = [#tpu.dimension_semantics<parallel>], iteration_bounds = array<i64: 2>, scalar_prefetch = 0 : i64, scratch_operands = 0 : i64, tpu.core_type = #tpu.core_type<tc>, window_params = [{transform_indices = @transform_0, window_bounds = array<i64: 64, 27>}, {pipeline_mode = #tpu.pipeline_mode<synchronous>, transform_indices = @transform_1, window_bounds = array<i64: 27, 16>}, {pipeline_mode = #tpu.pipeline_mode<synchronous>, transform_indices = @transform_2, window_bounds = array<i64: 1, 16>}, {pipeline_mode = #tpu.pipeline_mode<synchronous>, transform_indices = @transform_3, window_bounds = array<i64: 16, 135>}, {pipeline_mode = #tpu.pipeline_mode<synchronous>, transform_indices = @transform_4, window_bounds = array<i64: 1, 135>}, {transform_indices = @transform_5, window_bounds = array<i64: 64, 16>}, {transform_indices = @transform_6, window_bounds = array<i64: 64, 135>}]} {
    %c0 = arith.constant 0 : index
    %c0_0 = arith.constant 0 : index
    %0 = vector.load %arg1[%c0, %c0_0] : memref<64x27xbf16, #tpu.memory_space<vmem>>, vector<64x27xbf16>
    %c0_1 = arith.constant 0 : index
    %c0_2 = arith.constant 0 : index
    %1 = vector.load %arg2[%c0_1, %c0_2] : memref<27x16xbf16, #tpu.memory_space<vmem>>, vector<27x16xbf16>
    %cst = arith.constant dense<0.000000e+00> : vector<64x16xf32>
    %2 = tpu.matmul %0, %1, %cst {dimension_numbers = #tpu.dot_dimension_numbers<[1], [0], [0], [1], [0, 0, 1, 1], [], []>} : vector<64x27xbf16>, vector<27x16xbf16>, vector<64x16xf32> -> vector<64x16xf32>
    %c0_3 = arith.constant 0 : index
    %c0_4 = arith.constant 0 : index
    %3 = vector.load %arg3[%c0_3, %c0_4] : memref<1x16xf32, #tpu.memory_space<vmem>>, vector<1x16xf32>
    %4 = vector.broadcast %3 : vector<1x16xf32> to vector<64x16xf32>
    %5 = arith.addf %2, %4 : vector<64x16xf32>
    %cst_5 = arith.constant 0.000000e+00 : f32
    %6 = vector.broadcast %cst_5 : f32 to vector<64x16xf32>
    %7 = arith.maximumf %5, %6 : vector<64x16xf32>
    %8 = arith.truncf %7 : vector<64x16xf32> to vector<64x16xbf16>
    %c0_6 = arith.constant 0 : index
    %c0_7 = arith.constant 0 : index
    %9 = vector.load %arg6[%c0_6, %c0_7] : memref<64x16xbf16, #tpu.memory_space<vmem>>, vector<64x16xbf16>
    tpu.vector_store %arg6[%c0_6, %c0_7], %8 {strides = array<i32>} : memref<64x16xbf16, #tpu.memory_space<vmem>>, vector<64x16xbf16>,
    %10 = arith.truncf %7 : vector<64x16xf32> to vector<64x16xbf16>
    %c0_8 = arith.constant 0 : index
    %c0_9 = arith.constant 0 : index
    %11 = vector.load %arg4[%c0_8, %c0_9] : memref<16x135xbf16, #tpu.memory_space<vmem>>, vector<16x135xbf16>
    %cst_10 = arith.constant dense<0.000000e+00> : vector<64x135xf32>
    %12 = tpu.matmul %10, %11, %cst_10 {dimension_numbers = #tpu.dot_dimension_numbers<[1], [0], [0], [1], [0, 0, 1, 1], [], []>} : vector<64x16xbf16>, vector<16x135xbf16>, vector<64x135xf32> -> vector<64x135xf32>
    %c0_11 = arith.constant 0 : index
    %c0_12 = arith.constant 0 : index
    %13 = vector.load %arg5[%c0_11, %c0_12] : memref<1x135xf32, #tpu.memory_space<vmem>>, vector<1x135xf32>
    %14 = vector.broadcast %13 : vector<1x135xf32> to vector<64x135xf32>
    %15 = arith.addf %12, %14 : vector<64x135xf32>
    %16 = arith.truncf %15 : vector<64x135xf32> to vector<64x135xbf16>
    %c0_13 = arith.constant 0 : index
    %c0_14 = arith.constant 0 : index
    %17 = vector.load %arg7[%c0_13, %c0_14] : memref<64x135xbf16, #tpu.memory_space<vmem>>, vector<64x135xbf16>
    tpu.vector_store %arg7[%c0_13, %c0_14], %16 {strides = array<i32>} : memref<64x135xbf16, #tpu.memory_space<vmem>>, vector<64x135xbf16>,
    return
  }
  func.func @transform_0(%arg0: i32) -> (i32, i32) {
    %c0_i32 = arith.constant 0 : i32
    %c0_i32_0 = arith.constant 0 : i32
    return %arg0, %c0_i32 : i32, i32
  }
  func.func @transform_1(%arg0: i32) -> (i32, i32) {
    %c0_i32 = arith.constant 0 : i32
    %c0_i32_0 = arith.constant 0 : i32
    %c0_i32_1 = arith.constant 0 : i32
    return %c0_i32, %c0_i32_0 : i32, i32
  }
  func.func @transform_2(%arg0: i32) -> (i32, i32) {
    %c0_i32 = arith.constant 0 : i32
    %c0_i32_0 = arith.constant 0 : i32
    %c0_i32_1 = arith.constant 0 : i32
    return %c0_i32, %c0_i32_0 : i32, i32
  }
  func.func @transform_3(%arg0: i32) -> (i32, i32) {
    %c0_i32 = arith.constant 0 : i32
    %c0_i32_0 = arith.constant 0 : i32
    %c0_i32_1 = arith.constant 0 : i32
    return %c0_i32, %c0_i32_0 : i32, i32
  }
  func.func @transform_4(%arg0: i32) -> (i32, i32) {
    %c0_i32 = arith.constant 0 : i32
    %c0_i32_0 = arith.constant 0 : i32
    %c0_i32_1 = arith.constant 0 : i32
    return %c0_i32, %c0_i32_0 : i32, i32
  }
  func.func @transform_5(%arg0: i32) -> (i32, i32) {
    %c0_i32 = arith.constant 0 : i32
    %c0_i32_0 = arith.constant 0 : i32
    return %arg0, %c0_i32 : i32, i32
  }
  func.func @transform_6(%arg0: i32) -> (i32, i32) {
    %c0_i32 = arith.constant 0 : i32
    %c0_i32_0 = arith.constant 0 : i32
    return %arg0, %c0_i32 : i32, i32
  }
}

module attributes {stable_mosaic.version = 11 : i64} {
  func.func @_rpn_fused_kernel(%arg0: i32, %arg1: memref<1x10x10x16xbf16, #tpu.memory_space<vmem>>, %arg2: memref<9x16x16xbf16, #tpu.memory_space<vmem>>, %arg3: memref<1x16xf32, #tpu.memory_space<vmem>>, %arg4: memref<16x18xbf16, #tpu.memory_space<vmem>>, %arg5: memref<1x18xf32, #tpu.memory_space<vmem>>, %arg6: memref<1x64x18xf32, #tpu.memory_space<vmem>>) attributes {dimension_semantics = [#tpu.dimension_semantics<parallel>], iteration_bounds = array<i64: 2>, scalar_prefetch = 0 : i64, scratch_operands = 0 : i64, tpu.core_type = #tpu.core_type<tc>, window_params = [{transform_indices = @transform_0, window_bounds = array<i64: 1, 10, 10, 16>}, {pipeline_mode = #tpu.pipeline_mode<synchronous>, transform_indices = @transform_1, window_bounds = array<i64: 9, 16, 16>}, {pipeline_mode = #tpu.pipeline_mode<synchronous>, transform_indices = @transform_2, window_bounds = array<i64: 1, 16>}, {pipeline_mode = #tpu.pipeline_mode<synchronous>, transform_indices = @transform_3, window_bounds = array<i64: 16, 18>}, {pipeline_mode = #tpu.pipeline_mode<synchronous>, transform_indices = @transform_4, window_bounds = array<i64: 1, 18>}, {transform_indices = @transform_5, window_bounds = array<i64: 1, 64, 18>}]} {
    %cst = arith.constant 0.000000e+00 : f32
    %0 = vector.broadcast %cst : f32 to vector<64x16xf32>
    %c0 = arith.constant 0 : index
    %c0_0 = arith.constant 0 : index
    %c0_1 = arith.constant 0 : index
    %c0_2 = arith.constant 0 : index
    %1 = vector.load %arg1[%c0, %c0_0, %c0_1, %c0_2] : memref<1x10x10x16xbf16, #tpu.memory_space<vmem>>, vector<1x8x8x16xbf16>
    %2 = vector.shape_cast %1 : vector<1x8x8x16xbf16> to vector<8x8x16xbf16>
    %3 = vector.shape_cast %2 : vector<8x8x16xbf16> to vector<64x16xbf16>
    %c0_3 = arith.constant 0 : index
    %c0_4 = arith.constant 0 : index
    %c0_5 = arith.constant 0 : index
    %4 = vector.load %arg2[%c0_3, %c0_4, %c0_5] : memref<9x16x16xbf16, #tpu.memory_space<vmem>>, vector<1x16x16xbf16>
    %5 = vector.shape_cast %4 : vector<1x16x16xbf16> to vector<16x16xbf16>
    %cst_6 = arith.constant dense<0.000000e+00> : vector<64x16xf32>
    %6 = tpu.matmul %3, %5, %cst_6 {dimension_numbers = #tpu.dot_dimension_numbers<[1], [0], [0], [1], [0, 0, 1, 1], [], []>} : vector<64x16xbf16>, vector<16x16xbf16>, vector<64x16xf32> -> vector<64x16xf32>
    %7 = arith.addf %0, %6 : vector<64x16xf32>
    %c0_7 = arith.constant 0 : index
    %c0_8 = arith.constant 0 : index
    %c1 = arith.constant 1 : index
    %c0_9 = arith.constant 0 : index
    %8 = vector.load %arg1[%c0_7, %c0_8, %c1, %c0_9] : memref<1x10x10x16xbf16, #tpu.memory_space<vmem>>, vector<1x8x8x16xbf16>
    %9 = vector.shape_cast %8 : vector<1x8x8x16xbf16> to vector<8x8x16xbf16>
    %10 = vector.shape_cast %9 : vector<8x8x16xbf16> to vector<64x16xbf16>
    %c1_10 = arith.constant 1 : index
    %c0_11 = arith.constant 0 : index
    %c0_12 = arith.constant 0 : index
    %11 = vector.load %arg2[%c1_10, %c0_11, %c0_12] : memref<9x16x16xbf16, #tpu.memory_space<vmem>>, vector<1x16x16xbf16>
    %12 = vector.shape_cast %11 : vector<1x16x16xbf16> to vector<16x16xbf16>
    %cst_13 = arith.constant dense<0.000000e+00> : vector<64x16xf32>
    %13 = tpu.matmul %10, %12, %cst_13 {dimension_numbers = #tpu.dot_dimension_numbers<[1], [0], [0], [1], [0, 0, 1, 1], [], []>} : vector<64x16xbf16>, vector<16x16xbf16>, vector<64x16xf32> -> vector<64x16xf32>
    %14 = arith.addf %7, %13 : vector<64x16xf32>
    %c0_14 = arith.constant 0 : index
    %c0_15 = arith.constant 0 : index
    %c2 = arith.constant 2 : index
    %c0_16 = arith.constant 0 : index
    %15 = vector.load %arg1[%c0_14, %c0_15, %c2, %c0_16] : memref<1x10x10x16xbf16, #tpu.memory_space<vmem>>, vector<1x8x8x16xbf16>
    %16 = vector.shape_cast %15 : vector<1x8x8x16xbf16> to vector<8x8x16xbf16>
    %17 = vector.shape_cast %16 : vector<8x8x16xbf16> to vector<64x16xbf16>
    %c2_17 = arith.constant 2 : index
    %c0_18 = arith.constant 0 : index
    %c0_19 = arith.constant 0 : index
    %18 = vector.load %arg2[%c2_17, %c0_18, %c0_19] : memref<9x16x16xbf16, #tpu.memory_space<vmem>>, vector<1x16x16xbf16>
    %19 = vector.shape_cast %18 : vector<1x16x16xbf16> to vector<16x16xbf16>
    %cst_20 = arith.constant dense<0.000000e+00> : vector<64x16xf32>
    %20 = tpu.matmul %17, %19, %cst_20 {dimension_numbers = #tpu.dot_dimension_numbers<[1], [0], [0], [1], [0, 0, 1, 1], [], []>} : vector<64x16xbf16>, vector<16x16xbf16>, vector<64x16xf32> -> vector<64x16xf32>
    %21 = arith.addf %14, %20 : vector<64x16xf32>
    %c0_21 = arith.constant 0 : index
    %c1_22 = arith.constant 1 : index
    %c0_23 = arith.constant 0 : index
    %c0_24 = arith.constant 0 : index
    %22 = vector.load %arg1[%c0_21, %c1_22, %c0_23, %c0_24] : memref<1x10x10x16xbf16, #tpu.memory_space<vmem>>, vector<1x8x8x16xbf16>
    %23 = vector.shape_cast %22 : vector<1x8x8x16xbf16> to vector<8x8x16xbf16>
    %24 = vector.shape_cast %23 : vector<8x8x16xbf16> to vector<64x16xbf16>
    %c3 = arith.constant 3 : index
    %c0_25 = arith.constant 0 : index
    %c0_26 = arith.constant 0 : index
    %25 = vector.load %arg2[%c3, %c0_25, %c0_26] : memref<9x16x16xbf16, #tpu.memory_space<vmem>>, vector<1x16x16xbf16>
    %26 = vector.shape_cast %25 : vector<1x16x16xbf16> to vector<16x16xbf16>
    %cst_27 = arith.constant dense<0.000000e+00> : vector<64x16xf32>
    %27 = tpu.matmul %24, %26, %cst_27 {dimension_numbers = #tpu.dot_dimension_numbers<[1], [0], [0], [1], [0, 0, 1, 1], [], []>} : vector<64x16xbf16>, vector<16x16xbf16>, vector<64x16xf32> -> vector<64x16xf32>
    %28 = arith.addf %21, %27 : vector<64x16xf32>
    %c0_28 = arith.constant 0 : index
    %c1_29 = arith.constant 1 : index
    %c1_30 = arith.constant 1 : index
    %c0_31 = arith.constant 0 : index
    %29 = vector.load %arg1[%c0_28, %c1_29, %c1_30, %c0_31] : memref<1x10x10x16xbf16, #tpu.memory_space<vmem>>, vector<1x8x8x16xbf16>
    %30 = vector.shape_cast %29 : vector<1x8x8x16xbf16> to vector<8x8x16xbf16>
    %31 = vector.shape_cast %30 : vector<8x8x16xbf16> to vector<64x16xbf16>
    %c4 = arith.constant 4 : index
    %c0_32 = arith.constant 0 : index
    %c0_33 = arith.constant 0 : index
    %32 = vector.load %arg2[%c4, %c0_32, %c0_33] : memref<9x16x16xbf16, #tpu.memory_space<vmem>>, vector<1x16x16xbf16>
    %33 = vector.shape_cast %32 : vector<1x16x16xbf16> to vector<16x16xbf16>
    %cst_34 = arith.constant dense<0.000000e+00> : vector<64x16xf32>
    %34 = tpu.matmul %31, %33, %cst_34 {dimension_numbers = #tpu.dot_dimension_numbers<[1], [0], [0], [1], [0, 0, 1, 1], [], []>} : vector<64x16xbf16>, vector<16x16xbf16>, vector<64x16xf32> -> vector<64x16xf32>
    %35 = arith.addf %28, %34 : vector<64x16xf32>
    %c0_35 = arith.constant 0 : index
    %c1_36 = arith.constant 1 : index
    %c2_37 = arith.constant 2 : index
    %c0_38 = arith.constant 0 : index
    %36 = vector.load %arg1[%c0_35, %c1_36, %c2_37, %c0_38] : memref<1x10x10x16xbf16, #tpu.memory_space<vmem>>, vector<1x8x8x16xbf16>
    %37 = vector.shape_cast %36 : vector<1x8x8x16xbf16> to vector<8x8x16xbf16>
    %38 = vector.shape_cast %37 : vector<8x8x16xbf16> to vector<64x16xbf16>
    %c5 = arith.constant 5 : index
    %c0_39 = arith.constant 0 : index
    %c0_40 = arith.constant 0 : index
    %39 = vector.load %arg2[%c5, %c0_39, %c0_40] : memref<9x16x16xbf16, #tpu.memory_space<vmem>>, vector<1x16x16xbf16>
    %40 = vector.shape_cast %39 : vector<1x16x16xbf16> to vector<16x16xbf16>
    %cst_41 = arith.constant dense<0.000000e+00> : vector<64x16xf32>
    %41 = tpu.matmul %38, %40, %cst_41 {dimension_numbers = #tpu.dot_dimension_numbers<[1], [0], [0], [1], [0, 0, 1, 1], [], []>} : vector<64x16xbf16>, vector<16x16xbf16>, vector<64x16xf32> -> vector<64x16xf32>
    %42 = arith.addf %35, %41 : vector<64x16xf32>
    %c0_42 = arith.constant 0 : index
    %c2_43 = arith.constant 2 : index
    %c0_44 = arith.constant 0 : index
    %c0_45 = arith.constant 0 : index
    %43 = vector.load %arg1[%c0_42, %c2_43, %c0_44, %c0_45] : memref<1x10x10x16xbf16, #tpu.memory_space<vmem>>, vector<1x8x8x16xbf16>
    %44 = vector.shape_cast %43 : vector<1x8x8x16xbf16> to vector<8x8x16xbf16>
    %45 = vector.shape_cast %44 : vector<8x8x16xbf16> to vector<64x16xbf16>
    %c6 = arith.constant 6 : index
    %c0_46 = arith.constant 0 : index
    %c0_47 = arith.constant 0 : index
    %46 = vector.load %arg2[%c6, %c0_46, %c0_47] : memref<9x16x16xbf16, #tpu.memory_space<vmem>>, vector<1x16x16xbf16>
    %47 = vector.shape_cast %46 : vector<1x16x16xbf16> to vector<16x16xbf16>
    %cst_48 = arith.constant dense<0.000000e+00> : vector<64x16xf32>
    %48 = tpu.matmul %45, %47, %cst_48 {dimension_numbers = #tpu.dot_dimension_numbers<[1], [0], [0], [1], [0, 0, 1, 1], [], []>} : vector<64x16xbf16>, vector<16x16xbf16>, vector<64x16xf32> -> vector<64x16xf32>
    %49 = arith.addf %42, %48 : vector<64x16xf32>
    %c0_49 = arith.constant 0 : index
    %c2_50 = arith.constant 2 : index
    %c1_51 = arith.constant 1 : index
    %c0_52 = arith.constant 0 : index
    %50 = vector.load %arg1[%c0_49, %c2_50, %c1_51, %c0_52] : memref<1x10x10x16xbf16, #tpu.memory_space<vmem>>, vector<1x8x8x16xbf16>
    %51 = vector.shape_cast %50 : vector<1x8x8x16xbf16> to vector<8x8x16xbf16>
    %52 = vector.shape_cast %51 : vector<8x8x16xbf16> to vector<64x16xbf16>
    %c7 = arith.constant 7 : index
    %c0_53 = arith.constant 0 : index
    %c0_54 = arith.constant 0 : index
    %53 = vector.load %arg2[%c7, %c0_53, %c0_54] : memref<9x16x16xbf16, #tpu.memory_space<vmem>>, vector<1x16x16xbf16>
    %54 = vector.shape_cast %53 : vector<1x16x16xbf16> to vector<16x16xbf16>
    %cst_55 = arith.constant dense<0.000000e+00> : vector<64x16xf32>
    %55 = tpu.matmul %52, %54, %cst_55 {dimension_numbers = #tpu.dot_dimension_numbers<[1], [0], [0], [1], [0, 0, 1, 1], [], []>} : vector<64x16xbf16>, vector<16x16xbf16>, vector<64x16xf32> -> vector<64x16xf32>
    %56 = arith.addf %49, %55 : vector<64x16xf32>
    %c0_56 = arith.constant 0 : index
    %c2_57 = arith.constant 2 : index
    %c2_58 = arith.constant 2 : index
    %c0_59 = arith.constant 0 : index
    %57 = vector.load %arg1[%c0_56, %c2_57, %c2_58, %c0_59] : memref<1x10x10x16xbf16, #tpu.memory_space<vmem>>, vector<1x8x8x16xbf16>
    %58 = vector.shape_cast %57 : vector<1x8x8x16xbf16> to vector<8x8x16xbf16>
    %59 = vector.shape_cast %58 : vector<8x8x16xbf16> to vector<64x16xbf16>
    %c8 = arith.constant 8 : index
    %c0_60 = arith.constant 0 : index
    %c0_61 = arith.constant 0 : index
    %60 = vector.load %arg2[%c8, %c0_60, %c0_61] : memref<9x16x16xbf16, #tpu.memory_space<vmem>>, vector<1x16x16xbf16>
    %61 = vector.shape_cast %60 : vector<1x16x16xbf16> to vector<16x16xbf16>
    %cst_62 = arith.constant dense<0.000000e+00> : vector<64x16xf32>
    %62 = tpu.matmul %59, %61, %cst_62 {dimension_numbers = #tpu.dot_dimension_numbers<[1], [0], [0], [1], [0, 0, 1, 1], [], []>} : vector<64x16xbf16>, vector<16x16xbf16>, vector<64x16xf32> -> vector<64x16xf32>
    %63 = arith.addf %56, %62 : vector<64x16xf32>
    %c0_63 = arith.constant 0 : index
    %c0_64 = arith.constant 0 : index
    %64 = vector.load %arg3[%c0_63, %c0_64] : memref<1x16xf32, #tpu.memory_space<vmem>>, vector<1x16xf32>
    %65 = vector.broadcast %64 : vector<1x16xf32> to vector<64x16xf32>
    %66 = arith.addf %63, %65 : vector<64x16xf32>
    %cst_65 = arith.constant 0.000000e+00 : f32
    %67 = vector.broadcast %cst_65 : f32 to vector<64x16xf32>
    %68 = arith.maximumf %66, %67 : vector<64x16xf32>
    %69 = arith.truncf %68 : vector<64x16xf32> to vector<64x16xbf16>
    %c0_66 = arith.constant 0 : index
    %c0_67 = arith.constant 0 : index
    %70 = vector.load %arg4[%c0_66, %c0_67] : memref<16x18xbf16, #tpu.memory_space<vmem>>, vector<16x18xbf16>
    %cst_68 = arith.constant dense<0.000000e+00> : vector<64x18xf32>
    %71 = tpu.matmul %69, %70, %cst_68 {dimension_numbers = #tpu.dot_dimension_numbers<[1], [0], [0], [1], [0, 0, 1, 1], [], []>} : vector<64x16xbf16>, vector<16x18xbf16>, vector<64x18xf32> -> vector<64x18xf32>
    %c0_69 = arith.constant 0 : index
    %c0_70 = arith.constant 0 : index
    %72 = vector.load %arg5[%c0_69, %c0_70] : memref<1x18xf32, #tpu.memory_space<vmem>>, vector<1x18xf32>
    %73 = vector.broadcast %72 : vector<1x18xf32> to vector<64x18xf32>
    %74 = arith.addf %71, %73 : vector<64x18xf32>
    %c0_71 = arith.constant 0 : index
    %c0_72 = arith.constant 0 : index
    %c0_73 = arith.constant 0 : index
    %75 = vector.load %arg6[%c0_71, %c0_72, %c0_73] : memref<1x64x18xf32, #tpu.memory_space<vmem>>, vector<1x64x18xf32>
    %76 = vector.shape_cast %75 : vector<1x64x18xf32> to vector<64x18xf32>
    %77 = vector.shape_cast %74 : vector<64x18xf32> to vector<1x64x18xf32>
    tpu.vector_store %arg6[%c0_71, %c0_72, %c0_73], %77 {strides = array<i32>} : memref<1x64x18xf32, #tpu.memory_space<vmem>>, vector<1x64x18xf32>,
    return
  }
  func.func @transform_0(%arg0: i32) -> (i32, i32, i32, i32) {
    %c0_i32 = arith.constant 0 : i32
    %c0_i32_0 = arith.constant 0 : i32
    %c0_i32_1 = arith.constant 0 : i32
    %c0_i32_2 = arith.constant 0 : i32
    return %arg0, %c0_i32, %c0_i32_0, %c0_i32_1 : i32, i32, i32, i32
  }
  func.func @transform_1(%arg0: i32) -> (i32, i32, i32) {
    %c0_i32 = arith.constant 0 : i32
    %c0_i32_0 = arith.constant 0 : i32
    %c0_i32_1 = arith.constant 0 : i32
    %c0_i32_2 = arith.constant 0 : i32
    return %c0_i32, %c0_i32_0, %c0_i32_1 : i32, i32, i32
  }
  func.func @transform_2(%arg0: i32) -> (i32, i32) {
    %c0_i32 = arith.constant 0 : i32
    %c0_i32_0 = arith.constant 0 : i32
    %c0_i32_1 = arith.constant 0 : i32
    return %c0_i32, %c0_i32_0 : i32, i32
  }
  func.func @transform_3(%arg0: i32) -> (i32, i32) {
    %c0_i32 = arith.constant 0 : i32
    %c0_i32_0 = arith.constant 0 : i32
    %c0_i32_1 = arith.constant 0 : i32
    return %c0_i32, %c0_i32_0 : i32, i32
  }
  func.func @transform_4(%arg0: i32) -> (i32, i32) {
    %c0_i32 = arith.constant 0 : i32
    %c0_i32_0 = arith.constant 0 : i32
    %c0_i32_1 = arith.constant 0 : i32
    return %c0_i32, %c0_i32_0 : i32, i32
  }
  func.func @transform_5(%arg0: i32) -> (i32, i32, i32) {
    %c0_i32 = arith.constant 0 : i32
    %c0_i32_0 = arith.constant 0 : i32
    %c0_i32_1 = arith.constant 0 : i32
    return %arg0, %c0_i32, %c0_i32_0 : i32, i32, i32
  }
}

module attributes {stable_mosaic.version = 11 : i64} {
  func.func @_psroi_kernel(%arg0: i32, %arg1: i32, %arg2: memref<1x16x576xbf16, #tpu.memory_space<vmem>>, %arg3: memref<1x576x15xbf16, #tpu.memory_space<vmem>>, %arg4: memref<1x15xf32, #tpu.memory_space<vmem>>, %arg5: memref<1x15xf32, #tpu.memory_space<vmem>>, %arg6: memref<1x16x15xf32, #tpu.memory_space<vmem>>, %arg7: memref<16x15xf32, #tpu.memory_space<vmem>>) attributes {dimension_semantics = [#tpu.dimension_semantics<parallel>, #tpu.dimension_semantics<arbitrary>], iteration_bounds = array<i64: 2, 1>, scalar_prefetch = 0 : i64, scratch_operands = 1 : i64, tpu.core_type = #tpu.core_type<tc>, window_params = [{transform_indices = @transform_0, window_bounds = array<i64: 1, 16, 576>}, {transform_indices = @transform_1, window_bounds = array<i64: 1, 576, 15>}, {pipeline_mode = #tpu.pipeline_mode<synchronous>, transform_indices = @transform_2, window_bounds = array<i64: 1, 15>}, {pipeline_mode = #tpu.pipeline_mode<synchronous>, transform_indices = @transform_3, window_bounds = array<i64: 1, 15>}, {transform_indices = @transform_4, window_bounds = array<i64: 1, 16, 15>}]} {
    %c0_i32 = arith.constant 0 : i32
    %0 = arith.cmpi eq, %arg1, %c0_i32 : i32
    %1 = arith.extui %0 : i1 to i32
    %c0_i32_0 = arith.constant 0 : i32
    %2 = arith.cmpi ne, %1, %c0_i32_0 : i32
    scf.if %2 {
      %cst_12 = arith.constant 0.000000e+00 : f32
      %14 = vector.broadcast %cst_12 : f32 to vector<16x15xf32>
      %c0_13 = arith.constant 0 : index
      %c0_14 = arith.constant 0 : index
      %15 = vector.load %arg7[%c0_13, %c0_14] : memref<16x15xf32, #tpu.memory_space<vmem>>, vector<16x15xf32>
      tpu.vector_store %arg7[%c0_13, %c0_14], %14 {strides = array<i32>} : memref<16x15xf32, #tpu.memory_space<vmem>>, vector<16x15xf32>,
    } else {
    }
    %c0 = arith.constant 0 : index
    %c0_1 = arith.constant 0 : index
    %3 = vector.load %arg7[%c0, %c0_1] : memref<16x15xf32, #tpu.memory_space<vmem>>, vector<16x15xf32>
    %c0_2 = arith.constant 0 : index
    %c0_3 = arith.constant 0 : index
    %c0_4 = arith.constant 0 : index
    %4 = vector.load %arg2[%c0_2, %c0_3, %c0_4] : memref<1x16x576xbf16, #tpu.memory_space<vmem>>, vector<1x16x576xbf16>
    %5 = vector.shape_cast %4 : vector<1x16x576xbf16> to vector<16x576xbf16>
    %c0_5 = arith.constant 0 : index
    %c0_6 = arith.constant 0 : index
    %c0_7 = arith.constant 0 : index
    %6 = vector.load %arg3[%c0_5, %c0_6, %c0_7] : memref<1x576x15xbf16, #tpu.memory_space<vmem>>, vector<1x576x15xbf16>
    %7 = vector.shape_cast %6 : vector<1x576x15xbf16> to vector<576x15xbf16>
    %cst = arith.constant dense<0.000000e+00> : vector<16x15xf32>
    %8 = tpu.matmul %5, %7, %cst {dimension_numbers = #tpu.dot_dimension_numbers<[1], [0], [0], [1], [0, 0, 1, 1], [], []>} : vector<16x576xbf16>, vector<576x15xbf16>, vector<16x15xf32> -> vector<16x15xf32>
    %9 = arith.addf %3, %8 : vector<16x15xf32>
    %c0_8 = arith.constant 0 : index
    %c0_9 = arith.constant 0 : index
    %10 = vector.load %arg7[%c0_8, %c0_9] : memref<16x15xf32, #tpu.memory_space<vmem>>, vector<16x15xf32>
    tpu.vector_store %arg7[%c0_8, %c0_9], %9 {strides = array<i32>} : memref<16x15xf32, #tpu.memory_space<vmem>>, vector<16x15xf32>,
    %c0_i32_10 = arith.constant 0 : i32
    %11 = arith.cmpi eq, %arg1, %c0_i32_10 : i32
    %12 = arith.extui %11 : i1 to i32
    %c0_i32_11 = arith.constant 0 : i32
    %13 = arith.cmpi ne, %12, %c0_i32_11 : i32
    scf.if %13 {
      %c0_12 = arith.constant 0 : index
      %c0_13 = arith.constant 0 : index
      %14 = vector.load %arg7[%c0_12, %c0_13] : memref<16x15xf32, #tpu.memory_space<vmem>>, vector<16x15xf32>
      %c0_14 = arith.constant 0 : index
      %c0_15 = arith.constant 0 : index
      %15 = vector.load %arg4[%c0_14, %c0_15] : memref<1x15xf32, #tpu.memory_space<vmem>>, vector<1x15xf32>
      %16 = vector.broadcast %15 : vector<1x15xf32> to vector<16x15xf32>
      %17 = arith.mulf %14, %16 : vector<16x15xf32>
      %c0_16 = arith.constant 0 : index
      %c0_17 = arith.constant 0 : index
      %18 = vector.load %arg5[%c0_16, %c0_17] : memref<1x15xf32, #tpu.memory_space<vmem>>, vector<1x15xf32>
      %19 = vector.broadcast %18 : vector<1x15xf32> to vector<16x15xf32>
      %20 = arith.addf %17, %19 : vector<16x15xf32>
      %21 = tpu.iota {dimensions = array<i32: 1>} : vector<16x15xi32>
      %c3_i32 = arith.constant 3 : i32
      %22 = vector.broadcast %c3_i32 : i32 to vector<16x15xi32>
      %23 = arith.cmpi slt, %21, %22 : vector<16x15xi32>
      %cst_18 = arith.constant -1.000000e+30 : f32
      %24 = vector.broadcast %cst_18 : f32 to vector<16x15xf32>
      %25 = arith.select %23, %20, %24 : vector<16x15xi1>, vector<16x15xf32>
      %cst_19 = arith.constant dense<0xFF800000> : vector<16xf32>
      %26 = vector.multi_reduction <maximumf>, %25, %cst_19 [1] : vector<16x15xf32> to vector<16xf32>
      %27 = vector.shape_cast %26 : vector<16xf32> to vector<16x1xf32>
      %28 = vector.broadcast %27 : vector<16x1xf32> to vector<16x15xf32>
      %29 = arith.subf %25, %28 : vector<16x15xf32>
      %30 = math.exp %29 : vector<16x15xf32>
      %cst_20 = arith.constant dense<0.000000e+00> : vector<16xf32>
      %31 = vector.multi_reduction <add>, %30, %cst_20 [1] : vector<16x15xf32> to vector<16xf32>
      %32 = vector.shape_cast %31 : vector<16xf32> to vector<16x1xf32>
      %33 = vector.broadcast %32 : vector<16x1xf32> to vector<16x15xf32>
      %34 = arith.divf %30, %33 : vector<16x15xf32>
      %35 = arith.select %23, %34, %20 : vector<16x15xi1>, vector<16x15xf32>
      %c0_21 = arith.constant 0 : index
      %c0_22 = arith.constant 0 : index
      %c0_23 = arith.constant 0 : index
      %36 = vector.load %arg6[%c0_21, %c0_22, %c0_23] : memref<1x16x15xf32, #tpu.memory_space<vmem>>, vector<1x16x15xf32>
      %37 = vector.shape_cast %36 : vector<1x16x15xf32> to vector<16x15xf32>
      %38 = vector.shape_cast %35 : vector<16x15xf32> to vector<1x16x15xf32>
      tpu.vector_store %arg6[%c0_21, %c0_22, %c0_23], %38 {strides = array<i32>} : memref<1x16x15xf32, #tpu.memory_space<vmem>>, vector<1x16x15xf32>,
    } else {
    }
    return
  }
  func.func @transform_0(%arg0: i32, %arg1: i32) -> (i32, i32, i32) {
    %c0_i32 = arith.constant 0 : i32
    %c0_i32_0 = arith.constant 0 : i32
    return %arg0, %c0_i32, %arg1 : i32, i32, i32
  }
  func.func @transform_1(%arg0: i32, %arg1: i32) -> (i32, i32, i32) {
    %c0_i32 = arith.constant 0 : i32
    %c0_i32_0 = arith.constant 0 : i32
    return %arg0, %arg1, %c0_i32 : i32, i32, i32
  }
  func.func @transform_2(%arg0: i32, %arg1: i32) -> (i32, i32) {
    %c0_i32 = arith.constant 0 : i32
    %c0_i32_0 = arith.constant 0 : i32
    %c0_i32_1 = arith.constant 0 : i32
    return %c0_i32, %c0_i32_0 : i32, i32
  }
  func.func @transform_3(%arg0: i32, %arg1: i32) -> (i32, i32) {
    %c0_i32 = arith.constant 0 : i32
    %c0_i32_0 = arith.constant 0 : i32
    %c0_i32_1 = arith.constant 0 : i32
    return %c0_i32, %c0_i32_0 : i32, i32
  }
  func.func @transform_4(%arg0: i32, %arg1: i32) -> (i32, i32, i32) {
    %c0_i32 = arith.constant 0 : i32
    %c0_i32_0 = arith.constant 0 : i32
    %c0_i32_1 = arith.constant 0 : i32
    return %arg0, %c0_i32, %c0_i32_0 : i32, i32, i32
  }
}

</mosaic_0001>

<llo_original>
// kernel: rfcn_forward.3
$region0: #{rfcn_forward.3}
  #allocation0 [shape = 'u32[]', space=smem, size = 0x4, offset = 0x4, fixed_abs, tag = 'smem constant byte address 0x4 - core index']
  #allocation1 [shape = 'u32[72,128]{1,0:T(1,128)}', space=vmem, size = 0x9000, scoped, tag = 'internal scratch']
  %s0 = inlined_call_operand.vmem [shape: bf16[128,27], index: 0, kind: input, shape index: {}]
  %s1 = inlined_call_operand.vmem [shape: bf16[27,16], index: 1, kind: input, shape index: {}]
  %s2 = inlined_call_operand.vmem [shape: f32[1,16], index: 2, kind: input, shape index: {}]
  %s3 = inlined_call_operand.vmem [shape: bf16[16,135], index: 3, kind: input, shape index: {}]
  %s4 = inlined_call_operand.vmem [shape: f32[1,135], index: 4, kind: input, shape index: {}]
  %s5 = inlined_call_operand.vmem [shape: bf16[128,16], index: 5, kind: output, shape index: {0}]
  %s6 = inlined_call_operand.vmem [shape: bf16[128,135], index: 6, kind: output, shape index: {1}]
  %7 = xla_tuple %s5, %s6
  %s8 = sld [smem:[#allocation0]]
  $region61: #{rfcn_forward.3} parent=0
    _
  %s10 = ssub.s32 1, %s8
  %s11 = scalar_select 0, %s10, %s8
  loop: start=0, step=1, limit=4
  $region2: #{rfcn_forward.3} parent=0 // loop_pre_header
    _
  $region3: #{rfcn_forward.3} parent=0 // loop_header
    %s13 = sphi 0, %s17
    %p14 = scmp.ge.s32.totalorder %s13, 4
    %s23 = sphi 0, %s25
    %s26 = sphi 0, %s23
    %s27 = sphi 0, %s26
    %s43 = sphi 0, %s27
    %s47 = sphi 0, %s47
    %s49 = sphi 0, %s47
    %s50 = sphi 0, %s49
    %s64 = sphi 0, %s50
    %s68 = sphi 0, %s68
    %s70 = sphi 0, %s68
    %s71 = sphi 0, %s70
    %s85 = sphi 0, %s71
    %s89 = sphi 0, %s89
    %s91 = sphi 0, %s89
    %s92 = sphi 0, %s91
    %s106 = sphi 0, %s92
    %s110 = sphi 0, %s110
    %s112 = sphi 0, %s110
    %s113 = sphi 0, %s112
    %s127 = sphi 0, %s113
    %s133 = sphi 0, %s135
    %s136 = sphi 0, %s133
    %s137 = sphi 0, %s136
    %s153 = sphi 0, %s137
    %s159 = sphi 0, %s161
    %s162 = sphi 0, %s159
    %s163 = sphi 0, %s162
    %s179 = sphi 0, %s163
  $region4: #{rfcn_forward.3} parent=0 // loop_header_branch
    %16 = sbr.rel (%p14) target = $region8
  $region5: #{rfcn_forward.3} parent=0 // loop_body
    %s18 = ssub.s32 %s13, 1
    %s19 = ssub.s32 %s13, 2
    %s20 = sadd.s32 %s13, 1
    %s21 = ssub.s32 %s13, %s20
    %p22 = scmp.eq.s32.totalorder %s21, 0
    %s24 = sadd.s32 %s23, 1
    %s25 = scalar_select %p22, %s23, %s24
    %p28 = pneg %p22
    %p29 = scmp.eq.s32.totalorder %s13, 1
    %p30 = por %p28, %p29
    %p31 = scmp.ne.s32.totalorder %s23, %s26
    %p32 = scmp.eq.s32.totalorder %s13, 0
    %p33 = por %p31, %p32
    %p34 = scmp.ne.s32.totalorder %s23, %s26
    %p35 = scmp.eq.s32.totalorder %s18, 1
    %p36 = por %p34, %p35
    %p37 = scmp.ne.s32.totalorder %s26, %s27
    %p38 = scmp.eq.s32.totalorder %s18, 0
    %p39 = por %p37, %p38
    %p40 = scmp.ne.s32.totalorder %s26, %s27
    %p41 = scmp.eq.s32.totalorder %s19, 1
    %p42 = por %p40, %p41
    %p44 = scmp.ne.s32.totalorder %s27, %s43
    %p45 = scmp.eq.s32.totalorder %s19, 0
    %p46 = por %p44, %p45
    %s48 = sadd.s32 %s47, 1
    %p51 = scmp.eq.s32.totalorder %s13, 1
    %p52 = scmp.ne.s32.totalorder %s47, %s49
    %p53 = scmp.eq.s32.totalorder %s13, 0
    %p54 = por %p52, %p53
    %p55 = scmp.ne.s32.totalorder %s47, %s49
    %p56 = scmp.eq.s32.totalorder %s18, 1
    %p57 = por %p55, %p56
    %p58 = scmp.ne.s32.totalorder %s49, %s50
    %p59 = scmp.eq.s32.totalorder %s18, 0
    %p60 = por %p58, %p59
    %p61 = scmp.ne.s32.totalorder %s49, %s50
    %p62 = scmp.eq.s32.totalorder %s19, 1
    %p63 = por %p61, %p62
    %p65 = scmp.ne.s32.totalorder %s50, %s64
    %p66 = scmp.eq.s32.totalorder %s19, 0
    %p67 = por %p65, %p66
    %s69 = sadd.s32 %s68, 1
    %p72 = scmp.eq.s32.totalorder %s13, 1
    %p73 = scmp.ne.s32.totalorder %s68, %s70
    %p74 = scmp.eq.s32.totalorder %s13, 0
    %p75 = por %p73, %p74
    %p76 = scmp.ne.s32.totalorder %s68, %s70
    %p77 = scmp.eq.s32.totalorder %s18, 1
    %p78 = por %p76, %p77
    %p79 = scmp.ne.s32.totalorder %s70, %s71
    %p80 = scmp.eq.s32.totalorder %s18, 0
    %p81 = por %p79, %p80
    %p82 = scmp.ne.s32.totalorder %s70, %s71
    %p83 = scmp.eq.s32.totalorder %s19, 1
    %p84 = por %p82, %p83
    %p86 = scmp.ne.s32.totalorder %s71, %s85
    %p87 = scmp.eq.s32.totalorder %s19, 0
    %p88 = por %p86, %p87
    %s90 = sadd.s32 %s89, 1
    %p93 = scmp.eq.s32.totalorder %s13, 1
    %p94 = scmp.ne.s32.totalorder %s89, %s91
    %p95 = scmp.eq.s32.totalorder %s13, 0
    %p96 = por %p94, %p95
    %p97 = scmp.ne.s32.totalorder %s89, %s91
    %p98 = scmp.eq.s32.totalorder %s18, 1
    %p99 = por %p97, %p98
    %p100 = scmp.ne.s32.totalorder %s91, %s92
    %p101 = scmp.eq.s32.totalorder %s18, 0
    %p102 = por %p100, %p101
    %p103 = scmp.ne.s32.totalorder %s91, %s92
    %p104 = scmp.eq.s32.totalorder %s19, 1
    %p105 = por %p103, %p104
    %p107 = scmp.ne.s32.totalorder %s92, %s106
    %p108 = scmp.eq.s32.totalorder %s19, 0
    %p109 = por %p107, %p108
    %s111 = sadd.s32 %s110, 1
    %p114 = scmp.eq.s32.totalorder %s13, 1
    %p115 = scmp.ne.s32.totalorder %s110, %s112
    %p116 = scmp.eq.s32.totalorder %s13, 0
    %p117 = por %p115, %p116
    %p118 = scmp.ne.s32.totalorder %s110, %s112
    %p119 = scmp.eq.s32.totalorder %s18, 1
    %p120 = por %p118, %p119
    %p121 = scmp.ne.s32.totalorder %s112, %s113
    %p122 = scmp.eq.s32.totalorder %s18, 0
    %p123 = por %p121, %p122
    %p124 = scmp.ne.s32.totalorder %s112, %s113
    %p125 = scmp.eq.s32.totalorder %s19, 1
    %p126 = por %p124, %p125
    %p128 = scmp.ne.s32.totalorder %s113, %s127
    %p129 = scmp.eq.s32.totalorder %s19, 0
    %p130 = por %p128, %p129
    %s131 = ssub.s32 %s13, %s20
    %p132 = scmp.eq.s32.totalorder %s131, 0
    %s134 = sadd.s32 %s133, 1
    %s135 = scalar_select %p132, %s133, %s134
    %p138 = pneg %p132
    %p139 = scmp.eq.s32.totalorder %s13, 1
    %p140 = por %p138, %p139
    %p141 = scmp.ne.s32.totalorder %s133, %s136
    %p142 = scmp.eq.s32.totalorder %s13, 0
    %p143 = por %p141, %p142
    %p144 = scmp.ne.s32.totalorder %s133, %s136
    %p145 = scmp.eq.s32.totalorder %s18, 1
    %p146 = por %p144, %p145
    %p147 = scmp.ne.s32.totalorder %s136, %s137
    %p148 = scmp.eq.s32.totalorder %s18, 0
    %p149 = por %p147, %p148
    %p150 = scmp.ne.s32.totalorder %s136, %s137
    %p151 = scmp.eq.s32.totalorder %s19, 1
    %p152 = por %p150, %p151
    %p154 = scmp.ne.s32.totalorder %s137, %s153
    %p155 = scmp.eq.s32.totalorder %s19, 0
    %p156 = por %p154, %p155
    %s157 = ssub.s32 %s13, %s20
    %p158 = scmp.eq.s32.totalorder %s157, 0
    %s160 = sadd.s32 %s159, 1
    %s161 = scalar_select %p158, %s159, %s160
    %p164 = pneg %p158
    %p165 = scmp.eq.s32.totalorder %s13, 1
    %p166 = por %p164, %p165
    %p167 = scmp.ne.s32.totalorder %s159, %s162
    %p168 = scmp.eq.s32.totalorder %s13, 0
    %p169 = por %p167, %p168
    %p170 = scmp.ne.s32.totalorder %s159, %s162
    %p171 = scmp.eq.s32.totalorder %s18, 1
    %p172 = por %p170, %p171
    %p173 = scmp.ne.s32.totalorder %s162, %s163
    %p174 = scmp.eq.s32.totalorder %s18, 0
    %p175 = por %p173, %p174
    %p176 = scmp.ne.s32.totalorder %s162, %s163
    %p177 = scmp.eq.s32.totalorder %s19, 1
    %p178 = por %p176, %p177
    %p180 = scmp.ne.s32.totalorder %s163, %s179
    %p181 = scmp.eq.s32.totalorder %s19, 0
    %p182 = por %p180, %p181
    %p183 = scmp.le.s32.totalorder 1, %s13
    %p184 = scmp.lt.s32.totalorder %s13, 3
    %p185 = pnand %p183, %p184
    %p186 = pneg %p185
    // Predicated region
    $region9: #{rfcn_forward.3} parent=5 // pred_check
      _
    $region10: #{rfcn_forward.3} parent=5 // pred_check_branch
      %188 = sbr.rel (%p185) target = $region12
    $region11: #{rfcn_forward.3} parent=5 // pred_region
      %s189 = ssub.s32 %s13, 1
      // Predicated region
      $region13: #{rfcn_forward.3} parent=11 // pred_check
        %p190 = pneg %p60
      $region14: #{rfcn_forward.3} parent=11 // pred_check_branch
        %192 = sbr.rel (%p190) target = $region16
      $region15: #{rfcn_forward.3} parent=11 // pred_region
        _
      $region16: #{rfcn_forward.3} parent=11 // pred_fallthru
        _
      // Predicated region
      $region17: #{rfcn_forward.3} parent=11 // pred_check
        %p193 = pneg %p81
      $region18: #{rfcn_forward.3} parent=11 // pred_check_branch
        %195 = sbr.rel (%p193) target = $region20
      $region19: #{rfcn_forward.3} parent=11 // pred_region
        _
      $region20: #{rfcn_forward.3} parent=11 // pred_fallthru
        _
      // Predicated region
      $region21: #{rfcn_forward.3} parent=11 // pred_check
        %p196 = pneg %p102
      $region22: #{rfcn_forward.3} parent=11 // pred_check_branch
        %198 = sbr.rel (%p196) target = $region24
      $region23: #{rfcn_forward.3} parent=11 // pred_region
        _
      $region24: #{rfcn_forward.3} parent=11 // pred_fallthru
        _
      // Predicated region
      $region25: #{rfcn_forward.3} parent=11 // pred_check
        %p199 = pneg %p123
      $region26: #{rfcn_forward.3} parent=11 // pred_check_branch
        %201 = sbr.rel (%p199) target = $region28
      $region27: #{rfcn_forward.3} parent=11 // pred_region
        _
      $region28: #{rfcn_forward.3} parent=11 // pred_fallthru
        _
    $region12: #{rfcn_forward.3} parent=5 // pred_fallthru
      _
    %p202 = scmp.lt.s32.totalorder %s13, 2
    // Predicated region
    $region29: #{rfcn_forward.3} parent=5 // pred_check
      %p203 = pneg %p202
    $region30: #{rfcn_forward.3} parent=5 // pred_check_branch
      %205 = sbr.rel (%p203) target = $region32
    $region31: #{rfcn_forward.3} parent=5 // pred_region
      // Predicated region
      $region33: #{rfcn_forward.3} parent=31 // pred_check
        %p206 = pneg %p33
      $region34: #{rfcn_forward.3} parent=31 // pred_check_branch
        %208 = sbr.rel (%p206) target = $region36
      $region35: #{rfcn_forward.3} parent=31 // pred_region
        %s209 = smul.u32 8, %s13
        %p210 = scmp.lt.s32.totalorder %s209, 15
        %s211 = scalar_select %p210, %s209, 15
        %s212 = smul.addr %s211, 4
        %s213 = scalar_lea.vmem %s0, %s212
        %s214 = smul.u32 8, %s13
      $region36: #{rfcn_forward.3} parent=31 // pred_fallthru
        _
    $region32: #{rfcn_forward.3} parent=5 // pred_fallthru
      _
    %p215 = scmp.le.s32.totalorder 1, %s13
    %p216 = scmp.lt.s32.totalorder %s13, 3
    %p217 = pnand %p215, %p216
    %p218 = pneg %p217
    // Predicated region
    $region37: #{rfcn_forward.3} parent=5 // pred_check
      _
    $region38: #{rfcn_forward.3} parent=5 // pred_check_branch
      %220 = sbr.rel (%p217) target = $region40
    $region39: #{rfcn_forward.3} parent=5 // pred_region
      %s221 = ssub.s32 %s13, 1
      %s222 = smul.u32 8, %s18
      %p223 = scmp.lt.s32.totalorder %s222, 15
      %s224 = scalar_select %p223, %s222, 15
      %s225 = smul.addr %s224, 4
      %s226 = scalar_lea.vmem %s0, %s225
      %p227 = pneg %p39
      %p228 = pneg %p36
      %p229 = pneg %p60
      %p230 = pneg %p57
      %p231 = pneg %p81
      %p232 = pneg %p78
      %p233 = pneg %p102
      %p234 = pneg %p99
      %p235 = pneg %p123
      %p236 = pneg %p120
      %p237 = pneg %p149
      %p238 = pneg %p146
      %s239 = smul.u32 8, %s18
      %p240 = scmp.lt.s32.totalorder %s239, 15
      %s241 = scalar_select %p240, %s239, 15
      %s242 = smul.addr %s241, 4
      %s243 = scalar_lea.vmem %s5, %s242
      %p244 = pneg %p175
      %p245 = pneg %p172
      %s246 = smul.u32 8, %s18
      %p247 = scmp.lt.s32.totalorder %s246, 15
      %s248 = scalar_select %p247, %s246, 15
      %s249 = smul.addr %s248, 2
      %s250 = smul.addr %s249, 4
      %s251 = scalar_lea.vmem %s6, %s250
      %s252 = smul.u32 8, %s18
      %p253 = scmp.lt.s32.totalorder %s252, 15
      %s254 = scalar_select %p253, %s252, 15
      %s255 = smul.addr %s254, 4
      %s256 = scalar_lea.vmem %s0, %s255
      %s257 = smul.u32 8, %s18
      %s258 = smul.u32 8, %s18
      %p259 = scmp.lt.s32.totalorder %s258, 15
      %s260 = scalar_select %p259, %s258, 15
      %s261 = smul.addr %s260, 4
      %s262 = scalar_lea.vmem %s5, %s261
      %s263 = smul.u32 8, %s18
      %s264 = smul.u32 8, %s18
      %p265 = scmp.lt.s32.totalorder %s264, 15
      %s266 = scalar_select %p265, %s264, 15
      %s267 = smul.addr %s266, 2
      %s268 = smul.addr %s267, 4
      %s269 = scalar_lea.vmem %s6, %s268
      %s270 = smul.u32 8, %s18
      %v272 = vld [vmem:[%s256] sm:$0xf]
      %v273 = vld [vmem:[%s256 + $0x4] sm:$0xf]
      %v274 = vld [vmem:[%s256 + $0x8] sm:$0xf]
      %v275 = vld [vmem:[%s256 + $0xc] sm:$0xf]
      %v276 = vld [vmem:[%s256 + $0x10] sm:$0xf]
      %v277 = vld [vmem:[%s256 + $0x14] sm:$0xf]
      %v278 = vld [vmem:[%s256 + $0x18] sm:$0xf]
      %v279 = vld [vmem:[%s256 + $0x1c] sm:$0xf]
      %v280 = vld [vmem:[%s1] sm:$0xf]
      %v281 = vld [vmem:[%s1 + $0x4] sm:$0xf]
      %v282 = vld [vmem:[%s1 + $0x8] sm:$0xf]
      %v283 = vld [vmem:[%s1 + $0xc] sm:$0x3]
      %v284 = vld [vmem:[%s2] sm:$0x1]
      %v286 = vperm.slane %v284, 0
      %v296 = vunpack.c.l.b16 %v272
      %v297 = vunpack.c.l.b16 %v273
      %v298 = vunpack.c.l.b16 %v274
      %v299 = vunpack.c.l.b16 %v275
      %v300 = vunpack.c.l.b16 %v276
      %v301 = vunpack.c.l.b16 %v277
      %v302 = vunpack.c.l.b16 %v278
      %v303 = vunpack.c.l.b16 %v279
      %v304 = vpack.c.b16 %v297, %v296
      %v305 = vpack.c.b16 %v299, %v298
      %v306 = vpack.c.b16 %v301, %v300
      %v307 = vpack.c.b16 %v303, %v302
      %v312 = vunpack.c.l.b16 %v280
      %v313 = vunpack.c.l.b16 %v281
      %v314 = vunpack.c.l.b16 %v282
      %v315 = vunpack.c.l.b16 %v283
      %v316 = vpack.c.b16 %v313, %v312
      %v317 = vpack.c.b16 %v315, %v314
      %vm319 = vcmask 220160
      %v321 = vsel %vm319, %v304, 0
      %v324 = vsel %vm319, %v305, 0
      %v327 = vsel %vm319, %v306, 0
      %v330 = vsel %vm319, %v307, 0
      %vm332 = vcmask 1044480
      %vm333 = vcmask 1045504
      %v334 = vsel %vm332, 4294967295, 65535
      %v335 = vsel %vm333, %v334, 0
      %v337 = vand.u32 %v317, %v335
      %339 = vmatpush.bf16.msra.mxu0 0
      %340 = vmatpush.bf16.msra.mxu0 0
      %341 = vmatpush.bf16.msra.mxu0 0
      %342 = vmatpush.bf16.msra.mxu0 0
      %343 = vmatpush.bf16.msra.mxu0 0
      %344 = vmatpush.bf16.msra.mxu0 0
      %345 = vmatpush.bf16.msra.mxu0 %v337
      %346 = vmatpush.bf16.msra.mxu0 %v316
      %347 = vmatmul.bf16.gmra.mxu0 %v321
      %v348 = vpop.f32.mrf.mxu0
      %v349 = vadd.f32 %v286, %v348
      %v350 = vpop.f32.mrf.mxu0
      %v351 = vadd.f32 %v286, %v350
      %352 = vmatmul.bf16.gmra.mxu0 %v324
      %v353 = vpop.f32.mrf.mxu0
      %v354 = vadd.f32 %v286, %v353
      %v355 = vpop.f32.mrf.mxu0
      %v356 = vadd.f32 %v286, %v355
      %357 = vmatmul.bf16.gmra.mxu0 %v327
      %v358 = vpop.f32.mrf.mxu0
      %v359 = vadd.f32 %v286, %v358
      %v360 = vpop.f32.mrf.mxu0
      %v361 = vadd.f32 %v286, %v360
      %362 = vmatmul.bf16.gmra.mxu0 %v330
      %v363 = vpop.f32.mrf.mxu0
      %v364 = vadd.f32 %v286, %v363
      %v365 = vpop.f32.mrf.mxu0
      %v366 = vadd.f32 %v286, %v365
      %367 = vdwg.mxu0
      %v368 = vmax.f32 %v349, 0.0
      %v369 = vmax.f32 %v351, 0.0
      %v370 = vmax.f32 %v354, 0.0
      %v371 = vmax.f32 %v356, 0.0
      %v372 = vmax.f32 %v359, 0.0
      %v373 = vmax.f32 %v361, 0.0
      %v374 = vmax.f32 %v364, 0.0
      %v375 = vmax.f32 %v366, 0.0
      %v376 = vpack.c.bf16 %v368, %v368
      %v377 = vpack.c.bf16 %v369, %v369
      %v378 = vpack.c.bf16 %v370, %v370
      %v379 = vpack.c.bf16 %v371, %v371
      %v380 = vpack.c.bf16 %v372, %v372
      %v381 = vpack.c.bf16 %v373, %v373
      %v382 = vpack.c.bf16 %v374, %v374
      %v383 = vpack.c.bf16 %v375, %v375
      %vm384 = vcmask 125952
      %385 = vst.msk [vmem:[%s262] sm:$0xf] %vm384, %v376
      %386 = vst.msk [vmem:[%s262 + $0x4] sm:$0xf] %vm384, %v377
      %387 = vst.msk [vmem:[%s262 + $0x8] sm:$0xf] %vm384, %v378
      %388 = vst.msk [vmem:[%s262 + $0xc] sm:$0xf] %vm384, %v379
      %389 = vst.msk [vmem:[%s262 + $0x10] sm:$0xf] %vm384, %v380
      %390 = vst.msk [vmem:[%s262 + $0x14] sm:$0xf] %vm384, %v381
      %391 = vst.msk [vmem:[%s262 + $0x18] sm:$0xf] %vm384, %v382
      %392 = vst.msk [vmem:[%s262 + $0x1c] sm:$0xf] %vm384, %v383
      %v393 = vld [vmem:[%s3] sm:$0xff]
      %v394 = vld [vmem:[%s3 + $0x8] sm:$0xff]
      %v395 = vld [vmem:[%s4] sm:$0x3]
      %v397 = vperm.slane %v395, 0
      %v398 = vperm.slane %v395, 1
      %v409 = vunpack.c.l.b16 %v376
      %v410 = vunpack.c.l.b16 %v377
      %v411 = vunpack.c.l.b16 %v378
      %v412 = vunpack.c.l.b16 %v379
      %v413 = vunpack.c.l.b16 %v380
      %v414 = vunpack.c.l.b16 %v381
      %v415 = vunpack.c.l.b16 %v382
      %v416 = vunpack.c.l.b16 %v383
      %v417 = vpack.c.b16 %v410, %v409
      %v418 = vpack.c.b16 %v412, %v411
      %v419 = vpack.c.b16 %v414, %v413
      %v420 = vpack.c.b16 %v416, %v415
      %v423 = vunpack.c.l.b16 %v393
      %v424 = vunpack.c.h.b16 %v393
      %v425 = vunpack.c.l.b16 %v394
      %v426 = vunpack.c.h.b16 %v394
      %v427 = vpack.c.b16 %v425, %v423
      %v428 = vpack.c.b16 %v426, %v424
      %vm431 = vcmask 130048
      %v433 = vsel %vm431, %v417, 0
      %v436 = vsel %vm431, %v418, 0
      %v439 = vsel %vm431, %v419, 0
      %v442 = vsel %vm431, %v420, 0
      %444 = vmatpush.bf16.msra.mxu0 0
      %445 = vmatpush.bf16.msra.mxu0 0
      %446 = vmatpush.bf16.msra.mxu0 0
      %447 = vmatpush.bf16.msra.mxu0 0
      %448 = vmatpush.bf16.msra.mxu0 0
      %449 = vmatpush.bf16.msra.mxu0 0
      %450 = vmatpush.bf16.msra.mxu0 0
      %451 = vmatpush.bf16.msra.mxu0 %v427
      %452 = vmatmul.bf16.gmra.mxu0 %v433
      %v453 = vpop.f32.mrf.mxu0
      %v454 = vadd.f32 %v397, %v453
      %v455 = vpop.f32.mrf.mxu0
      %v456 = vadd.f32 %v397, %v455
      %457 = vmatmul.bf16.gmra.mxu0 %v436
      %v458 = vpop.f32.mrf.mxu0
      %v459 = vadd.f32 %v397, %v458
      %v460 = vpop.f32.mrf.mxu0
      %v461 = vadd.f32 %v397, %v460
      %462 = vmatmul.bf16.gmra.mxu0 %v439
      %v463 = vpop.f32.mrf.mxu0
      %v464 = vadd.f32 %v397, %v463
      %v465 = vpop.f32.mrf.mxu0
      %v466 = vadd.f32 %v397, %v465
      %467 = vmatmul.bf16.gmra.mxu0 %v442
      %v468 = vpop.f32.mrf.mxu0
      %v469 = vadd.f32 %v397, %v468
      %v470 = vpop.f32.mrf.mxu0
      %v471 = vadd.f32 %v397, %v470
      %472 = vdwg.mxu0
      %473 = vmatpush.bf16.msra.mxu0 0
      %474 = vmatpush.bf16.msra.mxu0 0
      %475 = vmatpush.bf16.msra.mxu0 0
      %476 = vmatpush.bf16.msra.mxu0 0
      %477 = vmatpush.bf16.msra.mxu0 0
      %478 = vmatpush.bf16.msra.mxu0 0
      %479 = vmatpush.bf16.msra.mxu0 0
      %480 = vmatpush.bf16.msra.mxu0 %v428
      %481 = vmatmul.bf16.gmra.mxu0 %v433
      %v482 = vpop.f32.mrf.mxu0
      %v483 = vadd.f32 %v398, %v482
      %v484 = vpop.f32.mrf.mxu0
      %v485 = vadd.f32 %v398, %v484
      %486 = vmatmul.bf16.gmra.mxu0 %v436
      %v487 = vpop.f32.mrf.mxu0
      %v488 = vadd.f32 %v398, %v487
      %v489 = vpop.f32.mrf.mxu0
      %v490 = vadd.f32 %v398, %v489
      %491 = vmatmul.bf16.gmra.mxu0 %v439
      %v492 = vpop.f32.mrf.mxu0
      %v493 = vadd.f32 %v398, %v492
      %v494 = vpop.f32.mrf.mxu0
      %v495 = vadd.f32 %v398, %v494
      %496 = vmatmul.bf16.gmra.mxu0 %v442
      %v497 = vpop.f32.mrf.mxu0
      %v498 = vadd.f32 %v398, %v497
      %v499 = vpop.f32.mrf.mxu0
      %v500 = vadd.f32 %v398, %v499
      %501 = vdwg.mxu0
      %v502 = vpack.c.bf16 %v483, %v454
      %v503 = vpack.c.bf16 %v485, %v456
      %v504 = vpack.c.bf16 %v488, %v459
      %v505 = vpack.c.bf16 %v490, %v461
      %v506 = vpack.c.bf16 %v493, %v464
      %v507 = vpack.c.bf16 %v495, %v466
      %v508 = vpack.c.bf16 %v498, %v469
      %v509 = vpack.c.bf16 %v500, %v471
      %vm510 = vcmask 1043456
      %vm511 = vcmask 56324
      %vm512 = vmor %vm511, %vm510
      %513 = vst.msk [vmem:[%s269] sm:$0xff] %vm512, %v502
      %514 = vst.msk [vmem:[%s269 + $0x8] sm:$0xff] %vm512, %v503
      %515 = vst.msk [vmem:[%s269 + $0x10] sm:$0xff] %vm512, %v504
      %516 = vst.msk [vmem:[%s269 + $0x18] sm:$0xff] %vm512, %v505
      %517 = vst.msk [vmem:[%s269 + $0x20] sm:$0xff] %vm512, %v506
      %518 = vst.msk [vmem:[%s269 + $0x28] sm:$0xff] %vm512, %v507
      %519 = vst.msk [vmem:[%s269 + $0x30] sm:$0xff] %vm512, %v508
      %520 = vst.msk [vmem:[%s269 + $0x38] sm:$0xff] %vm512, %v509
      %s521 = smul.u32 8, %s18
      %p522 = scmp.lt.s32.totalorder %s521, 15
      %s523 = scalar_select %p522, %s521, 15
      %s524 = smul.addr %s523, 4
      %s525 = scalar_lea.vmem %s5, %s524
      %s526 = smul.u32 8, %s18
      %p527 = scmp.lt.s32.totalorder %s526, 15
      %s528 = scalar_select %p527, %s526, 15
      %s529 = smul.addr %s528, 2
      %s530 = smul.addr %s529, 4
      %s531 = scalar_lea.vmem %s6, %s530
      // Predicated region
      $region41: #{rfcn_forward.3} parent=39 // pred_check
        %p532 = pneg %p146
      $region42: #{rfcn_forward.3} parent=39 // pred_check_branch
        %534 = sbr.rel (%p532) target = $region44
      $region43: #{rfcn_forward.3} parent=39 // pred_region
        %s535 = smul.u32 8, %s18
      $region44: #{rfcn_forward.3} parent=39 // pred_fallthru
        _
      // Predicated region
      $region45: #{rfcn_forward.3} parent=39 // pred_check
        %p536 = pneg %p172
      $region46: #{rfcn_forward.3} parent=39 // pred_check_branch
        %538 = sbr.rel (%p536) target = $region48
      $region47: #{rfcn_forward.3} parent=39 // pred_region
        %s539 = smul.u32 8, %s18
      $region48: #{rfcn_forward.3} parent=39 // pred_fallthru
        _
    $region40: #{rfcn_forward.3} parent=5 // pred_fallthru
      _
    %p540 = scmp.le.s32.totalorder 2, %s13
    // Predicated region
    $region49: #{rfcn_forward.3} parent=5 // pred_check
      %p541 = pneg %p540
    $region50: #{rfcn_forward.3} parent=5 // pred_check_branch
      %543 = sbr.rel (%p541) target = $region52
    $region51: #{rfcn_forward.3} parent=5 // pred_region
      %s544 = ssub.s32 %s13, 2
      // Predicated region
      $region53: #{rfcn_forward.3} parent=51 // pred_check
        %p545 = pneg %p152
      $region54: #{rfcn_forward.3} parent=51 // pred_check_branch
        %547 = sbr.rel (%p545) target = $region56
      $region55: #{rfcn_forward.3} parent=51 // pred_region
        %s548 = smul.u32 8, %s19
        %p549 = scmp.lt.s32.totalorder %s548, 15
        %s550 = scalar_select %p549, %s548, 15
        %s551 = smul.addr %s550, 4
        %s552 = scalar_lea.vmem %s5, %s551
      $region56: #{rfcn_forward.3} parent=51 // pred_fallthru
        _
      // Predicated region
      $region57: #{rfcn_forward.3} parent=51 // pred_check
        %p553 = pneg %p178
      $region58: #{rfcn_forward.3} parent=51 // pred_check_branch
        %555 = sbr.rel (%p553) target = $region60
      $region59: #{rfcn_forward.3} parent=51 // pred_region
        %s556 = smul.u32 8, %s19
        %p557 = scmp.lt.s32.totalorder %s556, 15
        %s558 = scalar_select %p557, %s556, 15
        %s559 = smul.addr %s558, 2
        %s560 = smul.addr %s559, 4
        %s561 = scalar_lea.vmem %s6, %s560
      $region60: #{rfcn_forward.3} parent=51 // pred_fallthru
        _
    $region52: #{rfcn_forward.3} parent=5 // pred_fallthru
      _
  $region6: #{rfcn_forward.3} parent=0 // loop_footer
    %s17 = sadd.s32 1, %s13
  $region7: #{rfcn_forward.3} parent=0 // loop_footer_branch
    %12 = sbr.rel target = $region3
  $region8: #{rfcn_forward.3} parent=0 // loop_exit
    _

// kernel: rfcn_forward.4
$region0: #{rfcn_forward.4}
  #allocation0 [shape = 'u32[]', space=smem, size = 0x4, offset = 0x4, fixed_abs, tag = 'smem constant byte address 0x4 - core index']
  #allocation1 [shape = 'u32[72,128]{1,0:T(1,128)}', space=vmem, size = 0x9000, scoped, tag = 'internal scratch']
  %s0 = inlined_call_operand.vmem [shape: bf16[2,10,10,16], index: 0, kind: input, shape index: {}]
  %s1 = inlined_call_operand.vmem [shape: bf16[9,16,16], index: 1, kind: input, shape index: {}]
  %s2 = inlined_call_operand.vmem [shape: f32[1,16], index: 2, kind: input, shape index: {}]
  %s3 = inlined_call_operand.vmem [shape: bf16[16,18], index: 3, kind: input, shape index: {}]
  %s4 = inlined_call_operand.vmem [shape: f32[1,18], index: 4, kind: input, shape index: {}]
  %s5 = inlined_call_operand.vmem [shape: f32[2,64,18], index: 5, kind: output, shape index: {}]
  %s6 = sld [smem:[#allocation0]]
  $region53: #{rfcn_forward.4} parent=0
    _
  %s8 = ssub.s32 1, %s6
  %s9 = scalar_select 0, %s8, %s6
  loop: start=0, step=1, limit=4
  $region2: #{rfcn_forward.4} parent=0 // loop_pre_header
    _
  $region3: #{rfcn_forward.4} parent=0 // loop_header
    %s11 = sphi 0, %s15
    %p12 = scmp.ge.s32.totalorder %s11, 4
    %s21 = sphi 0, %s23
    %s24 = sphi 0, %s21
    %s25 = sphi 0, %s24
    %s41 = sphi 0, %s25
    %s45 = sphi 0, %s45
    %s47 = sphi 0, %s45
    %s48 = sphi 0, %s47
    %s62 = sphi 0, %s48
    %s66 = sphi 0, %s66
    %s68 = sphi 0, %s66
    %s69 = sphi 0, %s68
    %s83 = sphi 0, %s69
    %s87 = sphi 0, %s87
    %s89 = sphi 0, %s87
    %s90 = sphi 0, %s89
    %s104 = sphi 0, %s90
    %s108 = sphi 0, %s108
    %s110 = sphi 0, %s108
    %s111 = sphi 0, %s110
    %s125 = sphi 0, %s111
    %s131 = sphi 0, %s133
    %s134 = sphi 0, %s131
    %s135 = sphi 0, %s134
    %s151 = sphi 0, %s135
  $region4: #{rfcn_forward.4} parent=0 // loop_header_branch
    %14 = sbr.rel (%p12) target = $region8
  $region5: #{rfcn_forward.4} parent=0 // loop_body
    %s16 = ssub.s32 %s11, 1
    %s17 = ssub.s32 %s11, 2
    %s18 = sadd.s32 %s11, 1
    %s19 = ssub.s32 %s11, %s18
    %p20 = scmp.eq.s32.totalorder %s19, 0
    %s22 = sadd.s32 %s21, 1
    %s23 = scalar_select %p20, %s21, %s22
    %p26 = pneg %p20
    %p27 = scmp.eq.s32.totalorder %s11, 1
    %p28 = por %p26, %p27
    %p29 = scmp.ne.s32.totalorder %s21, %s24
    %p30 = scmp.eq.s32.totalorder %s11, 0
    %p31 = por %p29, %p30
    %p32 = scmp.ne.s32.totalorder %s21, %s24
    %p33 = scmp.eq.s32.totalorder %s16, 1
    %p34 = por %p32, %p33
    %p35 = scmp.ne.s32.totalorder %s24, %s25
    %p36 = scmp.eq.s32.totalorder %s16, 0
    %p37 = por %p35, %p36
    %p38 = scmp.ne.s32.totalorder %s24, %s25
    %p39 = scmp.eq.s32.totalorder %s17, 1
    %p40 = por %p38, %p39
    %p42 = scmp.ne.s32.totalorder %s25, %s41
    %p43 = scmp.eq.s32.totalorder %s17, 0
    %p44 = por %p42, %p43
    %s46 = sadd.s32 %s45, 1
    %p49 = scmp.eq.s32.totalorder %s11, 1
    %p50 = scmp.ne.s32.totalorder %s45, %s47
    %p51 = scmp.eq.s32.totalorder %s11, 0
    %p52 = por %p50, %p51
    %p53 = scmp.ne.s32.totalorder %s45, %s47
    %p54 = scmp.eq.s32.totalorder %s16, 1
    %p55 = por %p53, %p54
    %p56 = scmp.ne.s32.totalorder %s47, %s48
    %p57 = scmp.eq.s32.totalorder %s16, 0
    %p58 = por %p56, %p57
    %p59 = scmp.ne.s32.totalorder %s47, %s48
    %p60 = scmp.eq.s32.totalorder %s17, 1
    %p61 = por %p59, %p60
    %p63 = scmp.ne.s32.totalorder %s48, %s62
    %p64 = scmp.eq.s32.totalorder %s17, 0
    %p65 = por %p63, %p64
    %s67 = sadd.s32 %s66, 1
    %p70 = scmp.eq.s32.totalorder %s11, 1
    %p71 = scmp.ne.s32.totalorder %s66, %s68
    %p72 = scmp.eq.s32.totalorder %s11, 0
    %p73 = por %p71, %p72
    %p74 = scmp.ne.s32.totalorder %s66, %s68
    %p75 = scmp.eq.s32.totalorder %s16, 1
    %p76 = por %p74, %p75
    %p77 = scmp.ne.s32.totalorder %s68, %s69
    %p78 = scmp.eq.s32.totalorder %s16, 0
    %p79 = por %p77, %p78
    %p80 = scmp.ne.s32.totalorder %s68, %s69
    %p81 = scmp.eq.s32.totalorder %s17, 1
    %p82 = por %p80, %p81
    %p84 = scmp.ne.s32.totalorder %s69, %s83
    %p85 = scmp.eq.s32.totalorder %s17, 0
    %p86 = por %p84, %p85
    %s88 = sadd.s32 %s87, 1
    %p91 = scmp.eq.s32.totalorder %s11, 1
    %p92 = scmp.ne.s32.totalorder %s87, %s89
    %p93 = scmp.eq.s32.totalorder %s11, 0
    %p94 = por %p92, %p93
    %p95 = scmp.ne.s32.totalorder %s87, %s89
    %p96 = scmp.eq.s32.totalorder %s16, 1
    %p97 = por %p95, %p96
    %p98 = scmp.ne.s32.totalorder %s89, %s90
    %p99 = scmp.eq.s32.totalorder %s16, 0
    %p100 = por %p98, %p99
    %p101 = scmp.ne.s32.totalorder %s89, %s90
    %p102 = scmp.eq.s32.totalorder %s17, 1
    %p103 = por %p101, %p102
    %p105 = scmp.ne.s32.totalorder %s90, %s104
    %p106 = scmp.eq.s32.totalorder %s17, 0
    %p107 = por %p105, %p106
    %s109 = sadd.s32 %s108, 1
    %p112 = scmp.eq.s32.totalorder %s11, 1
    %p113 = scmp.ne.s32.totalorder %s108, %s110
    %p114 = scmp.eq.s32.totalorder %s11, 0
    %p115 = por %p113, %p114
    %p116 = scmp.ne.s32.totalorder %s108, %s110
    %p117 = scmp.eq.s32.totalorder %s16, 1
    %p118 = por %p116, %p117
    %p119 = scmp.ne.s32.totalorder %s110, %s111
    %p120 = scmp.eq.s32.totalorder %s16, 0
    %p121 = por %p119, %p120
    %p122 = scmp.ne.s32.totalorder %s110, %s111
    %p123 = scmp.eq.s32.totalorder %s17, 1
    %p124 = por %p122, %p123
    %p126 = scmp.ne.s32.totalorder %s111, %s125
    %p127 = scmp.eq.s32.totalorder %s17, 0
    %p128 = por %p126, %p127
    %s129 = ssub.s32 %s11, %s18
    %p130 = scmp.eq.s32.totalorder %s129, 0
    %s132 = sadd.s32 %s131, 1
    %s133 = scalar_select %p130, %s131, %s132
    %p136 = pneg %p130
    %p137 = scmp.eq.s32.totalorder %s11, 1
    %p138 = por %p136, %p137
    %p139 = scmp.ne.s32.totalorder %s131, %s134
    %p140 = scmp.eq.s32.totalorder %s11, 0
    %p141 = por %p139, %p140
    %p142 = scmp.ne.s32.totalorder %s131, %s134
    %p143 = scmp.eq.s32.totalorder %s16, 1
    %p144 = por %p142, %p143
    %p145 = scmp.ne.s32.totalorder %s134, %s135
    %p146 = scmp.eq.s32.totalorder %s16, 0
    %p147 = por %p145, %p146
    %p148 = scmp.ne.s32.totalorder %s134, %s135
    %p149 = scmp.eq.s32.totalorder %s17, 1
    %p150 = por %p148, %p149
    %p152 = scmp.ne.s32.totalorder %s135, %s151
    %p153 = scmp.eq.s32.totalorder %s17, 0
    %p154 = por %p152, %p153
    %p155 = scmp.le.s32.totalorder 1, %s11
    %p156 = scmp.lt.s32.totalorder %s11, 3
    %p157 = pnand %p155, %p156
    %p158 = pneg %p157
    // Predicated region
    $region9: #{rfcn_forward.4} parent=5 // pred_check
      _
    $region10: #{rfcn_forward.4} parent=5 // pred_check_branch
      %160 = sbr.rel (%p157) target = $region12
    $region11: #{rfcn_forward.4} parent=5 // pred_region
      %s161 = ssub.s32 %s11, 1
      // Predicated region
      $region13: #{rfcn_forward.4} parent=11 // pred_check
        %p162 = pneg %p58
      $region14: #{rfcn_forward.4} parent=11 // pred_check_branch
        %164 = sbr.rel (%p162) target = $region16
      $region15: #{rfcn_forward.4} parent=11 // pred_region
        _
      $region16: #{rfcn_forward.4} parent=11 // pred_fallthru
        _
      // Predicated region
      $region17: #{rfcn_forward.4} parent=11 // pred_check
        %p165 = pneg %p79
      $region18: #{rfcn_forward.4} parent=11 // pred_check_branch
        %167 = sbr.rel (%p165) target = $region20
      $region19: #{rfcn_forward.4} parent=11 // pred_region
        _
      $region20: #{rfcn_forward.4} parent=11 // pred_fallthru
        _
      // Predicated region
      $region21: #{rfcn_forward.4} parent=11 // pred_check
        %p168 = pneg %p100
      $region22: #{rfcn_forward.4} parent=11 // pred_check_branch
        %170 = sbr.rel (%p168) target = $region24
      $region23: #{rfcn_forward.4} parent=11 // pred_region
        _
      $region24: #{rfcn_forward.4} parent=11 // pred_fallthru
        _
      // Predicated region
      $region25: #{rfcn_forward.4} parent=11 // pred_check
        %p171 = pneg %p121
      $region26: #{rfcn_forward.4} parent=11 // pred_check_branch
        %173 = sbr.rel (%p171) target = $region28
      $region27: #{rfcn_forward.4} parent=11 // pred_region
        _
      $region28: #{rfcn_forward.4} parent=11 // pred_fallthru
        _
    $region12: #{rfcn_forward.4} parent=5 // pred_fallthru
      _
    %p174 = scmp.lt.s32.totalorder %s11, 2
    // Predicated region
    $region29: #{rfcn_forward.4} parent=5 // pred_check
      %p175 = pneg %p174
    $region30: #{rfcn_forward.4} parent=5 // pred_check_branch
      %177 = sbr.rel (%p175) target = $region32
    $region31: #{rfcn_forward.4} parent=5 // pred_region
      // Predicated region
      $region33: #{rfcn_forward.4} parent=31 // pred_check
        %p178 = pneg %p31
      $region34: #{rfcn_forward.4} parent=31 // pred_check_branch
        %180 = sbr.rel (%p178) target = $region36
      $region35: #{rfcn_forward.4} parent=31 // pred_region
        %p181 = scmp.lt.s32.totalorder %s11, 1
        %s182 = scalar_select %p181, %s11, 1
        %s183 = smul.addr %s182, 20
        %s184 = smul.addr %s183, 4
        %s185 = scalar_lea.vmem %s0, %s184
      $region36: #{rfcn_forward.4} parent=31 // pred_fallthru
        _
    $region32: #{rfcn_forward.4} parent=5 // pred_fallthru
      _
    %p186 = scmp.le.s32.totalorder 1, %s11
    %p187 = scmp.lt.s32.totalorder %s11, 3
    %p188 = pnand %p186, %p187
    %p189 = pneg %p188
    // Predicated region
    $region37: #{rfcn_forward.4} parent=5 // pred_check
      _
    $region38: #{rfcn_forward.4} parent=5 // pred_check_branch
      %191 = sbr.rel (%p188) target = $region40
    $region39: #{rfcn_forward.4} parent=5 // pred_region
      %s192 = ssub.s32 %s11, 1
      %p193 = scmp.lt.s32.totalorder %s16, 1
      %s194 = scalar_select %p193, %s16, 1
      %s195 = smul.addr %s194, 20
      %s196 = smul.addr %s195, 4
      %s197 = scalar_lea.vmem %s0, %s196
      %p198 = pneg %p37
      %p199 = pneg %p34
      %p200 = pneg %p58
      %p201 = pneg %p55
      %p202 = pneg %p79
      %p203 = pneg %p76
      %p204 = pneg %p100
      %p205 = pneg %p97
      %p206 = pneg %p121
      %p207 = pneg %p118
      %p208 = pneg %p147
      %p209 = pneg %p144
      %p210 = scmp.lt.s32.totalorder %s16, 1
      %s211 = scalar_select %p210, %s16, 1
      %s212 = smul.addr %s211, 8
      %s213 = smul.addr %s212, 8
      %s214 = scalar_lea.vmem %s5, %s213
      %p215 = scmp.lt.s32.totalorder %s16, 1
      %s216 = scalar_select %p215, %s16, 1
      %s217 = smul.addr %s216, 20
      %s218 = smul.addr %s217, 4
      %s219 = scalar_lea.vmem %s0, %s218
      %p220 = scmp.lt.s32.totalorder %s16, 1
      %s221 = scalar_select %p220, %s16, 1
      %s222 = smul.addr %s221, 8
      %s223 = smul.addr %s222, 8
      %s224 = scalar_lea.vmem %s5, %s223
      %v226 = vld [vmem:[%s219] sm:$0xf]
      %v227 = vld [vmem:[%s219 + $0x8] sm:$0xf]
      %v228 = vld [vmem:[%s219 + $0x10] sm:$0xf]
      %v229 = vld [vmem:[%s219 + $0x18] sm:$0xf]
      %v230 = vld [vmem:[%s219 + $0x20] sm:$0xf]
      %v231 = vld [vmem:[%s219 + $0x28] sm:$0xf]
      %v232 = vld [vmem:[%s219 + $0x30] sm:$0xf]
      %v233 = vld [vmem:[%s219 + $0x38] sm:$0xf]
      %v234 = vld [vmem:[%s1] sm:$0xf]
      %v235 = vld [vmem:[%s1 + $0x4] sm:$0xf]
      %v236 = vld [vmem:[%s219 + $0x4] sm:$0x1]
      %v237 = vld [vmem:[%s219 + $0xc] sm:$0x1]
      %v238 = vld [vmem:[%s219 + $0x14] sm:$0x1]
      %v239 = vld [vmem:[%s219 + $0x1c] sm:$0x1]
      %v240 = vld [vmem:[%s219 + $0x24] sm:$0x1]
      %v241 = vld [vmem:[%s219 + $0x2c] sm:$0x1]
      %v242 = vld [vmem:[%s219 + $0x34] sm:$0x1]
      %v243 = vld [vmem:[%s219 + $0x3c] sm:$0x1]
      %vm244 = vsmask.f32 3328
      %vm245 = vsmask.f32 7440
      %vm246 = vmor %vm244, %vm245
      %v248 = vshrl.u32 %v226, 16
      %v250 = vrot.slane %v248, 4
      %v251 = vshll.u32 %v226, 16
      %v253 = vrot.slane %v251, 5
      %v254 = vor.u32 %v250, %v253
      %v255 = vrot.slane %v254, 4
      %v257 = vshll.u32 %v236, 16
      %v259 = vrot.slane %v257, 5
      %v260 = vsel %vm246, %v255, %v259
      %v262 = vshrl.u32 %v227, 16
      %v264 = vrot.slane %v262, 4
      %v265 = vshll.u32 %v227, 16
      %v267 = vrot.slane %v265, 5
      %v268 = vor.u32 %v264, %v267
      %v269 = vrot.slane %v268, 4
      %v271 = vshll.u32 %v237, 16
      %v273 = vrot.slane %v271, 5
      %v274 = vsel %vm246, %v269, %v273
      %v276 = vshrl.u32 %v228, 16
      %v278 = vrot.slane %v276, 4
      %v279 = vshll.u32 %v228, 16
      %v281 = vrot.slane %v279, 5
      %v282 = vor.u32 %v278, %v281
      %v283 = vrot.slane %v282, 4
      %v285 = vshll.u32 %v238, 16
      %v287 = vrot.slane %v285, 5
      %v288 = vsel %vm246, %v283, %v287
      %v290 = vshrl.u32 %v229, 16
      %v292 = vrot.slane %v290, 4
      %v293 = vshll.u32 %v229, 16
      %v295 = vrot.slane %v293, 5
      %v296 = vor.u32 %v292, %v295
      %v297 = vrot.slane %v296, 4
      %v299 = vshll.u32 %v239, 16
      %v301 = vrot.slane %v299, 5
      %v302 = vsel %vm246, %v297, %v301
      %v304 = vshrl.u32 %v230, 16
      %v306 = vrot.slane %v304, 4
      %v307 = vshll.u32 %v230, 16
      %v309 = vrot.slane %v307, 5
      %v310 = vor.u32 %v306, %v309
      %v311 = vrot.slane %v310, 4
      %v313 = vshll.u32 %v240, 16
      %v315 = vrot.slane %v313, 5
      %v316 = vsel %vm246, %v311, %v315
      %v318 = vshrl.u32 %v231, 16
      %v320 = vrot.slane %v318, 4
      %v321 = vshll.u32 %v231, 16
      %v323 = vrot.slane %v321, 5
      %v324 = vor.u32 %v320, %v323
      %v325 = vrot.slane %v324, 4
      %v327 = vshll.u32 %v241, 16
      %v329 = vrot.slane %v327, 5
      %v330 = vsel %vm246, %v325, %v329
      %v332 = vshrl.u32 %v232, 16
      %v334 = vrot.slane %v332, 4
      %v335 = vshll.u32 %v232, 16
      %v337 = vrot.slane %v335, 5
      %v338 = vor.u32 %v334, %v337
      %v339 = vrot.slane %v338, 4
      %v341 = vshll.u32 %v242, 16
      %v343 = vrot.slane %v341, 5
      %v344 = vsel %vm246, %v339, %v343
      %v346 = vshrl.u32 %v233, 16
      %v348 = vrot.slane %v346, 4
      %v349 = vshll.u32 %v233, 16
      %v351 = vrot.slane %v349, 5
      %v352 = vor.u32 %v348, %v351
      %v353 = vrot.slane %v352, 4
      %v355 = vshll.u32 %v243, 16
      %v357 = vrot.slane %v355, 5
      %v358 = vsel %vm246, %v353, %v357
      %s359 = scalar_lea.vmem %s1, 8
      %v360 = vld [vmem:[%s359] sm:$0xf]
      %v361 = vld [vmem:[%s359 + $0x4] sm:$0xf]
      %v362 = vunpack.c.l.b16 %v260
      %v363 = vunpack.c.l.b16 %v274
      %v364 = vunpack.c.l.b16 %v288
      %v365 = vunpack.c.l.b16 %v302
      %v366 = vunpack.c.l.b16 %v316
      %v367 = vunpack.c.l.b16 %v330
      %v368 = vunpack.c.l.b16 %v344
      %v369 = vunpack.c.l.b16 %v358
      %v370 = vpack.c.b16 %v363, %v362
      %v371 = vpack.c.b16 %v365, %v364
      %v372 = vpack.c.b16 %v367, %v366
      %v373 = vpack.c.b16 %v369, %v368
      %v376 = vunpack.c.l.b16 %v360
      %v377 = vunpack.c.l.b16 %v361
      %v378 = vpack.c.b16 %v377, %v376
      %vm380 = vcmask 130048
      %v382 = vsel %vm380, %v370, 0
      %v385 = vsel %vm380, %v371, 0
      %v388 = vsel %vm380, %v372, 0
      %v391 = vsel %vm380, %v373, 0
      %393 = vmatpush.bf16.msra.mxu0 0
      %394 = vmatpush.bf16.msra.mxu0 0
      %395 = vmatpush.bf16.msra.mxu0 0
      %396 = vmatpush.bf16.msra.mxu0 0
      %397 = vmatpush.bf16.msra.mxu0 0
      %398 = vmatpush.bf16.msra.mxu0 0
      %399 = vmatpush.bf16.msra.mxu0 0
      %400 = vmatpush.bf16.msra.mxu0 %v378
      %401 = vmatmul.bf16.gmra.mxu0 %v382
      %v402 = vpop.f32.mrf.mxu0
      %v403 = vadd.f32 0.0, %v402
      %v404 = vpop.f32.mrf.mxu0
      %v405 = vadd.f32 0.0, %v404
      %406 = vmatmul.bf16.gmra.mxu0 %v385
      %v407 = vpop.f32.mrf.mxu0
      %v408 = vadd.f32 0.0, %v407
      %v409 = vpop.f32.mrf.mxu0
      %v410 = vadd.f32 0.0, %v409
      %411 = vmatmul.bf16.gmra.mxu0 %v388
      %v412 = vpop.f32.mrf.mxu0
      %v413 = vadd.f32 0.0, %v412
      %v414 = vpop.f32.mrf.mxu0
      %v415 = vadd.f32 0.0, %v414
      %416 = vmatmul.bf16.gmra.mxu0 %v391
      %v417 = vpop.f32.mrf.mxu0
      %v418 = vadd.f32 0.0, %v417
      %v419 = vpop.f32.mrf.mxu0
      %v420 = vadd.f32 0.0, %v419
      %421 = vdwg.mxu0
      %v430 = vunpack.c.l.b16 %v226
      %v431 = vunpack.c.l.b16 %v227
      %v432 = vunpack.c.l.b16 %v228
      %v433 = vunpack.c.l.b16 %v229
      %v434 = vunpack.c.l.b16 %v230
      %v435 = vunpack.c.l.b16 %v231
      %v436 = vunpack.c.l.b16 %v232
      %v437 = vunpack.c.l.b16 %v233
      %v438 = vpack.c.b16 %v431, %v430
      %v439 = vpack.c.b16 %v433, %v432
      %v440 = vpack.c.b16 %v435, %v434
      %v441 = vpack.c.b16 %v437, %v436
      %v444 = vunpack.c.l.b16 %v234
      %v445 = vunpack.c.l.b16 %v235
      %v446 = vpack.c.b16 %v445, %v444
      %v449 = vsel %vm380, %v438, 0
      %v452 = vsel %vm380, %v439, 0
      %v455 = vsel %vm380, %v440, 0
      %v458 = vsel %vm380, %v441, 0
      %460 = vmatpush.bf16.msra.mxu0 0
      %461 = vmatpush.bf16.msra.mxu0 0
      %462 = vmatpush.bf16.msra.mxu0 0
      %463 = vmatpush.bf16.msra.mxu0 0
      %464 = vmatpush.bf16.msra.mxu0 0
      %465 = vmatpush.bf16.msra.mxu0 0
      %466 = vmatpush.bf16.msra.mxu0 0
      %467 = vmatpush.bf16.msra.mxu0 %v446
      %468 = vmatmul.bf16.gmra.mxu0 %v449
      %v469 = vpop.f32.mrf.mxu0
      %v470 = vadd.f32 %v403, %v469
      %v471 = vpop.f32.mrf.mxu0
      %v472 = vadd.f32 %v405, %v471
      %473 = vmatmul.bf16.gmra.mxu0 %v452
      %v474 = vpop.f32.mrf.mxu0
      %v475 = vadd.f32 %v408, %v474
      %v476 = vpop.f32.mrf.mxu0
      %v477 = vadd.f32 %v410, %v476
      %478 = vmatmul.bf16.gmra.mxu0 %v455
      %v479 = vpop.f32.mrf.mxu0
      %v480 = vadd.f32 %v413, %v479
      %v481 = vpop.f32.mrf.mxu0
      %v482 = vadd.f32 %v415, %v481
      %483 = vmatmul.bf16.gmra.mxu0 %v458
      %v484 = vpop.f32.mrf.mxu0
      %v485 = vadd.f32 %v418, %v484
      %v486 = vpop.f32.mrf.mxu0
      %v487 = vadd.f32 %v420, %v486
      %488 = vdwg.mxu0
      %v489 = vld [vmem:[%s219] sm:$0xe]
      %v490 = vld [vmem:[%s219 + $0x8] sm:$0xe]
      %v491 = vld [vmem:[%s219 + $0x10] sm:$0xe]
      %v492 = vld [vmem:[%s219 + $0x18] sm:$0xe]
      %v493 = vld [vmem:[%s219 + $0x20] sm:$0xe]
      %v494 = vld [vmem:[%s219 + $0x28] sm:$0xe]
      %v495 = vld [vmem:[%s219 + $0x30] sm:$0xe]
      %v496 = vld [vmem:[%s219 + $0x38] sm:$0xe]
      %vm513 = vcmask 1042432
      %vm514 = vcmask 1046532
      %vm515 = vmor %vm513, %vm514
      %v516 = vrot.slane %v489, 5
      %v517 = vrot.slane %v516, 4
      %v518 = vrot.slane %v236, 5
      %v519 = vsel %vm515, %v517, %v518
      %v520 = vrot.slane %v490, 5
      %v521 = vrot.slane %v520, 4
      %v522 = vrot.slane %v237, 5
      %v523 = vsel %vm515, %v521, %v522
      %v524 = vrot.slane %v491, 5
      %v525 = vrot.slane %v524, 4
      %v526 = vrot.slane %v238, 5
      %v527 = vsel %vm515, %v525, %v526
      %v528 = vrot.slane %v492, 5
      %v529 = vrot.slane %v528, 4
      %v530 = vrot.slane %v239, 5
      %v531 = vsel %vm515, %v529, %v530
      %v532 = vrot.slane %v493, 5
      %v533 = vrot.slane %v532, 4
      %v534 = vrot.slane %v240, 5
      %v535 = vsel %vm515, %v533, %v534
      %v536 = vrot.slane %v494, 5
      %v537 = vrot.slane %v536, 4
      %v538 = vrot.slane %v241, 5
      %v539 = vsel %vm515, %v537, %v538
      %v540 = vrot.slane %v495, 5
      %v541 = vrot.slane %v540, 4
      %v542 = vrot.slane %v242, 5
      %v543 = vsel %vm515, %v541, %v542
      %v544 = vrot.slane %v496, 5
      %v545 = vrot.slane %v544, 4
      %v546 = vrot.slane %v243, 5
      %v547 = vsel %vm515, %v545, %v546
      %s548 = scalar_lea.vmem %s1, 16
      %v549 = vld [vmem:[%s548] sm:$0xf]
      %v550 = vld [vmem:[%s548 + $0x4] sm:$0xf]
      %v551 = vunpack.c.l.b16 %v519
      %v552 = vunpack.c.l.b16 %v523
      %v553 = vunpack.c.l.b16 %v527
      %v554 = vunpack.c.l.b16 %v531
      %v555 = vunpack.c.l.b16 %v535
      %v556 = vunpack.c.l.b16 %v539
      %v557 = vunpack.c.l.b16 %v543
      %v558 = vunpack.c.l.b16 %v547
      %v559 = vpack.c.b16 %v552, %v551
      %v560 = vpack.c.b16 %v554, %v553
      %v561 = vpack.c.b16 %v556, %v555
      %v562 = vpack.c.b16 %v558, %v557
      %v565 = vunpack.c.l.b16 %v549
      %v566 = vunpack.c.l.b16 %v550
      %v567 = vpack.c.b16 %v566, %v565
      %v570 = vsel %vm380, %v559, 0
      %v573 = vsel %vm380, %v560, 0
      %v576 = vsel %vm380, %v561, 0
      %v579 = vsel %vm380, %v562, 0
      %581 = vmatpush.bf16.msra.mxu0 0
      %582 = vmatpush.bf16.msra.mxu0 0
      %583 = vmatpush.bf16.msra.mxu0 0
      %584 = vmatpush.bf16.msra.mxu0 0
      %585 = vmatpush.bf16.msra.mxu0 0
      %586 = vmatpush.bf16.msra.mxu0 0
      %587 = vmatpush.bf16.msra.mxu0 0
      %588 = vmatpush.bf16.msra.mxu0 %v567
      %589 = vmatmul.bf16.gmra.mxu0 %v570
      %v590 = vpop.f32.mrf.mxu0
      %v591 = vadd.f32 0.0, %v590
      %v592 = vpop.f32.mrf.mxu0
      %v593 = vadd.f32 0.0, %v592
      %594 = vmatmul.bf16.gmra.mxu0 %v573
      %v595 = vpop.f32.mrf.mxu0
      %v596 = vadd.f32 0.0, %v595
      %v597 = vpop.f32.mrf.mxu0
      %v598 = vadd.f32 0.0, %v597
      %599 = vmatmul.bf16.gmra.mxu0 %v576
      %v600 = vpop.f32.mrf.mxu0
      %v601 = vadd.f32 0.0, %v600
      %v602 = vpop.f32.mrf.mxu0
      %v603 = vadd.f32 0.0, %v602
      %604 = vmatmul.bf16.gmra.mxu0 %v579
      %v605 = vpop.f32.mrf.mxu0
      %v606 = vadd.f32 0.0, %v605
      %v607 = vpop.f32.mrf.mxu0
      %v608 = vadd.f32 0.0, %v607
      %609 = vdwg.mxu0
      %v610 = vadd.f32 %v470, %v591
      %v611 = vadd.f32 %v472, %v593
      %v612 = vadd.f32 %v475, %v596
      %v613 = vadd.f32 %v477, %v598
      %v614 = vadd.f32 %v480, %v601
      %v615 = vadd.f32 %v482, %v603
      %v616 = vadd.f32 %v485, %v606
      %v617 = vadd.f32 %v487, %v608
      %s618 = scalar_lea.vmem %s219, 8
      %v619 = vld [vmem:[%s618] sm:$0xf]
      %v620 = vld [vmem:[%s618 + $0x8] sm:$0xf]
      %v621 = vld [vmem:[%s618 + $0x10] sm:$0xf]
      %v622 = vld [vmem:[%s618 + $0x18] sm:$0xf]
      %v623 = vld [vmem:[%s618 + $0x20] sm:$0xf]
      %v624 = vld [vmem:[%s618 + $0x28] sm:$0xf]
      %v625 = vld [vmem:[%s618 + $0x30] sm:$0xf]
      %v626 = vld [vmem:[%s618 + $0x38] sm:$0xf]
      %s627 = scalar_lea.vmem %s1, 24
      %v628 = vld [vmem:[%s627] sm:$0xf]
      %v629 = vld [vmem:[%s627 + $0x4] sm:$0xf]
      %v638 = vunpack.c.l.b16 %v619
      %v639 = vunpack.c.l.b16 %v620
      %v640 = vunpack.c.l.b16 %v621
      %v641 = vunpack.c.l.b16 %v622
      %v642 = vunpack.c.l.b16 %v623
      %v643 = vunpack.c.l.b16 %v624
      %v644 = vunpack.c.l.b16 %v625
      %v645 = vunpack.c.l.b16 %v626
      %v646 = vpack.c.b16 %v639, %v638
      %v647 = vpack.c.b16 %v641, %v640
      %v648 = vpack.c.b16 %v643, %v642
      %v649 = vpack.c.b16 %v645, %v644
      %v652 = vunpack.c.l.b16 %v628
      %v653 = vunpack.c.l.b16 %v629
      %v654 = vpack.c.b16 %v653, %v652
      %v657 = vsel %vm380, %v646, 0
      %v660 = vsel %vm380, %v647, 0
      %v663 = vsel %vm380, %v648, 0
      %v666 = vsel %vm380, %v649, 0
      %668 = vmatpush.bf16.msra.mxu0 0
      %669 = vmatpush.bf16.msra.mxu0 0
      %670 = vmatpush.bf16.msra.mxu0 0
      %671 = vmatpush.bf16.msra.mxu0 0
      %672 = vmatpush.bf16.msra.mxu0 0
      %673 = vmatpush.bf16.msra.mxu0 0
      %674 = vmatpush.bf16.msra.mxu0 0
      %675 = vmatpush.bf16.msra.mxu0 %v654
      %676 = vmatmul.bf16.gmra.mxu0 %v657
      %v677 = vpop.f32.mrf.mxu0
      %v678 = vadd.f32 0.0, %v677
      %v679 = vpop.f32.mrf.mxu0
      %v680 = vadd.f32 0.0, %v679
      %681 = vmatmul.bf16.gmra.mxu0 %v660
      %v682 = vpop.f32.mrf.mxu0
      %v683 = vadd.f32 0.0, %v682
      %v684 = vpop.f32.mrf.mxu0
      %v685 = vadd.f32 0.0, %v684
      %686 = vmatmul.bf16.gmra.mxu0 %v663
      %v687 = vpop.f32.mrf.mxu0
      %v688 = vadd.f32 0.0, %v687
      %v689 = vpop.f32.mrf.mxu0
      %v690 = vadd.f32 0.0, %v689
      %691 = vmatmul.bf16.gmra.mxu0 %v666
      %v692 = vpop.f32.mrf.mxu0
      %v693 = vadd.f32 0.0, %v692
      %v694 = vpop.f32.mrf.mxu0
      %v695 = vadd.f32 0.0, %v694
      %696 = vdwg.mxu0
      %v697 = vadd.f32 %v610, %v678
      %v698 = vadd.f32 %v611, %v680
      %v699 = vadd.f32 %v612, %v683
      %v700 = vadd.f32 %v613, %v685
      %v701 = vadd.f32 %v614, %v688
      %v702 = vadd.f32 %v615, %v690
      %v703 = vadd.f32 %v616, %v693
      %v704 = vadd.f32 %v617, %v695
      %v705 = vld [vmem:[%s618] sm:$0xf]
      %v706 = vld [vmem:[%s618 + $0x4] sm:$0x1]
      %v707 = vld [vmem:[%s618 + $0x8] sm:$0xf]
      %v708 = vld [vmem:[%s618 + $0xc] sm:$0x1]
      %v709 = vld [vmem:[%s618 + $0x10] sm:$0xf]
      %v710 = vld [vmem:[%s618 + $0x14] sm:$0x1]
      %v711 = vld [vmem:[%s618 + $0x18] sm:$0xf]
      %v712 = vld [vmem:[%s618 + $0x1c] sm:$0x1]
      %v713 = vld [vmem:[%s618 + $0x20] sm:$0xf]
      %v714 = vld [vmem:[%s618 + $0x24] sm:$0x1]
      %v715 = vld [vmem:[%s618 + $0x28] sm:$0xf]
      %v716 = vld [vmem:[%s618 + $0x2c] sm:$0x1]
      %v717 = vld [vmem:[%s618 + $0x30] sm:$0xf]
      %v718 = vld [vmem:[%s618 + $0x34] sm:$0x1]
      %v719 = vld [vmem:[%s618 + $0x38] sm:$0xf]
      %v720 = vld [vmem:[%s618 + $0x3c] sm:$0x1]
      %v722 = vshrl.u32 %v705, 16
      %v724 = vrot.slane %v722, 4
      %v725 = vshll.u32 %v705, 16
      %v727 = vrot.slane %v725, 5
      %v728 = vor.u32 %v724, %v727
      %v729 = vrot.slane %v728, 4
      %v731 = vshll.u32 %v706, 16
      %v733 = vrot.slane %v731, 5
      %v734 = vsel %vm246, %v729, %v733
      %v736 = vshrl.u32 %v707, 16
      %v738 = vrot.slane %v736, 4
      %v739 = vshll.u32 %v707, 16
      %v741 = vrot.slane %v739, 5
      %v742 = vor.u32 %v738, %v741
      %v743 = vrot.slane %v742, 4
      %v745 = vshll.u32 %v708, 16
      %v747 = vrot.slane %v745, 5
      %v748 = vsel %vm246, %v743, %v747
      %v750 = vshrl.u32 %v709, 16
      %v752 = vrot.slane %v750, 4
      %v753 = vshll.u32 %v709, 16
      %v755 = vrot.slane %v753, 5
      %v756 = vor.u32 %v752, %v755
      %v757 = vrot.slane %v756, 4
      %v759 = vshll.u32 %v710, 16
      %v761 = vrot.slane %v759, 5
      %v762 = vsel %vm246, %v757, %v761
      %v764 = vshrl.u32 %v711, 16
      %v766 = vrot.slane %v764, 4
      %v767 = vshll.u32 %v711, 16
      %v769 = vrot.slane %v767, 5
      %v770 = vor.u32 %v766, %v769
      %v771 = vrot.slane %v770, 4
      %v773 = vshll.u32 %v712, 16
      %v775 = vrot.slane %v773, 5
      %v776 = vsel %vm246, %v771, %v775
      %v778 = vshrl.u32 %v713, 16
      %v780 = vrot.slane %v778, 4
      %v781 = vshll.u32 %v713, 16
      %v783 = vrot.slane %v781, 5
      %v784 = vor.u32 %v780, %v783
      %v785 = vrot.slane %v784, 4
      %v787 = vshll.u32 %v714, 16
      %v789 = vrot.slane %v787, 5
      %v790 = vsel %vm246, %v785, %v789
      %v792 = vshrl.u32 %v715, 16
      %v794 = vrot.slane %v792, 4
      %v795 = vshll.u32 %v715, 16
      %v797 = vrot.slane %v795, 5
      %v798 = vor.u32 %v794, %v797
      %v799 = vrot.slane %v798, 4
      %v801 = vshll.u32 %v716, 16
      %v803 = vrot.slane %v801, 5
      %v804 = vsel %vm246, %v799, %v803
      %v806 = vshrl.u32 %v717, 16
      %v808 = vrot.slane %v806, 4
      %v809 = vshll.u32 %v717, 16
      %v811 = vrot.slane %v809, 5
      %v812 = vor.u32 %v808, %v811
      %v813 = vrot.slane %v812, 4
      %v815 = vshll.u32 %v718, 16
      %v817 = vrot.slane %v815, 5
      %v818 = vsel %vm246, %v813, %v817
      %v820 = vshrl.u32 %v719, 16
      %v822 = vrot.slane %v820, 4
      %v823 = vshll.u32 %v719, 16
      %v825 = vrot.slane %v823, 5
      %v826 = vor.u32 %v822, %v825
      %v827 = vrot.slane %v826, 4
      %v829 = vshll.u32 %v720, 16
      %v831 = vrot.slane %v829, 5
      %v832 = vsel %vm246, %v827, %v831
      %s833 = scalar_lea.vmem %s1, 32
      %v834 = vld [vmem:[%s833] sm:$0xf]
      %v835 = vld [vmem:[%s833 + $0x4] sm:$0xf]
      %v836 = vunpack.c.l.b16 %v734
      %v837 = vunpack.c.l.b16 %v748
      %v838 = vunpack.c.l.b16 %v762
      %v839 = vunpack.c.l.b16 %v776
      %v840 = vunpack.c.l.b16 %v790
      %v841 = vunpack.c.l.b16 %v804
      %v842 = vunpack.c.l.b16 %v818
      %v843 = vunpack.c.l.b16 %v832
      %v844 = vpack.c.b16 %v837, %v836
      %v845 = vpack.c.b16 %v839, %v838
      %v846 = vpack.c.b16 %v841, %v840
      %v847 = vpack.c.b16 %v843, %v842
      %v850 = vunpack.c.l.b16 %v834
      %v851 = vunpack.c.l.b16 %v835
      %v852 = vpack.c.b16 %v851, %v850
      %v855 = vsel %vm380, %v844, 0
      %v858 = vsel %vm380, %v845, 0
      %v861 = vsel %vm380, %v846, 0
      %v864 = vsel %vm380, %v847, 0
      %866 = vmatpush.bf16.msra.mxu0 0
      %867 = vmatpush.bf16.msra.mxu0 0
      %868 = vmatpush.bf16.msra.mxu0 0
      %869 = vmatpush.bf16.msra.mxu0 0
      %870 = vmatpush.bf16.msra.mxu0 0
      %871 = vmatpush.bf16.msra.mxu0 0
      %872 = vmatpush.bf16.msra.mxu0 0
      %873 = vmatpush.bf16.msra.mxu0 %v852
      %874 = vmatmul.bf16.gmra.mxu0 %v855
      %v875 = vpop.f32.mrf.mxu0
      %v876 = vadd.f32 0.0, %v875
      %v877 = vpop.f32.mrf.mxu0
      %v878 = vadd.f32 0.0, %v877
      %879 = vmatmul.bf16.gmra.mxu0 %v858
      %v880 = vpop.f32.mrf.mxu0
      %v881 = vadd.f32 0.0, %v880
      %v882 = vpop.f32.mrf.mxu0
      %v883 = vadd.f32 0.0, %v882
      %884 = vmatmul.bf16.gmra.mxu0 %v861
      %v885 = vpop.f32.mrf.mxu0
      %v886 = vadd.f32 0.0, %v885
      %v887 = vpop.f32.mrf.mxu0
      %v888 = vadd.f32 0.0, %v887
      %889 = vmatmul.bf16.gmra.mxu0 %v864
      %v890 = vpop.f32.mrf.mxu0
      %v891 = vadd.f32 0.0, %v890
      %v892 = vpop.f32.mrf.mxu0
      %v893 = vadd.f32 0.0, %v892
      %894 = vdwg.mxu0
      %v895 = vadd.f32 %v697, %v876
      %v896 = vadd.f32 %v698, %v878
      %v897 = vadd.f32 %v699, %v881
      %v898 = vadd.f32 %v700, %v883
      %v899 = vadd.f32 %v701, %v886
      %v900 = vadd.f32 %v702, %v888
      %v901 = vadd.f32 %v703, %v891
      %v902 = vadd.f32 %v704, %v893
      %v903 = vld [vmem:[%s618] sm:$0xe]
      %v904 = vld [vmem:[%s618 + $0x8] sm:$0xe]
      %v905 = vld [vmem:[%s618 + $0x10] sm:$0xe]
      %v906 = vld [vmem:[%s618 + $0x18] sm:$0xe]
      %v907 = vld [vmem:[%s618 + $0x20] sm:$0xe]
      %v908 = vld [vmem:[%s618 + $0x28] sm:$0xe]
      %v909 = vld [vmem:[%s618 + $0x30] sm:$0xe]
      %v910 = vld [vmem:[%s618 + $0x38] sm:$0xe]
      %v927 = vrot.slane %v903, 5
      %v928 = vrot.slane %v927, 4
      %v929 = vrot.slane %v706, 5
      %v930 = vsel %vm515, %v928, %v929
      %v931 = vrot.slane %v904, 5
      %v932 = vrot.slane %v931, 4
      %v933 = vrot.slane %v708, 5
      %v934 = vsel %vm515, %v932, %v933
      %v935 = vrot.slane %v905, 5
      %v936 = vrot.slane %v935, 4
      %v937 = vrot.slane %v710, 5
      %v938 = vsel %vm515, %v936, %v937
      %v939 = vrot.slane %v906, 5
      %v940 = vrot.slane %v939, 4
      %v941 = vrot.slane %v712, 5
      %v942 = vsel %vm515, %v940, %v941
      %v943 = vrot.slane %v907, 5
      %v944 = vrot.slane %v943, 4
      %v945 = vrot.slane %v714, 5
      %v946 = vsel %vm515, %v944, %v945
      %v947 = vrot.slane %v908, 5
      %v948 = vrot.slane %v947, 4
      %v949 = vrot.slane %v716, 5
      %v950 = vsel %vm515, %v948, %v949
      %v951 = vrot.slane %v909, 5
      %v952 = vrot.slane %v951, 4
      %v953 = vrot.slane %v718, 5
      %v954 = vsel %vm515, %v952, %v953
      %v955 = vrot.slane %v910, 5
      %v956 = vrot.slane %v955, 4
      %v957 = vrot.slane %v720, 5
      %v958 = vsel %vm515, %v956, %v957
      %s959 = scalar_lea.vmem %s1, 40
      %v960 = vld [vmem:[%s959] sm:$0xf]
      %v961 = vld [vmem:[%s959 + $0x4] sm:$0xf]
      %v962 = vunpack.c.l.b16 %v930
      %v963 = vunpack.c.l.b16 %v934
      %v964 = vunpack.c.l.b16 %v938
      %v965 = vunpack.c.l.b16 %v942
      %v966 = vunpack.c.l.b16 %v946
      %v967 = vunpack.c.l.b16 %v950
      %v968 = vunpack.c.l.b16 %v954
      %v969 = vunpack.c.l.b16 %v958
      %v970 = vpack.c.b16 %v963, %v962
      %v971 = vpack.c.b16 %v965, %v964
      %v972 = vpack.c.b16 %v967, %v966
      %v973 = vpack.c.b16 %v969, %v968
      %v976 = vunpack.c.l.b16 %v960
      %v977 = vunpack.c.l.b16 %v961
      %v978 = vpack.c.b16 %v977, %v976
      %v981 = vsel %vm380, %v970, 0
      %v984 = vsel %vm380, %v971, 0
      %v987 = vsel %vm380, %v972, 0
      %v990 = vsel %vm380, %v973, 0
      %992 = vmatpush.bf16.msra.mxu0 0
      %993 = vmatpush.bf16.msra.mxu0 0
      %994 = vmatpush.bf16.msra.mxu0 0
      %995 = vmatpush.bf16.msra.mxu0 0
      %996 = vmatpush.bf16.msra.mxu0 0
      %997 = vmatpush.bf16.msra.mxu0 0
      %998 = vmatpush.bf16.msra.mxu0 0
      %999 = vmatpush.bf16.msra.mxu0 %v978
      %1000 = vmatmul.bf16.gmra.mxu0 %v981
      %v1001 = vpop.f32.mrf.mxu0
      %v1002 = vadd.f32 0.0, %v1001
      %v1003 = vpop.f32.mrf.mxu0
      %v1004 = vadd.f32 0.0, %v1003
      %1005 = vmatmul.bf16.gmra.mxu0 %v984
      %v1006 = vpop.f32.mrf.mxu0
      %v1007 = vadd.f32 0.0, %v1006
      %v1008 = vpop.f32.mrf.mxu0
      %v1009 = vadd.f32 0.0, %v1008
      %1010 = vmatmul.bf16.gmra.mxu0 %v987
      %v1011 = vpop.f32.mrf.mxu0
      %v1012 = vadd.f32 0.0, %v1011
      %v1013 = vpop.f32.mrf.mxu0
      %v1014 = vadd.f32 0.0, %v1013
      %1015 = vmatmul.bf16.gmra.mxu0 %v990
      %v1016 = vpop.f32.mrf.mxu0
      %v1017 = vadd.f32 0.0, %v1016
      %v1018 = vpop.f32.mrf.mxu0
      %v1019 = vadd.f32 0.0, %v1018
      %1020 = vdwg.mxu0
      %v1021 = vadd.f32 %v895, %v1002
      %v1022 = vadd.f32 %v896, %v1004
      %v1023 = vadd.f32 %v897, %v1007
      %v1024 = vadd.f32 %v898, %v1009
      %v1025 = vadd.f32 %v899, %v1012
      %v1026 = vadd.f32 %v900, %v1014
      %v1027 = vadd.f32 %v901, %v1017
      %v1028 = vadd.f32 %v902, %v1019
      %s1029 = scalar_lea.vmem %s219, 16
      %v1030 = vld [vmem:[%s1029] sm:$0xf]
      %v1031 = vld [vmem:[%s1029 + $0x8] sm:$0xf]
      %v1032 = vld [vmem:[%s1029 + $0x10] sm:$0xf]
      %v1033 = vld [vmem:[%s1029 + $0x18] sm:$0xf]
      %v1034 = vld [vmem:[%s1029 + $0x20] sm:$0xf]
      %v1035 = vld [vmem:[%s1029 + $0x28] sm:$0xf]
      %v1036 = vld [vmem:[%s1029 + $0x30] sm:$0xf]
      %v1037 = vld [vmem:[%s1029 + $0x38] sm:$0xf]
      %s1038 = scalar_lea.vmem %s1, 48
      %v1039 = vld [vmem:[%s1038] sm:$0xf]
      %v1040 = vld [vmem:[%s1038 + $0x4] sm:$0xf]
      %v1049 = vunpack.c.l.b16 %v1030
      %v1050 = vunpack.c.l.b16 %v1031
      %v1051 = vunpack.c.l.b16 %v1032
      %v1052 = vunpack.c.l.b16 %v1033
      %v1053 = vunpack.c.l.b16 %v1034
      %v1054 = vunpack.c.l.b16 %v1035
      %v1055 = vunpack.c.l.b16 %v1036
      %v1056 = vunpack.c.l.b16 %v1037
      %v1057 = vpack.c.b16 %v1050, %v1049
      %v1058 = vpack.c.b16 %v1052, %v1051
      %v1059 = vpack.c.b16 %v1054, %v1053
      %v1060 = vpack.c.b16 %v1056, %v1055
      %v1063 = vunpack.c.l.b16 %v1039
      %v1064 = vunpack.c.l.b16 %v1040
      %v1065 = vpack.c.b16 %v1064, %v1063
      %v1068 = vsel %vm380, %v1057, 0
      %v1071 = vsel %vm380, %v1058, 0
      %v1074 = vsel %vm380, %v1059, 0
      %v1077 = vsel %vm380, %v1060, 0
      %1079 = vmatpush.bf16.msra.mxu0 0
      %1080 = vmatpush.bf16.msra.mxu0 0
      %1081 = vmatpush.bf16.msra.mxu0 0
      %1082 = vmatpush.bf16.msra.mxu0 0
      %1083 = vmatpush.bf16.msra.mxu0 0
      %1084 = vmatpush.bf16.msra.mxu0 0
      %1085 = vmatpush.bf16.msra.mxu0 0
      %1086 = vmatpush.bf16.msra.mxu0 %v1065
      %1087 = vmatmul.bf16.gmra.mxu0 %v1068
      %v1088 = vpop.f32.mrf.mxu0
      %v1089 = vadd.f32 0.0, %v1088
      %v1090 = vpop.f32.mrf.mxu0
      %v1091 = vadd.f32 0.0, %v1090
      %1092 = vmatmul.bf16.gmra.mxu0 %v1071
      %v1093 = vpop.f32.mrf.mxu0
      %v1094 = vadd.f32 0.0, %v1093
      %v1095 = vpop.f32.mrf.mxu0
      %v1096 = vadd.f32 0.0, %v1095
      %1097 = vmatmul.bf16.gmra.mxu0 %v1074
      %v1098 = vpop.f32.mrf.mxu0
      %v1099 = vadd.f32 0.0, %v1098
      %v1100 = vpop.f32.mrf.mxu0
      %v1101 = vadd.f32 0.0, %v1100
      %1102 = vmatmul.bf16.gmra.mxu0 %v1077
      %v1103 = vpop.f32.mrf.mxu0
      %v1104 = vadd.f32 0.0, %v1103
      %v1105 = vpop.f32.mrf.mxu0
      %v1106 = vadd.f32 0.0, %v1105
      %1107 = vdwg.mxu0
      %v1108 = vadd.f32 %v1021, %v1089
      %v1109 = vadd.f32 %v1022, %v1091
      %v1110 = vadd.f32 %v1023, %v1094
      %v1111 = vadd.f32 %v1024, %v1096
      %v1112 = vadd.f32 %v1025, %v1099
      %v1113 = vadd.f32 %v1026, %v1101
      %v1114 = vadd.f32 %v1027, %v1104
      %v1115 = vadd.f32 %v1028, %v1106
      %v1116 = vld [vmem:[%s1029] sm:$0xf]
      %v1117 = vld [vmem:[%s1029 + $0x4] sm:$0x1]
      %v1118 = vld [vmem:[%s1029 + $0x8] sm:$0xf]
      %v1119 = vld [vmem:[%s1029 + $0xc] sm:$0x1]
      %v1120 = vld [vmem:[%s1029 + $0x10] sm:$0xf]
      %v1121 = vld [vmem:[%s1029 + $0x14] sm:$0x1]
      %v1122 = vld [vmem:[%s1029 + $0x18] sm:$0xf]
      %v1123 = vld [vmem:[%s1029 + $0x1c] sm:$0x1]
      %v1124 = vld [vmem:[%s1029 + $0x20] sm:$0xf]
      %v1125 = vld [vmem:[%s1029 + $0x24] sm:$0x1]
      %v1126 = vld [vmem:[%s1029 + $0x28] sm:$0xf]
      %v1127 = vld [vmem:[%s1029 + $0x2c] sm:$0x1]
      %v1128 = vld [vmem:[%s1029 + $0x30] sm:$0xf]
      %v1129 = vld [vmem:[%s1029 + $0x34] sm:$0x1]
      %v1130 = vld [vmem:[%s1029 + $0x38] sm:$0xf]
      %v1131 = vld [vmem:[%s1029 + $0x3c] sm:$0x1]
      %v1133 = vshrl.u32 %v1116, 16
      %v1135 = vrot.slane %v1133, 4
      %v1136 = vshll.u32 %v1116, 16
      %v1138 = vrot.slane %v1136, 5
      %v1139 = vor.u32 %v1135, %v1138
      %v1140 = vrot.slane %v1139, 4
      %v1142 = vshll.u32 %v1117, 16
      %v1144 = vrot.slane %v1142, 5
      %v1145 = vsel %vm246, %v1140, %v1144
      %v1147 = vshrl.u32 %v1118, 16
      %v1149 = vrot.slane %v1147, 4
      %v1150 = vshll.u32 %v1118, 16
      %v1152 = vrot.slane %v1150, 5
      %v1153 = vor.u32 %v1149, %v1152
      %v1154 = vrot.slane %v1153, 4
      %v1156 = vshll.u32 %v1119, 16
      %v1158 = vrot.slane %v1156, 5
      %v1159 = vsel %vm246, %v1154, %v1158
      %v1161 = vshrl.u32 %v1120, 16
      %v1163 = vrot.slane %v1161, 4
      %v1164 = vshll.u32 %v1120, 16
      %v1166 = vrot.slane %v1164, 5
      %v1167 = vor.u32 %v1163, %v1166
      %v1168 = vrot.slane %v1167, 4
      %v1170 = vshll.u32 %v1121, 16
      %v1172 = vrot.slane %v1170, 5
      %v1173 = vsel %vm246, %v1168, %v1172
      %v1175 = vshrl.u32 %v1122, 16
      %v1177 = vrot.slane %v1175, 4
      %v1178 = vshll.u32 %v1122, 16
      %v1180 = vrot.slane %v1178, 5
      %v1181 = vor.u32 %v1177, %v1180
      %v1182 = vrot.slane %v1181, 4
      %v1184 = vshll.u32 %v1123, 16
      %v1186 = vrot.slane %v1184, 5
      %v1187 = vsel %vm246, %v1182, %v1186
      %v1189 = vshrl.u32 %v1124, 16
      %v1191 = vrot.slane %v1189, 4
      %v1192 = vshll.u32 %v1124, 16
      %v1194 = vrot.slane %v1192, 5
      %v1195 = vor.u32 %v1191, %v1194
      %v1196 = vrot.slane %v1195, 4
      %v1198 = vshll.u32 %v1125, 16
      %v1200 = vrot.slane %v1198, 5
      %v1201 = vsel %vm246, %v1196, %v1200
      %v1203 = vshrl.u32 %v1126, 16
      %v1205 = vrot.slane %v1203, 4
      %v1206 = vshll.u32 %v1126, 16
      %v1208 = vrot.slane %v1206, 5
      %v1209 = vor.u32 %v1205, %v1208
      %v1210 = vrot.slane %v1209, 4
      %v1212 = vshll.u32 %v1127, 16
      %v1214 = vrot.slane %v1212, 5
      %v1215 = vsel %vm246, %v1210, %v1214
      %v1217 = vshrl.u32 %v1128, 16
      %v1219 = vrot.slane %v1217, 4
      %v1220 = vshll.u32 %v1128, 16
      %v1222 = vrot.slane %v1220, 5
      %v1223 = vor.u32 %v1219, %v1222
      %v1224 = vrot.slane %v1223, 4
      %v1226 = vshll.u32 %v1129, 16
      %v1228 = vrot.slane %v1226, 5
      %v1229 = vsel %vm246, %v1224, %v1228
      %v1231 = vshrl.u32 %v1130, 16
      %v1233 = vrot.slane %v1231, 4
      %v1234 = vshll.u32 %v1130, 16
      %v1236 = vrot.slane %v1234, 5
      %v1237 = vor.u32 %v1233, %v1236
      %v1238 = vrot.slane %v1237, 4
      %v1240 = vshll.u32 %v1131, 16
      %v1242 = vrot.slane %v1240, 5
      %v1243 = vsel %vm246, %v1238, %v1242
      %s1244 = scalar_lea.vmem %s1, 56
      %v1245 = vld [vmem:[%s1244] sm:$0xf]
      %v1246 = vld [vmem:[%s1244 + $0x4] sm:$0xf]
      %v1247 = vunpack.c.l.b16 %v1145
      %v1248 = vunpack.c.l.b16 %v1159
      %v1249 = vunpack.c.l.b16 %v1173
      %v1250 = vunpack.c.l.b16 %v1187
      %v1251 = vunpack.c.l.b16 %v1201
      %v1252 = vunpack.c.l.b16 %v1215
      %v1253 = vunpack.c.l.b16 %v1229
      %v1254 = vunpack.c.l.b16 %v1243
      %v1255 = vpack.c.b16 %v1248, %v1247
      %v1256 = vpack.c.b16 %v1250, %v1249
      %v1257 = vpack.c.b16 %v1252, %v1251
      %v1258 = vpack.c.b16 %v1254, %v1253
      %v1261 = vunpack.c.l.b16 %v1245
      %v1262 = vunpack.c.l.b16 %v1246
      %v1263 = vpack.c.b16 %v1262, %v1261
      %v1266 = vsel %vm380, %v1255, 0
      %v1269 = vsel %vm380, %v1256, 0
      %v1272 = vsel %vm380, %v1257, 0
      %v1275 = vsel %vm380, %v1258, 0
      %1277 = vmatpush.bf16.msra.mxu0 0
      %1278 = vmatpush.bf16.msra.mxu0 0
      %1279 = vmatpush.bf16.msra.mxu0 0
      %1280 = vmatpush.bf16.msra.mxu0 0
      %1281 = vmatpush.bf16.msra.mxu0 0
      %1282 = vmatpush.bf16.msra.mxu0 0
      %1283 = vmatpush.bf16.msra.mxu0 0
      %1284 = vmatpush.bf16.msra.mxu0 %v1263
      %1285 = vmatmul.bf16.gmra.mxu0 %v1266
      %v1286 = vpop.f32.mrf.mxu0
      %v1287 = vadd.f32 0.0, %v1286
      %v1288 = vpop.f32.mrf.mxu0
      %v1289 = vadd.f32 0.0, %v1288
      %1290 = vmatmul.bf16.gmra.mxu0 %v1269
      %v1291 = vpop.f32.mrf.mxu0
      %v1292 = vadd.f32 0.0, %v1291
      %v1293 = vpop.f32.mrf.mxu0
      %v1294 = vadd.f32 0.0, %v1293
      %1295 = vmatmul.bf16.gmra.mxu0 %v1272
      %v1296 = vpop.f32.mrf.mxu0
      %v1297 = vadd.f32 0.0, %v1296
      %v1298 = vpop.f32.mrf.mxu0
      %v1299 = vadd.f32 0.0, %v1298
      %1300 = vmatmul.bf16.gmra.mxu0 %v1275
      %v1301 = vpop.f32.mrf.mxu0
      %v1302 = vadd.f32 0.0, %v1301
      %v1303 = vpop.f32.mrf.mxu0
      %v1304 = vadd.f32 0.0, %v1303
      %1305 = vdwg.mxu0
      %v1306 = vadd.f32 %v1108, %v1287
      %v1307 = vadd.f32 %v1109, %v1289
      %v1308 = vadd.f32 %v1110, %v1292
      %v1309 = vadd.f32 %v1111, %v1294
      %v1310 = vadd.f32 %v1112, %v1297
      %v1311 = vadd.f32 %v1113, %v1299
      %v1312 = vadd.f32 %v1114, %v1302
      %v1313 = vadd.f32 %v1115, %v1304
      %v1314 = vld [vmem:[%s1029] sm:$0xe]
      %v1315 = vld [vmem:[%s1029 + $0x8] sm:$0xe]
      %v1316 = vld [vmem:[%s1029 + $0x10] sm:$0xe]
      %v1317 = vld [vmem:[%s1029 + $0x18] sm:$0xe]
      %v1318 = vld [vmem:[%s1029 + $0x20] sm:$0xe]
      %v1319 = vld [vmem:[%s1029 + $0x28] sm:$0xe]
      %v1320 = vld [vmem:[%s1029 + $0x30] sm:$0xe]
      %v1321 = vld [vmem:[%s1029 + $0x38] sm:$0xe]
      %v1338 = vrot.slane %v1314, 5
      %v1339 = vrot.slane %v1338, 4
      %v1340 = vrot.slane %v1117, 5
      %v1341 = vsel %vm515, %v1339, %v1340
      %v1342 = vrot.slane %v1315, 5
      %v1343 = vrot.slane %v1342, 4
      %v1344 = vrot.slane %v1119, 5
      %v1345 = vsel %vm515, %v1343, %v1344
      %v1346 = vrot.slane %v1316, 5
      %v1347 = vrot.slane %v1346, 4
      %v1348 = vrot.slane %v1121, 5
      %v1349 = vsel %vm515, %v1347, %v1348
      %v1350 = vrot.slane %v1317, 5
      %v1351 = vrot.slane %v1350, 4
      %v1352 = vrot.slane %v1123, 5
      %v1353 = vsel %vm515, %v1351, %v1352
      %v1354 = vrot.slane %v1318, 5
      %v1355 = vrot.slane %v1354, 4
      %v1356 = vrot.slane %v1125, 5
      %v1357 = vsel %vm515, %v1355, %v1356
      %v1358 = vrot.slane %v1319, 5
      %v1359 = vrot.slane %v1358, 4
      %v1360 = vrot.slane %v1127, 5
      %v1361 = vsel %vm515, %v1359, %v1360
      %v1362 = vrot.slane %v1320, 5
      %v1363 = vrot.slane %v1362, 4
      %v1364 = vrot.slane %v1129, 5
      %v1365 = vsel %vm515, %v1363, %v1364
      %v1366 = vrot.slane %v1321, 5
      %v1367 = vrot.slane %v1366, 4
      %v1368 = vrot.slane %v1131, 5
      %v1369 = vsel %vm515, %v1367, %v1368
      %s1370 = scalar_lea.vmem %s1, 64
      %v1371 = vld [vmem:[%s1370] sm:$0xf]
      %v1372 = vld [vmem:[%s1370 + $0x4] sm:$0xf]
      %v1373 = vunpack.c.l.b16 %v1341
      %v1374 = vunpack.c.l.b16 %v1345
      %v1375 = vunpack.c.l.b16 %v1349
      %v1376 = vunpack.c.l.b16 %v1353
      %v1377 = vunpack.c.l.b16 %v1357
      %v1378 = vunpack.c.l.b16 %v1361
      %v1379 = vunpack.c.l.b16 %v1365
      %v1380 = vunpack.c.l.b16 %v1369
      %v1381 = vpack.c.b16 %v1374, %v1373
      %v1382 = vpack.c.b16 %v1376, %v1375
      %v1383 = vpack.c.b16 %v1378, %v1377
      %v1384 = vpack.c.b16 %v1380, %v1379
      %v1387 = vunpack.c.l.b16 %v1371
      %v1388 = vunpack.c.l.b16 %v1372
      %v1389 = vpack.c.b16 %v1388, %v1387
      %v1392 = vsel %vm380, %v1381, 0
      %v1395 = vsel %vm380, %v1382, 0
      %v1398 = vsel %vm380, %v1383, 0
      %v1401 = vsel %vm380, %v1384, 0
      %1403 = vmatpush.bf16.msra.mxu0 0
      %1404 = vmatpush.bf16.msra.mxu0 0
      %1405 = vmatpush.bf16.msra.mxu0 0
      %1406 = vmatpush.bf16.msra.mxu0 0
      %1407 = vmatpush.bf16.msra.mxu0 0
      %1408 = vmatpush.bf16.msra.mxu0 0
      %1409 = vmatpush.bf16.msra.mxu0 0
      %1410 = vmatpush.bf16.msra.mxu0 %v1389
      %1411 = vmatmul.bf16.gmra.mxu0 %v1392
      %v1412 = vpop.f32.mrf.mxu0
      %v1413 = vadd.f32 0.0, %v1412
      %v1414 = vpop.f32.mrf.mxu0
      %v1415 = vadd.f32 0.0, %v1414
      %1416 = vmatmul.bf16.gmra.mxu0 %v1395
      %v1417 = vpop.f32.mrf.mxu0
      %v1418 = vadd.f32 0.0, %v1417
      %v1419 = vpop.f32.mrf.mxu0
      %v1420 = vadd.f32 0.0, %v1419
      %1421 = vmatmul.bf16.gmra.mxu0 %v1398
      %v1422 = vpop.f32.mrf.mxu0
      %v1423 = vadd.f32 0.0, %v1422
      %v1424 = vpop.f32.mrf.mxu0
      %v1425 = vadd.f32 0.0, %v1424
      %1426 = vmatmul.bf16.gmra.mxu0 %v1401
      %v1427 = vpop.f32.mrf.mxu0
      %v1428 = vadd.f32 0.0, %v1427
      %v1429 = vpop.f32.mrf.mxu0
      %v1430 = vadd.f32 0.0, %v1429
      %1431 = vdwg.mxu0
      %v1432 = vadd.f32 %v1306, %v1413
      %v1433 = vadd.f32 %v1307, %v1415
      %v1434 = vadd.f32 %v1308, %v1418
      %v1435 = vadd.f32 %v1309, %v1420
      %v1436 = vadd.f32 %v1310, %v1423
      %v1437 = vadd.f32 %v1311, %v1425
      %v1438 = vadd.f32 %v1312, %v1428
      %v1439 = vadd.f32 %v1313, %v1430
      %v1440 = vld [vmem:[%s2] sm:$0x1]
      %v1442 = vperm.slane %v1440, 0
      %v1444 = vadd.f32 %v1432, %v1442
      %v1445 = vadd.f32 %v1433, %v1442
      %v1446 = vadd.f32 %v1434, %v1442
      %v1447 = vadd.f32 %v1435, %v1442
      %v1448 = vadd.f32 %v1436, %v1442
      %v1449 = vadd.f32 %v1437, %v1442
      %v1450 = vadd.f32 %v1438, %v1442
      %v1451 = vadd.f32 %v1439, %v1442
      %v1452 = vmax.f32 %v1444, 0.0
      %v1453 = vmax.f32 %v1445, 0.0
      %v1454 = vmax.f32 %v1446, 0.0
      %v1455 = vmax.f32 %v1447, 0.0
      %v1456 = vmax.f32 %v1448, 0.0
      %v1457 = vmax.f32 %v1449, 0.0
      %v1458 = vmax.f32 %v1450, 0.0
      %v1459 = vmax.f32 %v1451, 0.0
      %v1460 = vpack.c.bf16 %v1453, %v1452
      %v1461 = vpack.c.bf16 %v1455, %v1454
      %v1462 = vpack.c.bf16 %v1457, %v1456
      %v1463 = vpack.c.bf16 %v1459, %v1458
      %v1464 = vld [vmem:[%s3] sm:$0xf]
      %v1465 = vld [vmem:[%s3 + $0x4] sm:$0xf]
      %v1466 = vld [vmem:[%s4] sm:$0x1]
      %v1468 = vperm.slane %v1466, 0
      %v1472 = vunpack.c.l.b16 %v1464
      %v1473 = vunpack.c.l.b16 %v1465
      %v1474 = vpack.c.b16 %v1473, %v1472
      %v1477 = vsel %vm380, %v1460, 0
      %v1480 = vsel %vm380, %v1461, 0
      %v1483 = vsel %vm380, %v1462, 0
      %v1486 = vsel %vm380, %v1463, 0
      %1488 = vmatpush.bf16.msra.mxu0 0
      %1489 = vmatpush.bf16.msra.mxu0 0
      %1490 = vmatpush.bf16.msra.mxu0 0
      %1491 = vmatpush.bf16.msra.mxu0 0
      %1492 = vmatpush.bf16.msra.mxu0 0
      %1493 = vmatpush.bf16.msra.mxu0 0
      %1494 = vmatpush.bf16.msra.mxu0 0
      %1495 = vmatpush.bf16.msra.mxu0 %v1474
      %1496 = vmatmul.bf16.gmra.mxu0 %v1477
      %v1497 = vpop.f32.mrf.mxu0
      %v1498 = vadd.f32 %v1468, %v1497
      %v1499 = vpop.f32.mrf.mxu0
      %v1500 = vadd.f32 %v1468, %v1499
      %1501 = vmatmul.bf16.gmra.mxu0 %v1480
      %v1502 = vpop.f32.mrf.mxu0
      %v1503 = vadd.f32 %v1468, %v1502
      %v1504 = vpop.f32.mrf.mxu0
      %v1505 = vadd.f32 %v1468, %v1504
      %1506 = vmatmul.bf16.gmra.mxu0 %v1483
      %v1507 = vpop.f32.mrf.mxu0
      %v1508 = vadd.f32 %v1468, %v1507
      %v1509 = vpop.f32.mrf.mxu0
      %v1510 = vadd.f32 %v1468, %v1509
      %1511 = vmatmul.bf16.gmra.mxu0 %v1486
      %v1512 = vpop.f32.mrf.mxu0
      %v1513 = vadd.f32 %v1468, %v1512
      %v1514 = vpop.f32.mrf.mxu0
      %v1515 = vadd.f32 %v1468, %v1514
      %1516 = vdwg.mxu0
      %vm1517 = vcmask 146432
      %1518 = vst.msk [vmem:[%s224] sm:$0xff] %vm1517, %v1498
      %1519 = vst.msk [vmem:[%s224 + $0x8] sm:$0xff] %vm1517, %v1500
      %1520 = vst.msk [vmem:[%s224 + $0x10] sm:$0xff] %vm1517, %v1503
      %1521 = vst.msk [vmem:[%s224 + $0x18] sm:$0xff] %vm1517, %v1505
      %1522 = vst.msk [vmem:[%s224 + $0x20] sm:$0xff] %vm1517, %v1508
      %1523 = vst.msk [vmem:[%s224 + $0x28] sm:$0xff] %vm1517, %v1510
      %1524 = vst.msk [vmem:[%s224 + $0x30] sm:$0xff] %vm1517, %v1513
      %1525 = vst.msk [vmem:[%s224 + $0x38] sm:$0xff] %vm1517, %v1515
      %p1526 = scmp.lt.s32.totalorder %s16, 1
      %s1527 = scalar_select %p1526, %s16, 1
      %s1528 = smul.addr %s1527, 8
      %s1529 = smul.addr %s1528, 8
      %s1530 = scalar_lea.vmem %s5, %s1529
      // Predicated region
      $region41: #{rfcn_forward.4} parent=39 // pred_check
        %p1531 = pneg %p144
      $region42: #{rfcn_forward.4} parent=39 // pred_check_branch
        %1533 = sbr.rel (%p1531) target = $region44
      $region43: #{rfcn_forward.4} parent=39 // pred_region
        _
      $region44: #{rfcn_forward.4} parent=39 // pred_fallthru
        _
    $region40: #{rfcn_forward.4} parent=5 // pred_fallthru
      _
    %p1534 = scmp.le.s32.totalorder 2, %s11
    // Predicated region
    $region45: #{rfcn_forward.4} parent=5 // pred_check
      %p1535 = pneg %p1534
    $region46: #{rfcn_forward.4} parent=5 // pred_check_branch
      %1537 = sbr.rel (%p1535) target = $region48
    $region47: #{rfcn_forward.4} parent=5 // pred_region
      %s1538 = ssub.s32 %s11, 2
      // Predicated region
      $region49: #{rfcn_forward.4} parent=47 // pred_check
        %p1539 = pneg %p150
      $region50: #{rfcn_forward.4} parent=47 // pred_check_branch
        %1541 = sbr.rel (%p1539) target = $region52
      $region51: #{rfcn_forward.4} parent=47 // pred_region
        %p1542 = scmp.lt.s32.totalorder %s17, 1
        %s1543 = scalar_select %p1542, %s17, 1
        %s1544 = smul.addr %s1543, 8
        %s1545 = smul.addr %s1544, 8
        %s1546 = scalar_lea.vmem %s5, %s1545
      $region52: #{rfcn_forward.4} parent=47 // pred_fallthru
        _
    $region48: #{rfcn_forward.4} parent=5 // pred_fallthru
      _
  $region6: #{rfcn_forward.4} parent=0 // loop_footer
    %s15 = sadd.s32 1, %s11
  $region7: #{rfcn_forward.4} parent=0 // loop_footer_branch
    %10 = sbr.rel target = $region3
  $region8: #{rfcn_forward.4} parent=0 // loop_exit
    _

// kernel: tile.6
$region0: #{tile.6}
  #allocation0 [shape = 's32[1]{0}', space=sflag, size = 0x4, scoped, tag = 'scoped memory for tile.6']
  %s0 = inlined_call_operand.vmem [shape: f32[4], index: 0, kind: input, shape index: {}]
  %s1 = inlined_call_operand.vmem [shape: f32[3,4], index: 1, kind: output, shape index: {}]
  // Predicated region
  $region2: #{tile.6} parent=0 // pred_check
    _
  $region3: #{tile.6} parent=0 // pred_check_branch
    %3 = sbr.rel (0) target = $region5
  $region4: #{tile.6} parent=0 // pred_region
    _
  $region5: #{tile.6} parent=0 // pred_fallthru
    _
  %v4 = vld [vmem:[%s0] ss:$0 sm:$0xff]
  %5 = vst [vmem:[%s1] sm:$0xf] %v4

// kernel: tile.7
$region0: #{tile.7}
  %s0 = inlined_call_operand.vmem [shape: f32[3,4], index: 0, kind: input, shape index: {}]
  %s1 = inlined_call_operand.vmem [shape: f32[12], index: 1, kind: output, shape index: {}]
  $region1: #{tile.7} parent=0
    #allocation0 [shape = 'u8[4096]{0}', space=vmem, size = 0x1000, scoped, tag = 'scoped mem for output reshape']
    #allocation1 [shape = 'u8[4096]{0}', space=vmem, size = 0x1000, scoped, tag = 'scoped mem for input reshape']
    %s3 = ssub.s32 16, 1
    %v4 = vld [vmem:[%s0] sm:%s3]
    %5 = vst [vmem:[#allocation1] sm:%s3] %v4
    %v6 = vld [vmem:[#allocation1] sm:$0x1]
    %vm7 = vcmask 31744
    %8 = vst.msk [vmem:[#allocation0] sm:$0x1] %vm7, %v6
    %s9 = scalar_lea.vmem [#allocation1], 2
    %v10 = vld [vmem:[%s9] sm:$0x1]
    %11 = vrot.lane.b32.xlu0 %v10, 8
    %v12 = vpop.permute.xlu0 %11
    %vm13 = vcmask 97344
    %14 = vst.msk [vmem:[#allocation0] sm:$0x1] %vm13, %v12
    %s15 = scalar_lea.vmem [#allocation1], 1
    %v16 = vld [vmem:[%s15] sm:$0x1]
    %17 = vrot.lane.b32.xlu0 %v16, 4
    %v18 = vpop.permute.xlu0 %17
    %vm19 = vcmask 64544
    %20 = vst.msk [vmem:[#allocation0] sm:$0x1] %vm19, %v18
    %s22 = ssub.s32 2, 1
    %v23 = vld [vmem:[#allocation0] sm:%s22]
    %s25 = ssub.s32 2, 1
    %26 = vst [vmem:[%s1] sm:%s25] %v23

// kernel: rfcn_forward.5
$region0: #{rfcn_forward.5}
  #allocation0 [shape = 'u32[]', space=smem, size = 0x4, offset = 0x4, fixed_abs, tag = 'smem constant byte address 0x4 - core index']
  #allocation1 [shape = 'u32[72,128]{1,0:T(1,128)}', space=vmem, size = 0x9000, scoped, tag = 'internal scratch']
  #allocation2 [shape = 'f32[16,15]{1,0:T(8,128)}', space=vmem, size = 0x2000, scoped, tag = 'scratch operand']
  %s0 = inlined_call_operand.vmem [shape: bf16[2,16,576], index: 0, kind: input, shape index: {}]
  %s1 = inlined_call_operand.vmem [shape: bf16[2,576,15], index: 1, kind: input, shape index: {}]
  %s2 = inlined_call_operand.vmem [shape: f32[1,15], index: 2, kind: input, shape index: {}]
  %s3 = inlined_call_operand.vmem [shape: f32[1,15], index: 3, kind: input, shape index: {}]
  %s4 = inlined_call_operand.vmem [shape: f32[2,16,15], index: 4, kind: output, shape index: {}]
  %s5 = sld [smem:[#allocation0]]
  $region57: #{rfcn_forward.5} parent=0
    _
  %s7 = ssub.s32 1, %s5
  %s8 = scalar_select 0, %s7, %s5
  loop: start=0, step=1, limit=4
  $region2: #{rfcn_forward.5} parent=0 // loop_pre_header
    _
  $region3: #{rfcn_forward.5} parent=0 // loop_header
    %s10 = sphi 0, %s14
    %p11 = scmp.ge.s32.totalorder %s10, 4
    %s17 = sphi 0, %s29
    %s18 = sphi 0, %s25
    %s19 = sphi 0, %s17
    %s20 = sphi 0, %s18
    %s21 = sphi 0, %s19
    %s22 = sphi 0, %s20
    %s34 = sphi 0, %s36
    %s37 = sphi 0, %s34
    %s38 = sphi 0, %s37
    %s54 = sphi 0, %s38
    %s62 = sphi 0, %s64
    %s65 = sphi 0, %s62
    %s66 = sphi 0, %s65
    %s82 = sphi 0, %s66
    %s86 = sphi 0, %s86
    %s88 = sphi 0, %s86
    %s89 = sphi 0, %s88
    %s103 = sphi 0, %s89
    %s107 = sphi 0, %s107
    %s109 = sphi 0, %s107
    %s110 = sphi 0, %s109
    %s124 = sphi 0, %s110
    %s130 = sphi 0, %s132
    %s133 = sphi 0, %s130
    %s134 = sphi 0, %s133
    %s150 = sphi 0, %s134
  $region4: #{rfcn_forward.5} parent=0 // loop_header_branch
    %13 = sbr.rel (%p11) target = $region8
  $region5: #{rfcn_forward.5} parent=0 // loop_body
    %s15 = ssub.s32 %s10, 1
    %s16 = ssub.s32 %s10, 2
    %s23 = sadd.s32 1, %s18
    %p24 = scmp.ge.s32.totalorder %s23, 1
    %s25 = scalar_select %p24, 0, %s23
    %s26 = sadd.s32 1, %s17
    %s27 = scalar_select %p24, %s26, %s17
    %p28 = scmp.ge.s32.totalorder %s27, 2
    %s29 = scalar_select %p28, 0, %s27
    %s30 = ssub.s32 %s17, %s29
    %s31 = ssub.s32 %s18, %s25
    %s32 = sor.u32 %s30, %s31
    %p33 = scmp.eq.s32.totalorder %s32, 0
    %s35 = sadd.s32 %s34, 1
    %s36 = scalar_select %p33, %s34, %s35
    %p39 = pneg %p33
    %p40 = scmp.eq.s32.totalorder %s10, 1
    %p41 = por %p39, %p40
    %p42 = scmp.ne.s32.totalorder %s34, %s37
    %p43 = scmp.eq.s32.totalorder %s10, 0
    %p44 = por %p42, %p43
    %p45 = scmp.ne.s32.totalorder %s34, %s37
    %p46 = scmp.eq.s32.totalorder %s15, 1
    %p47 = por %p45, %p46
    %p48 = scmp.ne.s32.totalorder %s37, %s38
    %p49 = scmp.eq.s32.totalorder %s15, 0
    %p50 = por %p48, %p49
    %p51 = scmp.ne.s32.totalorder %s37, %s38
    %p52 = scmp.eq.s32.totalorder %s16, 1
    %p53 = por %p51, %p52
    %p55 = scmp.ne.s32.totalorder %s38, %s54
    %p56 = scmp.eq.s32.totalorder %s16, 0
    %p57 = por %p55, %p56
    %s58 = ssub.s32 %s17, %s29
    %s59 = ssub.s32 %s18, %s25
    %s60 = sor.u32 %s58, %s59
    %p61 = scmp.eq.s32.totalorder %s60, 0
    %s63 = sadd.s32 %s62, 1
    %s64 = scalar_select %p61, %s62, %s63
    %p67 = pneg %p61
    %p68 = scmp.eq.s32.totalorder %s10, 1
    %p69 = por %p67, %p68
    %p70 = scmp.ne.s32.totalorder %s62, %s65
    %p71 = scmp.eq.s32.totalorder %s10, 0
    %p72 = por %p70, %p71
    %p73 = scmp.ne.s32.totalorder %s62, %s65
    %p74 = scmp.eq.s32.totalorder %s15, 1
    %p75 = por %p73, %p74
    %p76 = scmp.ne.s32.totalorder %s65, %s66
    %p77 = scmp.eq.s32.totalorder %s15, 0
    %p78 = por %p76, %p77
    %p79 = scmp.ne.s32.totalorder %s65, %s66
    %p80 = scmp.eq.s32.totalorder %s16, 1
    %p81 = por %p79, %p80
    %p83 = scmp.ne.s32.totalorder %s66, %s82
    %p84 = scmp.eq.s32.totalorder %s16, 0
    %p85 = por %p83, %p84
    %s87 = sadd.s32 %s86, 1
    %p90 = scmp.eq.s32.totalorder %s10, 1
    %p91 = scmp.ne.s32.totalorder %s86, %s88
    %p92 = scmp.eq.s32.totalorder %s10, 0
    %p93 = por %p91, %p92
    %p94 = scmp.ne.s32.totalorder %s86, %s88
    %p95 = scmp.eq.s32.totalorder %s15, 1
    %p96 = por %p94, %p95
    %p97 = scmp.ne.s32.totalorder %s88, %s89
    %p98 = scmp.eq.s32.totalorder %s15, 0
    %p99 = por %p97, %p98
    %p100 = scmp.ne.s32.totalorder %s88, %s89
    %p101 = scmp.eq.s32.totalorder %s16, 1
    %p102 = por %p100, %p101
    %p104 = scmp.ne.s32.totalorder %s89, %s103
    %p105 = scmp.eq.s32.totalorder %s16, 0
    %p106 = por %p104, %p105
    %s108 = sadd.s32 %s107, 1
    %p111 = scmp.eq.s32.totalorder %s10, 1
    %p112 = scmp.ne.s32.totalorder %s107, %s109
    %p113 = scmp.eq.s32.totalorder %s10, 0
    %p114 = por %p112, %p113
    %p115 = scmp.ne.s32.totalorder %s107, %s109
    %p116 = scmp.eq.s32.totalorder %s15, 1
    %p117 = por %p115, %p116
    %p118 = scmp.ne.s32.totalorder %s109, %s110
    %p119 = scmp.eq.s32.totalorder %s15, 0
    %p120 = por %p118, %p119
    %p121 = scmp.ne.s32.totalorder %s109, %s110
    %p122 = scmp.eq.s32.totalorder %s16, 1
    %p123 = por %p121, %p122
    %p125 = scmp.ne.s32.totalorder %s110, %s124
    %p126 = scmp.eq.s32.totalorder %s16, 0
    %p127 = por %p125, %p126
    %s128 = ssub.s32 %s17, %s29
    %p129 = scmp.eq.s32.totalorder %s128, 0
    %s131 = sadd.s32 %s130, 1
    %s132 = scalar_select %p129, %s130, %s131
    %p135 = pneg %p129
    %p136 = scmp.eq.s32.totalorder %s10, 1
    %p137 = por %p135, %p136
    %p138 = scmp.ne.s32.totalorder %s130, %s133
    %p139 = scmp.eq.s32.totalorder %s10, 0
    %p140 = por %p138, %p139
    %p141 = scmp.ne.s32.totalorder %s130, %s133
    %p142 = scmp.eq.s32.totalorder %s15, 1
    %p143 = por %p141, %p142
    %p144 = scmp.ne.s32.totalorder %s133, %s134
    %p145 = scmp.eq.s32.totalorder %s15, 0
    %p146 = por %p144, %p145
    %p147 = scmp.ne.s32.totalorder %s133, %s134
    %p148 = scmp.eq.s32.totalorder %s16, 1
    %p149 = por %p147, %p148
    %p151 = scmp.ne.s32.totalorder %s134, %s150
    %p152 = scmp.eq.s32.totalorder %s16, 0
    %p153 = por %p151, %p152
    %p154 = scmp.le.s32.totalorder 1, %s10
    %p155 = scmp.lt.s32.totalorder %s10, 3
    %p156 = pnand %p154, %p155
    %p157 = pneg %p156
    // Predicated region
    $region9: #{rfcn_forward.5} parent=5 // pred_check
      _
    $region10: #{rfcn_forward.5} parent=5 // pred_check_branch
      %159 = sbr.rel (%p156) target = $region12
    $region11: #{rfcn_forward.5} parent=5 // pred_region
      %s160 = ssub.s32 %s10, 1
      // Predicated region
      $region13: #{rfcn_forward.5} parent=11 // pred_check
        %p161 = pneg %p99
      $region14: #{rfcn_forward.5} parent=11 // pred_check_branch
        %163 = sbr.rel (%p161) target = $region16
      $region15: #{rfcn_forward.5} parent=11 // pred_region
        _
      $region16: #{rfcn_forward.5} parent=11 // pred_fallthru
        _
      // Predicated region
      $region17: #{rfcn_forward.5} parent=11 // pred_check
        %p164 = pneg %p120
      $region18: #{rfcn_forward.5} parent=11 // pred_check_branch
        %166 = sbr.rel (%p164) target = $region20
      $region19: #{rfcn_forward.5} parent=11 // pred_region
        _
      $region20: #{rfcn_forward.5} parent=11 // pred_fallthru
        _
    $region12: #{rfcn_forward.5} parent=5 // pred_fallthru
      _
    %p167 = scmp.lt.s32.totalorder %s10, 2
    // Predicated region
    $region21: #{rfcn_forward.5} parent=5 // pred_check
      %p168 = pneg %p167
    $region22: #{rfcn_forward.5} parent=5 // pred_check_branch
      %170 = sbr.rel (%p168) target = $region24
    $region23: #{rfcn_forward.5} parent=5 // pred_region
      // Predicated region
      $region25: #{rfcn_forward.5} parent=23 // pred_check
        %p171 = pneg %p44
      $region26: #{rfcn_forward.5} parent=23 // pred_check_branch
        %173 = sbr.rel (%p171) target = $region28
      $region27: #{rfcn_forward.5} parent=23 // pred_region
        %s174 = smul.u32 5, %s18
        %p175 = scmp.lt.s32.totalorder %s17, 1
        %s176 = scalar_select %p175, %s17, 1
        %p177 = scmp.lt.s32.totalorder %s174, 4
        %s178 = scalar_select %p177, %s174, 4
        %s179 = smul.addr %s176, 10
        %s180 = sadd.s32 %s178, %s179
        %s181 = smul.addr %s180, 4
        %s182 = scalar_lea.vmem %s0, %s181
        %s183 = smul.u32 5, %s18
      $region28: #{rfcn_forward.5} parent=23 // pred_fallthru
        _
      // Predicated region
      $region29: #{rfcn_forward.5} parent=23 // pred_check
        %p184 = pneg %p72
      $region30: #{rfcn_forward.5} parent=23 // pred_check_branch
        %186 = sbr.rel (%p184) target = $region32
      $region31: #{rfcn_forward.5} parent=23 // pred_region
        %s187 = smul.u32 72, %s18
        %p188 = scmp.lt.s32.totalorder %s17, 1
        %s189 = scalar_select %p188, %s17, 1
        %p190 = scmp.lt.s32.totalorder %s187, 71
        %s191 = scalar_select %p190, %s187, 71
        %s192 = smul.addr %s189, 72
        %s193 = sadd.s32 %s191, %s192
        %s194 = smul.addr %s193, 4
        %s195 = scalar_lea.vmem %s1, %s194
        %s196 = smul.u32 72, %s18
      $region32: #{rfcn_forward.5} parent=23 // pred_fallthru
        _
    $region24: #{rfcn_forward.5} parent=5 // pred_fallthru
      _
    %p197 = scmp.le.s32.totalorder 1, %s10
    %p198 = scmp.lt.s32.totalorder %s10, 3
    %p199 = pnand %p197, %p198
    %p200 = pneg %p199
    // Predicated region
    $region33: #{rfcn_forward.5} parent=5 // pred_check
      _
    $region34: #{rfcn_forward.5} parent=5 // pred_check_branch
      %202 = sbr.rel (%p199) target = $region36
    $region35: #{rfcn_forward.5} parent=5 // pred_region
      %s203 = ssub.s32 %s10, 1
      %s204 = smul.u32 5, %s20
      %p205 = scmp.lt.s32.totalorder %s19, 1
      %s206 = scalar_select %p205, %s19, 1
      %p207 = scmp.lt.s32.totalorder %s204, 4
      %s208 = scalar_select %p207, %s204, 4
      %s209 = smul.addr %s206, 10
      %s210 = sadd.s32 %s208, %s209
      %s211 = smul.addr %s210, 4
      %s212 = scalar_lea.vmem %s0, %s211
      %p213 = pneg %p50
      %p214 = pneg %p47
      %s215 = smul.u32 72, %s20
      %p216 = scmp.lt.s32.totalorder %s19, 1
      %s217 = scalar_select %p216, %s19, 1
      %p218 = scmp.lt.s32.totalorder %s215, 71
      %s219 = scalar_select %p218, %s215, 71
      %s220 = smul.addr %s217, 72
      %s221 = sadd.s32 %s219, %s220
      %s222 = smul.addr %s221, 4
      %s223 = scalar_lea.vmem %s1, %s222
      %p224 = pneg %p78
      %p225 = pneg %p75
      %p226 = pneg %p99
      %p227 = pneg %p96
      %p228 = pneg %p120
      %p229 = pneg %p117
      %p230 = pneg %p146
      %p231 = pneg %p143
      %p232 = scmp.lt.s32.totalorder %s19, 1
      %s233 = scalar_select %p232, %s19, 1
      %s234 = smul.addr %s233, 2
      %s235 = smul.addr %s234, 8
      %s236 = scalar_lea.vmem %s4, %s235
      %s237 = smul.u32 5, %s20
      %p238 = scmp.lt.s32.totalorder %s19, 1
      %s239 = scalar_select %p238, %s19, 1
      %p240 = scmp.lt.s32.totalorder %s237, 4
      %s241 = scalar_select %p240, %s237, 4
      %s242 = smul.addr %s239, 10
      %s243 = sadd.s32 %s241, %s242
      %s244 = smul.addr %s243, 4
      %s245 = scalar_lea.vmem %s0, %s244
      %s246 = smul.u32 5, %s20
      %s247 = smul.u32 72, %s20
      %p248 = scmp.lt.s32.totalorder %s19, 1
      %s249 = scalar_select %p248, %s19, 1
      %p250 = scmp.lt.s32.totalorder %s247, 71
      %s251 = scalar_select %p250, %s247, 71
      %s252 = smul.addr %s249, 72
      %s253 = sadd.s32 %s251, %s252
      %s254 = smul.addr %s253, 4
      %s255 = scalar_lea.vmem %s1, %s254
      %s256 = smul.u32 72, %s20
      %p257 = scmp.lt.s32.totalorder %s19, 1
      %s258 = scalar_select %p257, %s19, 1
      %s259 = smul.addr %s258, 2
      %s260 = smul.addr %s259, 8
      %s261 = scalar_lea.vmem %s4, %s260
      %p263 = scmp.eq.s32.totalorder %s20, 0
      // Predicated region
      $region37: #{rfcn_forward.5} parent=35 // pred_check
        %p264 = pneg %p263
      $region38: #{rfcn_forward.5} parent=35 // pred_check_branch
        %266 = sbr.rel (%p264) target = $region40
      $region39: #{rfcn_forward.5} parent=35 // pred_region
        %vm267 = vcmask 121856
        %268 = vst.msk [vmem:[#allocation2] sm:$0xff] %vm267, 0.0
        %269 = vst.msk [vmem:[#allocation2 + $0x8] sm:$0xff] %vm267, 0.0
      $region40: #{rfcn_forward.5} parent=35 // pred_fallthru
        _
      %v270 = vld [vmem:[#allocation2] sm:$0xff]
      %v271 = vld [vmem:[#allocation2 + $0x8] sm:$0xff]
      %v272 = vld [vmem:[%s245] sm:$0xff]
      %v273 = vld [vmem:[%s245 + $0x8] sm:$0xff]
      %v274 = vld [vmem:[%s245 + $0x10] sm:$0xf]
      %v275 = vld [vmem:[%s245 + $0x14] sm:$0xff]
      %v276 = vld [vmem:[%s245 + $0x1c] sm:$0xff]
      %v277 = vld [vmem:[%s245 + $0x24] sm:$0xf]
      %v278 = vld [vmem:[%s255] sm:$0xf]
      %v279 = vld [vmem:[%s255 + $0x4] sm:$0xf]
      %v280 = vld [vmem:[%s255 + $0x8] sm:$0xf]
      %v281 = vld [vmem:[%s255 + $0xc] sm:$0xf]
      %v282 = vld [vmem:[%s255 + $0x10] sm:$0xf]
      %v283 = vld [vmem:[%s255 + $0x14] sm:$0xf]
      %v284 = vld [vmem:[%s255 + $0x18] sm:$0xf]
      %v285 = vld [vmem:[%s255 + $0x1c] sm:$0xf]
      %v286 = vld [vmem:[%s255 + $0x20] sm:$0xf]
      %v287 = vld [vmem:[%s255 + $0x24] sm:$0xf]
      %v288 = vld [vmem:[%s255 + $0x28] sm:$0xf]
      %v289 = vld [vmem:[%s255 + $0x2c] sm:$0xf]
      %v290 = vld [vmem:[%s255 + $0x30] sm:$0xf]
      %v291 = vld [vmem:[%s255 + $0x34] sm:$0xf]
      %v292 = vld [vmem:[%s255 + $0x38] sm:$0xf]
      %v293 = vld [vmem:[%s255 + $0x3c] sm:$0xf]
      %v294 = vld [vmem:[%s255 + $0x40] sm:$0xf]
      %v295 = vld [vmem:[%s255 + $0x44] sm:$0xf]
      %v296 = vld [vmem:[%s255 + $0x48] sm:$0xf]
      %v297 = vld [vmem:[%s255 + $0x4c] sm:$0xf]
      %v298 = vld [vmem:[%s255 + $0x50] sm:$0xf]
      %v299 = vld [vmem:[%s255 + $0x54] sm:$0xf]
      %v300 = vld [vmem:[%s255 + $0x58] sm:$0xf]
      %v301 = vld [vmem:[%s255 + $0x5c] sm:$0xf]
      %v302 = vld [vmem:[%s255 + $0x60] sm:$0xf]
      %v303 = vld [vmem:[%s255 + $0x64] sm:$0xf]
      %v304 = vld [vmem:[%s255 + $0x68] sm:$0xf]
      %v305 = vld [vmem:[%s255 + $0x6c] sm:$0xf]
      %v306 = vld [vmem:[%s255 + $0x70] sm:$0xf]
      %v307 = vld [vmem:[%s255 + $0x74] sm:$0xf]
      %v308 = vld [vmem:[%s255 + $0x78] sm:$0xf]
      %v309 = vld [vmem:[%s255 + $0x7c] sm:$0xf]
      %v310 = vld [vmem:[%s255 + $0x80] sm:$0xf]
      %v311 = vld [vmem:[%s255 + $0x84] sm:$0xf]
      %v312 = vld [vmem:[%s255 + $0x88] sm:$0xf]
      %v313 = vld [vmem:[%s255 + $0x8c] sm:$0xf]
      %v314 = vld [vmem:[%s255 + $0x90] sm:$0xf]
      %v315 = vld [vmem:[%s255 + $0x94] sm:$0xf]
      %v316 = vld [vmem:[%s255 + $0x98] sm:$0xf]
      %v317 = vld [vmem:[%s255 + $0x9c] sm:$0xf]
      %v318 = vld [vmem:[%s255 + $0xa0] sm:$0xf]
      %v319 = vld [vmem:[%s255 + $0xa4] sm:$0xf]
      %v320 = vld [vmem:[%s255 + $0xa8] sm:$0xf]
      %v321 = vld [vmem:[%s255 + $0xac] sm:$0xf]
      %v322 = vld [vmem:[%s255 + $0xb0] sm:$0xf]
      %v323 = vld [vmem:[%s255 + $0xb4] sm:$0xf]
      %v324 = vld [vmem:[%s255 + $0xb8] sm:$0xf]
      %v325 = vld [vmem:[%s255 + $0xbc] sm:$0xf]
      %v326 = vld [vmem:[%s255 + $0xc0] sm:$0xf]
      %v327 = vld [vmem:[%s255 + $0xc4] sm:$0xf]
      %v328 = vld [vmem:[%s255 + $0xc8] sm:$0xf]
      %v329 = vld [vmem:[%s255 + $0xcc] sm:$0xf]
      %v330 = vld [vmem:[%s255 + $0xd0] sm:$0xf]
      %v331 = vld [vmem:[%s255 + $0xd4] sm:$0xf]
      %v332 = vld [vmem:[%s255 + $0xd8] sm:$0xf]
      %v333 = vld [vmem:[%s255 + $0xdc] sm:$0xf]
      %v334 = vld [vmem:[%s255 + $0xe0] sm:$0xf]
      %v335 = vld [vmem:[%s255 + $0xe4] sm:$0xf]
      %v336 = vld [vmem:[%s255 + $0xe8] sm:$0xf]
      %v337 = vld [vmem:[%s255 + $0xec] sm:$0xf]
      %v338 = vld [vmem:[%s255 + $0xf0] sm:$0xf]
      %v339 = vld [vmem:[%s255 + $0xf4] sm:$0xf]
      %v340 = vld [vmem:[%s255 + $0xf8] sm:$0xf]
      %v341 = vld [vmem:[%s255 + $0xfc] sm:$0xf]
      %v342 = vld [vmem:[%s255 + $0x100] sm:$0xf]
      %v343 = vld [vmem:[%s255 + $0x104] sm:$0xf]
      %v344 = vld [vmem:[%s255 + $0x108] sm:$0xf]
      %v345 = vld [vmem:[%s255 + $0x10c] sm:$0xf]
      %v346 = vld [vmem:[%s255 + $0x110] sm:$0xf]
      %v347 = vld [vmem:[%s255 + $0x114] sm:$0xf]
      %v348 = vld [vmem:[%s255 + $0x118] sm:$0xf]
      %v349 = vld [vmem:[%s255 + $0x11c] sm:$0xf]
      %v356 = vunpack.c.l.b16 %v272
      %v357 = vunpack.c.h.b16 %v272
      %v358 = vunpack.c.l.b16 %v273
      %v359 = vunpack.c.h.b16 %v273
      %v360 = vunpack.c.l.b16 %v274
      %v361 = vunpack.c.l.b16 %v275
      %v362 = vunpack.c.h.b16 %v275
      %v363 = vunpack.c.l.b16 %v276
      %v364 = vunpack.c.h.b16 %v276
      %v365 = vunpack.c.l.b16 %v277
      %v366 = vpack.c.b16 %v361, %v356
      %v367 = vpack.c.b16 %v362, %v357
      %v368 = vpack.c.b16 %v363, %v358
      %v369 = vpack.c.b16 %v364, %v359
      %v370 = vpack.c.b16 %v365, %v360
      %v447 = vunpack.c.l.b16 %v278
      %v448 = vunpack.c.l.b16 %v279
      %v449 = vunpack.c.l.b16 %v280
      %v450 = vunpack.c.l.b16 %v281
      %v451 = vunpack.c.l.b16 %v282
      %v452 = vunpack.c.l.b16 %v283
      %v453 = vunpack.c.l.b16 %v284
      %v454 = vunpack.c.l.b16 %v285
      %v455 = vunpack.c.l.b16 %v286
      %v456 = vunpack.c.l.b16 %v287
      %v457 = vunpack.c.l.b16 %v288
      %v458 = vunpack.c.l.b16 %v289
      %v459 = vunpack.c.l.b16 %v290
      %v460 = vunpack.c.l.b16 %v291
      %v461 = vunpack.c.l.b16 %v292
      %v462 = vunpack.c.l.b16 %v293
      %v463 = vunpack.c.l.b16 %v294
      %v464 = vunpack.c.l.b16 %v295
      %v465 = vunpack.c.l.b16 %v296
      %v466 = vunpack.c.l.b16 %v297
      %v467 = vunpack.c.l.b16 %v298
      %v468 = vunpack.c.l.b16 %v299
      %v469 = vunpack.c.l.b16 %v300
      %v470 = vunpack.c.l.b16 %v301
      %v471 = vunpack.c.l.b16 %v302
      %v472 = vunpack.c.l.b16 %v303
      %v473 = vunpack.c.l.b16 %v304
      %v474 = vunpack.c.l.b16 %v305
      %v475 = vunpack.c.l.b16 %v306
      %v476 = vunpack.c.l.b16 %v307
      %v477 = vunpack.c.l.b16 %v308
      %v478 = vunpack.c.l.b16 %v309
      %v479 = vunpack.c.l.b16 %v310
      %v480 = vunpack.c.l.b16 %v311
      %v481 = vunpack.c.l.b16 %v312
      %v482 = vunpack.c.l.b16 %v313
      %v483 = vunpack.c.l.b16 %v314
      %v484 = vunpack.c.l.b16 %v315
      %v485 = vunpack.c.l.b16 %v316
      %v486 = vunpack.c.l.b16 %v317
      %v487 = vunpack.c.l.b16 %v318
      %v488 = vunpack.c.l.b16 %v319
      %v489 = vunpack.c.l.b16 %v320
      %v490 = vunpack.c.l.b16 %v321
      %v491 = vunpack.c.l.b16 %v322
      %v492 = vunpack.c.l.b16 %v323
      %v493 = vunpack.c.l.b16 %v324
      %v494 = vunpack.c.l.b16 %v325
      %v495 = vunpack.c.l.b16 %v326
      %v496 = vunpack.c.l.b16 %v327
      %v497 = vunpack.c.l.b16 %v328
      %v498 = vunpack.c.l.b16 %v329
      %v499 = vunpack.c.l.b16 %v330
      %v500 = vunpack.c.l.b16 %v331
      %v501 = vunpack.c.l.b16 %v332
      %v502 = vunpack.c.l.b16 %v333
      %v503 = vunpack.c.l.b16 %v334
      %v504 = vunpack.c.l.b16 %v335
      %v505 = vunpack.c.l.b16 %v336
      %v506 = vunpack.c.l.b16 %v337
      %v507 = vunpack.c.l.b16 %v338
      %v508 = vunpack.c.l.b16 %v339
      %v509 = vunpack.c.l.b16 %v340
      %v510 = vunpack.c.l.b16 %v341
      %v511 = vunpack.c.l.b16 %v342
      %v512 = vunpack.c.l.b16 %v343
      %v513 = vunpack.c.l.b16 %v344
      %v514 = vunpack.c.l.b16 %v345
      %v515 = vunpack.c.l.b16 %v346
      %v516 = vunpack.c.l.b16 %v347
      %v517 = vunpack.c.l.b16 %v348
      %v518 = vunpack.c.l.b16 %v349
      %v519 = vpack.c.b16 %v448, %v447
      %v520 = vpack.c.b16 %v450, %v449
      %v521 = vpack.c.b16 %v452, %v451
      %v522 = vpack.c.b16 %v454, %v453
      %v523 = vpack.c.b16 %v456, %v455
      %v524 = vpack.c.b16 %v458, %v457
      %v525 = vpack.c.b16 %v460, %v459
      %v526 = vpack.c.b16 %v462, %v461
      %v527 = vpack.c.b16 %v464, %v463
      %v528 = vpack.c.b16 %v466, %v465
      %v529 = vpack.c.b16 %v468, %v467
      %v530 = vpack.c.b16 %v470, %v469
      %v531 = vpack.c.b16 %v472, %v471
      %v532 = vpack.c.b16 %v474, %v473
      %v533 = vpack.c.b16 %v476, %v475
      %v534 = vpack.c.b16 %v478, %v477
      %v535 = vpack.c.b16 %v480, %v479
      %v536 = vpack.c.b16 %v482, %v481
      %v537 = vpack.c.b16 %v484, %v483
      %v538 = vpack.c.b16 %v486, %v485
      %v539 = vpack.c.b16 %v488, %v487
      %v540 = vpack.c.b16 %v490, %v489
      %v541 = vpack.c.b16 %v492, %v491
      %v542 = vpack.c.b16 %v494, %v493
      %v543 = vpack.c.b16 %v496, %v495
      %v544 = vpack.c.b16 %v498, %v497
      %v545 = vpack.c.b16 %v500, %v499
      %v546 = vpack.c.b16 %v502, %v501
      %v547 = vpack.c.b16 %v504, %v503
      %v548 = vpack.c.b16 %v506, %v505
      %v549 = vpack.c.b16 %v508, %v507
      %v550 = vpack.c.b16 %v510, %v509
      %v551 = vpack.c.b16 %v512, %v511
      %v552 = vpack.c.b16 %v514, %v513
      %v553 = vpack.c.b16 %v516, %v515
      %v554 = vpack.c.b16 %v518, %v517
      %vm591 = vcmask 523264
      %v593 = vsel %vm591, %v370, 0
      %595 = vmatpush.bf16.msra.mxu0 %v526
      %596 = vmatpush.bf16.msra.mxu0 %v525
      %597 = vmatpush.bf16.msra.mxu0 %v524
      %598 = vmatpush.bf16.msra.mxu0 %v523
      %599 = vmatpush.bf16.msra.mxu0 %v522
      %600 = vmatpush.bf16.msra.mxu0 %v521
      %601 = vmatpush.bf16.msra.mxu0 %v520
      %602 = vmatpush.bf16.msra.mxu0 %v519
      %603 = vmatmul.bf16.gmra.mxu0 %v366
      %v604 = vpop.f32.mrf.mxu0
      %v605 = vadd.f32 0.0, %v604
      %v606 = vpop.f32.mrf.mxu0
      %v607 = vadd.f32 0.0, %v606
      %608 = vdwg.mxu0
      %609 = vmatpush.bf16.msra.mxu0 %v534
      %610 = vmatpush.bf16.msra.mxu0 %v533
      %611 = vmatpush.bf16.msra.mxu0 %v532
      %612 = vmatpush.bf16.msra.mxu0 %v531
      %613 = vmatpush.bf16.msra.mxu0 %v530
      %614 = vmatpush.bf16.msra.mxu0 %v529
      %615 = vmatpush.bf16.msra.mxu0 %v528
      %616 = vmatpush.bf16.msra.mxu0 %v527
      %617 = vmatmul.bf16.gmra.mxu0 %v367
      %v618 = vpop.f32.mrf.mxu0
      %v619 = vadd.f32 %v605, %v618
      %v620 = vpop.f32.mrf.mxu0
      %v621 = vadd.f32 %v607, %v620
      %622 = vdwg.mxu0
      %623 = vmatpush.bf16.msra.mxu0 %v542
      %624 = vmatpush.bf16.msra.mxu0 %v541
      %625 = vmatpush.bf16.msra.mxu0 %v540
      %626 = vmatpush.bf16.msra.mxu0 %v539
      %627 = vmatpush.bf16.msra.mxu0 %v538
      %628 = vmatpush.bf16.msra.mxu0 %v537
      %629 = vmatpush.bf16.msra.mxu0 %v536
      %630 = vmatpush.bf16.msra.mxu0 %v535
      %631 = vmatmul.bf16.gmra.mxu0 %v368
      %v632 = vpop.f32.mrf.mxu0
      %v633 = vadd.f32 %v619, %v632
      %v634 = vpop.f32.mrf.mxu0
      %v635 = vadd.f32 %v621, %v634
      %636 = vdwg.mxu0
      %637 = vmatpush.bf16.msra.mxu0 %v550
      %638 = vmatpush.bf16.msra.mxu0 %v549
      %639 = vmatpush.bf16.msra.mxu0 %v548
      %640 = vmatpush.bf16.msra.mxu0 %v547
      %641 = vmatpush.bf16.msra.mxu0 %v546
      %642 = vmatpush.bf16.msra.mxu0 %v545
      %643 = vmatpush.bf16.msra.mxu0 %v544
      %644 = vmatpush.bf16.msra.mxu0 %v543
      %645 = vmatmul.bf16.gmra.mxu0 %v369
      %v646 = vpop.f32.mrf.mxu0
      %v647 = vadd.f32 %v633, %v646
      %v648 = vpop.f32.mrf.mxu0
      %v649 = vadd.f32 %v635, %v648
      %650 = vdwg.mxu0
      %651 = vmatpush.bf16.msra.mxu0 0
      %652 = vmatpush.bf16.msra.mxu0 0
      %653 = vmatpush.bf16.msra.mxu0 0
      %654 = vmatpush.bf16.msra.mxu0 0
      %655 = vmatpush.bf16.msra.mxu0 %v554
      %656 = vmatpush.bf16.msra.mxu0 %v553
      %657 = vmatpush.bf16.msra.mxu0 %v552
      %658 = vmatpush.bf16.msra.mxu0 %v551
      %659 = vmatmul.bf16.gmra.mxu0 %v593
      %v660 = vpop.f32.mrf.mxu0
      %v661 = vadd.f32 %v647, %v660
      %v662 = vpop.f32.mrf.mxu0
      %v663 = vadd.f32 %v649, %v662
      %664 = vdwg.mxu0
      %v665 = vadd.f32 %v270, %v661
      %v666 = vadd.f32 %v271, %v663
      %vm667 = vcmask 121856
      %668 = vst.msk [vmem:[#allocation2] sm:$0xff] %vm667, %v665
      %669 = vst.msk [vmem:[#allocation2 + $0x8] sm:$0xff] %vm667, %v666
      // Predicated region
      $region41: #{rfcn_forward.5} parent=35 // pred_check
        %p670 = pneg %p263
      $region42: #{rfcn_forward.5} parent=35 // pred_check_branch
        %672 = sbr.rel (%p670) target = $region44
      $region43: #{rfcn_forward.5} parent=35 // pred_region
        %v673 = vld [vmem:[#allocation2] sm:$0xff]
        %v674 = vld [vmem:[#allocation2 + $0x8] sm:$0xff]
        %v675 = vld [vmem:[%s2] sm:$0x1]
        %v677 = vperm.slane %v675, 0
        %v679 = vmul.f32 %v673, %v677
        %v680 = vmul.f32 %v674, %v677
        %v681 = vld [vmem:[%s3] sm:$0x1]
        %v683 = vperm.slane %v681, 0
        %v685 = vadd.f32 %v679, %v683
        %v686 = vadd.f32 %v680, %v683
        %v687 = vlaneseq
        %v688 = vand.u32 %v687, 127
        %vm689 = vcmp.lt.s32.totalorder %v688, 3
        %v690 = vsel %vm689, %v685, -1e+30
        %v691 = vsel %vm689, %v686, -1e+30
        %v692 = vsel %vm667, %v690, -inf
        %693 = vmax.xlane.f32.xlu0 %v692
        %v694 = vpop.xlane.xlu0 %693
        %v695 = vsel %vm667, %v691, -inf
        %696 = vmax.xlane.f32.xlu0 %v695
        %v697 = vpop.xlane.xlu0 %696
        %v698 = vsub.f32 %v690, %v694
        %v699 = vsub.f32 %v691, %v697
        %v700 = vmul.f32 %v698, 1.442695
        %v701 = vpow.pop %v700
        %v702 = vmul.f32 %v699, 1.442695
        %v703 = vpow.pop %v702
        %v704 = vsel %vm667, %v701, 0.0
        %705 = vadd.xlane.f32.xlu0 %v704
        %v706 = vpop.xlane.xlu0 %705
        %v707 = vsel %vm667, %v703, 0.0
        %708 = vadd.xlane.f32.xlu0 %v707
        %v709 = vpop.xlane.xlu0 %708
        %v710 = vrcp.pop %v706
        %v711 = vmul.f32 %v706, %v710
        %v712 = vsub.f32 1.0, %v711
        %v713 = vmul.f32 %v710, %v712
        %v714 = vadd.f32 %v710, %v713
        %vm715 = vweird.f32 %v706
        %vm716 = vweird.f32 %v710
        %vm717 = vmor %vm715, %vm716
        %v718 = vsel %vm717, %v710, %v714
        %v719 = vand.u32 2147483647, %v706
        %vm720 = vcmp.eq.f32.partialorder %v719, 8.507059e+37
        %v721 = vand.u32 %v706, 2147483648
        %v722 = vor.u32 1.1754944e-38, %v721
        %v723 = vsel %vm720, %v722, %v718
        %v724 = vmul.f32 %v701, %v723
        %v725 = vrcp.pop %v709
        %v726 = vmul.f32 %v709, %v725
        %v727 = vsub.f32 1.0, %v726
        %v728 = vmul.f32 %v725, %v727
        %v729 = vadd.f32 %v725, %v728
        %vm730 = vweird.f32 %v709
        %vm731 = vweird.f32 %v725
        %vm732 = vmor %vm730, %vm731
        %v733 = vsel %vm732, %v725, %v729
        %v734 = vand.u32 2147483647, %v709
        %vm735 = vcmp.eq.f32.partialorder %v734, 8.507059e+37
        %v736 = vand.u32 %v709, 2147483648
        %v737 = vor.u32 1.1754944e-38, %v736
        %v738 = vsel %vm735, %v737, %v733
        %v739 = vmul.f32 %v703, %v738
        %v740 = vsel %vm689, %v724, %v685
        %v741 = vsel %vm689, %v739, %v686
        %742 = vst.msk [vmem:[%s261] sm:$0xff] %vm667, %v740
        %743 = vst.msk [vmem:[%s261 + $0x8] sm:$0xff] %vm667, %v741
      $region44: #{rfcn_forward.5} parent=35 // pred_fallthru
        _
      %p744 = scmp.lt.s32.totalorder %s19, 1
      %s745 = scalar_select %p744, %s19, 1
      %s746 = smul.addr %s745, 2
      %s747 = smul.addr %s746, 8
      %s748 = scalar_lea.vmem %s4, %s747
      // Predicated region
      $region45: #{rfcn_forward.5} parent=35 // pred_check
        %p749 = pneg %p143
      $region46: #{rfcn_forward.5} parent=35 // pred_check_branch
        %751 = sbr.rel (%p749) target = $region48
      $region47: #{rfcn_forward.5} parent=35 // pred_region
        _
      $region48: #{rfcn_forward.5} parent=35 // pred_fallthru
        _
    $region36: #{rfcn_forward.5} parent=5 // pred_fallthru
      _
    %p752 = scmp.le.s32.totalorder 2, %s10
    // Predicated region
    $region49: #{rfcn_forward.5} parent=5 // pred_check
      %p753 = pneg %p752
    $region50: #{rfcn_forward.5} parent=5 // pred_check_branch
      %755 = sbr.rel (%p753) target = $region52
    $region51: #{rfcn_forward.5} parent=5 // pred_region
      %s756 = ssub.s32 %s10, 2
      // Predicated region
      $region53: #{rfcn_forward.5} parent=51 // pred_check
        %p757 = pneg %p149
      $region54: #{rfcn_forward.5} parent=51 // pred_check_branch
        %759 = sbr.rel (%p757) target = $region56
      $region55: #{rfcn_forward.5} parent=51 // pred_region
        %p760 = scmp.lt.s32.totalorder %s21, 1
        %s761 = scalar_select %p760, %s21, 1
        %s762 = smul.addr %s761, 2
        %s763 = smul.addr %s762, 8
        %s764 = scalar_lea.vmem %s4, %s763
      $region56: #{rfcn_forward.5} parent=51 // pred_fallthru
        _
    $region52: #{rfcn_forward.5} parent=5 // pred_fallthru
      _
  $region6: #{rfcn_forward.5} parent=0 // loop_footer
    %s14 = sadd.s32 1, %s10
  $region7: #{rfcn_forward.5} parent=0 // loop_footer_branch
    %9 = sbr.rel target = $region3
  $region8: #{rfcn_forward.5} parent=0 // loop_exit
    _

</llo_original>
